<compile_context>
chip_gen: v7x
topology: tpu7x:2x2x1
jax: 0.10.0
libtpu: 0.0.40
codegen_flags: <defaults>
</compile_context>

<pallas_src>
import functools

import jax
import jax.numpy as jnp
from jax.experimental import pallas as pl
from jax.experimental.pallas import tpu as pltpu


def cvae_kernel(
    # per-row inputs
    x_ref,       # (BM, input_dim)              f32
    y_ref,       # (BM, num_classes)            f32  (one-hot)
    eps_ref,     # (BM, latent)                 f32
    # VMEM-resident parameters
    w1x_ref,     # (input_dim, hidden)          bf16  encoder fc1 (x part)
    w1y_ref,     # (num_classes, 2*hidden)      bf16  [e_w1_y | d_wc]
    e_b1_ref,    # (1, hidden)                  f32
    d_b1_ref,    # (1, hidden)                  f32
    w23_ref,     # (hidden, 2*latent)           bf16  [e_w2 | e_w3]
    b23_ref,     # (1, 2*latent)                f32
    d_wz_ref,    # (latent, hidden)             bf16  decoder fc1 (z part)
    d_w2_ref,    # (hidden, input_dim)          bf16
    d_b2_ref,    # (1, input_dim)               f32
    # outputs
    recon_ref,   # (BM, input_dim)              f32
    mean_ref,    # (BM, latent)                 f32
    logvar_ref,  # (BM, latent)                 f32
):
    hidden = e_b1_ref.shape[1]
    latent = eps_ref.shape[1]

    x = x_ref[...].astype(jnp.bfloat16)
    y = y_ref[...].astype(jnp.bfloat16)

    # ---- Encoder fc1 (split K) + decoder class-label contribution --------
    # x @ w1x            -> encoder pre-activation, x part        (BM, hidden)
    # y @ [e_w1_y | d_wc] -> encoder label part | decoder label part
    t_x = jnp.dot(x, w1x_ref[...], preferred_element_type=jnp.float32)
    t_y = jnp.dot(y, w1y_ref[...], preferred_element_type=jnp.float32)

    h = jnp.maximum(t_x + t_y[:, :hidden] + e_b1_ref[...], 0.0)   # ReLU, f32
    yc = t_y[:, hidden:]                                          # labels @ d_wc

    # ---- Fused mean / log_var heads (one MXU pass) ------------------------
    ml = jnp.dot(h.astype(jnp.bfloat16), w23_ref[...],
                 preferred_element_type=jnp.float32) + b23_ref[...]
    mean = ml[:, :latent]
    log_var = ml[:, latent:]

    # ---- Reparameterize (f32 elementwise) ----------------------------------
    z = mean + eps_ref[...] * jnp.exp(0.5 * log_var)

    # ---- Decoder ------------------------------------------------------------
    h2 = jnp.maximum(
        jnp.dot(z.astype(jnp.bfloat16), d_wz_ref[...],
                preferred_element_type=jnp.float32) + yc + d_b1_ref[...],
        0.0)
    recon = jnp.dot(h2.astype(jnp.bfloat16), d_w2_ref[...],
                    preferred_element_type=jnp.float32) + d_b2_ref[...]

    recon_ref[...] = recon
    mean_ref[...] = mean
    logvar_ref[...] = log_var


@functools.partial(jax.jit, static_argnames=("block_m",))
def cvae_forward(x, class_labels, eps, kp, *, block_m=512):
    B, input_dim = x.shape
    num_classes = class_labels.shape[1]
    latent = eps.shape[1]
    hidden = kp["e_b1"].shape[1]

    bm = min(block_m, B)
    n_tiles = pl.cdiv(B, bm)
    Bp = n_tiles * bm
    if Bp != B:
        # Fallback only; choose B (or block_m) so this doesn't trigger —
        # padding costs a full extra copy of the activation streams.
        pad = Bp - B
        x = jnp.pad(x, ((0, pad), (0, 0)))
        class_labels = jnp.pad(class_labels, ((0, pad), (0, 0)))
        eps = jnp.pad(eps, ((0, pad), (0, 0)))

    def row_spec(d):
        return pl.BlockSpec((bm, d), lambda i: (i, 0))

    def const_spec(a):
        return pl.BlockSpec(a.shape, lambda i: (0, 0))

    out_shapes = (
        jax.ShapeDtypeStruct((Bp, input_dim), jnp.float32),   # recon
        jax.ShapeDtypeStruct((Bp, latent), jnp.float32),      # mean
        jax.ShapeDtypeStruct((Bp, latent), jnp.float32),      # log_var
    )

    recon, mean, log_var = pl.pallas_call(
        cvae_kernel,
        out_shape=out_shapes,
        grid=(n_tiles,),
        in_specs=[
            row_spec(input_dim),
            row_spec(num_classes),
            row_spec(latent),
            const_spec(kp["w1x"]),
            const_spec(kp["w1y"]),
            const_spec(kp["e_b1"]),
            const_spec(kp["d_b1"]),
            const_spec(kp["w23"]),
            const_spec(kp["b23"]),
            const_spec(kp["d_wz"]),
            const_spec(kp["d_w2"]),
            const_spec(kp["d_b2"]),
        ],
        out_specs=(
            row_spec(input_dim),
            row_spec(latent),
            row_spec(latent),
        ),
        compiler_params=pltpu.CompilerParams(
            dimension_semantics=("parallel",)),
    )(x, class_labels, eps, kp["w1x"], kp["w1y"], kp["e_b1"], kp["d_b1"],
      kp["w23"], kp["b23"], kp["d_wz"], kp["d_w2"], kp["d_b2"])

    if Bp != B:
        recon, mean, log_var = recon[:B], mean[:B], log_var[:B]
    return recon, mean, log_var


def init_params(key, input_dim, hidden_dim, latent_dim, num_classes):
    """Synthetic torch-equivalent parameters, weights stored as (in, out)."""
    ks = jax.random.split(key, 10)

    def w(k, fi, fo):
        return jax.random.normal(k, (fi, fo), jnp.float32) / jnp.sqrt(fi)

    def b(k, fo):
        return jax.random.normal(k, (1, fo), jnp.float32) * 0.01

    return dict(
        e_w1=w(ks[0], input_dim + num_classes, hidden_dim), e_b1=b(ks[1], hidden_dim),
        e_w2=w(ks[2], hidden_dim, latent_dim),              e_b2=b(ks[3], latent_dim),
        e_w3=w(ks[4], hidden_dim, latent_dim),              e_b3=b(ks[5], latent_dim),
        d_w1=w(ks[6], latent_dim + num_classes, hidden_dim), d_b1=b(ks[7], hidden_dim),
        d_w2=w(ks[8], hidden_dim, input_dim),               d_b2=b(ks[9], input_dim),
    )


def pack_params(p):
    """Build the fused bf16 kernel operands from torch-layout params."""
    input_dim = p["d_w2"].shape[1]
    latent = p["e_w2"].shape[1]
    bf16 = jnp.bfloat16

    d_wz = p["d_w1"][:latent]           # (latent, hidden)
    d_wc = p["d_w1"][latent:]           # (num_classes, hidden)
    w1x = p["e_w1"][:input_dim]         # (input_dim, hidden)
    # [ e_w1_y | d_wc ]: one small (K=num_classes) matmul yields the encoder
    # fc1 label contribution AND the decoder's class-label contribution.
    w1y = jnp.concatenate([p["e_w1"][input_dim:], d_wc], axis=1)
    w23 = jnp.concatenate([p["e_w2"], p["e_w3"]], axis=1)
    b23 = jnp.concatenate([p["e_b2"], p["e_b3"]], axis=1)

    return dict(
        w1x=w1x.astype(bf16),
        w1y=w1y.astype(bf16),
        e_b1=p["e_b1"],
        d_b1=p["d_b1"],
        w23=w23.astype(bf16),
        b23=b23,
        d_wz=d_wz.astype(bf16),
        d_w2=p["d_w2"].astype(bf16),
        d_b2=p["d_b2"],
    )


def cvae_reference(x, y, eps, p):
    """Pure-JAX reference with the same bf16-operand / f32-accum precision."""
    def dot(a, w):
        return jnp.dot(a.astype(jnp.bfloat16), w.astype(jnp.bfloat16),
                       preferred_element_type=jnp.float32)

    xy = jnp.concatenate([x, y], axis=-1)
    h = jnp.maximum(dot(xy, p["e_w1"]) + p["e_b1"], 0.0)
    mean = dot(h, p["e_w2"]) + p["e_b2"]
    log_var = dot(h, p["e_w3"]) + p["e_b3"]
    z = mean + eps * jnp.exp(0.5 * log_var)
    zy = jnp.concatenate([z, y], axis=-1)
    h2 = jnp.maximum(dot(zy, p["d_w1"]) + p["d_b1"], 0.0)
    recon = dot(h2, p["d_w2"]) + p["d_b2"]
    return recon, mean, log_var


if __name__ == "__main__":
    # Batch chosen so the grid gives exactly 2 parallel tiles at block_m=512
    # (keeps both v7x TensorCores busy); feature dims implied by the module.
    B, input_dim, hidden_dim, latent_dim, num_classes = 1024, 64, 32, 16, 8

    key = jax.random.PRNGKey(0)
    k_p, k_x, k_y, k_e = jax.random.split(key, 4)

    params = init_params(k_p, input_dim, hidden_dim, latent_dim, num_classes)
    kparams = pack_params(params)

    x = jax.random.normal(k_x, (B, input_dim), jnp.float32)
    labels = jax.random.randint(k_y, (B,), 0, num_classes)
    class_labels = jax.nn.one_hot(labels, num_classes, dtype=jnp.float32)
    # eps plays the role of torch.randn_like(std) in reparameterize; passed
    # explicitly so the kernel is deterministic and checkable.
    eps = jax.random.normal(k_e, (B, latent_dim), jnp.float32)

    recon, mean, log_var = cvae_forward(x, class_labels, eps, kparams)
    jax.block_until_ready((recon, mean, log_var))

    r_ref, m_ref, lv_ref = cvae_reference(x, class_labels, eps, params)
    assert jnp.allclose(mean, m_ref, atol=1e-2, rtol=1e-2)
    assert jnp.allclose(log_var, lv_ref, atol=1e-2, rtol=1e-2)
    assert jnp.allclose(recon, r_ref, atol=2e-2, rtol=2e-2)

    print("KERNEL_OK")
</pallas_src>

<mosaic_0001>
module attributes {stable_mosaic.version = 11 : i64} {
  func.func @cvae_kernel(%arg0: i32, %arg1: memref<512x64xf32, #tpu.memory_space<vmem>>, %arg2: memref<512x8xf32, #tpu.memory_space<vmem>>, %arg3: memref<512x16xf32, #tpu.memory_space<vmem>>, %arg4: memref<64x32xbf16, #tpu.memory_space<vmem>>, %arg5: memref<8x64xbf16, #tpu.memory_space<vmem>>, %arg6: memref<1x32xf32, #tpu.memory_space<vmem>>, %arg7: memref<1x32xf32, #tpu.memory_space<vmem>>, %arg8: memref<32x32xbf16, #tpu.memory_space<vmem>>, %arg9: memref<1x32xf32, #tpu.memory_space<vmem>>, %arg10: memref<16x32xbf16, #tpu.memory_space<vmem>>, %arg11: memref<32x64xbf16, #tpu.memory_space<vmem>>, %arg12: memref<1x64xf32, #tpu.memory_space<vmem>>, %arg13: memref<512x64xf32, #tpu.memory_space<vmem>>, %arg14: memref<512x16xf32, #tpu.memory_space<vmem>>, %arg15: memref<512x16xf32, #tpu.memory_space<vmem>>) attributes {dimension_semantics = [#tpu.dimension_semantics<parallel>], iteration_bounds = array<i64: 2>, scalar_prefetch = 0 : i64, scratch_operands = 0 : i64, tpu.core_type = #tpu.core_type<tc>, window_params = [{transform_indices = @transform_0, window_bounds = array<i64: 512, 64>}, {transform_indices = @transform_1, window_bounds = array<i64: 512, 8>}, {transform_indices = @transform_2, window_bounds = array<i64: 512, 16>}, {pipeline_mode = #tpu.pipeline_mode<synchronous>, transform_indices = @transform_3, window_bounds = array<i64: 64, 32>}, {pipeline_mode = #tpu.pipeline_mode<synchronous>, transform_indices = @transform_4, window_bounds = array<i64: 8, 64>}, {pipeline_mode = #tpu.pipeline_mode<synchronous>, transform_indices = @transform_5, window_bounds = array<i64: 1, 32>}, {pipeline_mode = #tpu.pipeline_mode<synchronous>, transform_indices = @transform_6, window_bounds = array<i64: 1, 32>}, {pipeline_mode = #tpu.pipeline_mode<synchronous>, transform_indices = @transform_7, window_bounds = array<i64: 32, 32>}, {pipeline_mode = #tpu.pipeline_mode<synchronous>, transform_indices = @transform_8, window_bounds = array<i64: 1, 32>}, {pipeline_mode = #tpu.pipeline_mode<synchronous>, transform_indices = @transform_9, window_bounds = array<i64: 16, 32>}, {pipeline_mode = #tpu.pipeline_mode<synchronous>, transform_indices = @transform_10, window_bounds = array<i64: 32, 64>}, {pipeline_mode = #tpu.pipeline_mode<synchronous>, transform_indices = @transform_11, window_bounds = array<i64: 1, 64>}, {transform_indices = @transform_12, window_bounds = array<i64: 512, 64>}, {transform_indices = @transform_13, window_bounds = array<i64: 512, 16>}, {transform_indices = @transform_14, window_bounds = array<i64: 512, 16>}]} {
    %c0 = arith.constant 0 : index
    %c0_0 = arith.constant 0 : index
    %0 = vector.load %arg1[%c0, %c0_0] : memref<512x64xf32, #tpu.memory_space<vmem>>, vector<512x64xf32>
    %1 = arith.truncf %0 : vector<512x64xf32> to vector<512x64xbf16>
    %c0_1 = arith.constant 0 : index
    %c0_2 = arith.constant 0 : index
    %2 = vector.load %arg2[%c0_1, %c0_2] : memref<512x8xf32, #tpu.memory_space<vmem>>, vector<512x8xf32>
    %3 = arith.truncf %2 : vector<512x8xf32> to vector<512x8xbf16>
    %c0_3 = arith.constant 0 : index
    %c0_4 = arith.constant 0 : index
    %4 = vector.load %arg4[%c0_3, %c0_4] : memref<64x32xbf16, #tpu.memory_space<vmem>>, vector<64x32xbf16>
    %cst = arith.constant dense<0.000000e+00> : vector<512x32xf32>
    %5 = tpu.matmul %1, %4, %cst {dimension_numbers = #tpu.dot_dimension_numbers<[1], [0], [0], [1], [0, 0, 1, 1], [], []>} : vector<512x64xbf16>, vector<64x32xbf16>, vector<512x32xf32> -> vector<512x32xf32>
    %c0_5 = arith.constant 0 : index
    %c0_6 = arith.constant 0 : index
    %6 = vector.load %arg5[%c0_5, %c0_6] : memref<8x64xbf16, #tpu.memory_space<vmem>>, vector<8x64xbf16>
    %cst_7 = arith.constant dense<0.000000e+00> : vector<512x64xf32>
    %7 = tpu.matmul %3, %6, %cst_7 {dimension_numbers = #tpu.dot_dimension_numbers<[1], [0], [0], [1], [0, 0, 1, 1], [], []>} : vector<512x8xbf16>, vector<8x64xbf16>, vector<512x64xf32> -> vector<512x64xf32>
    %8 = vector.extract_strided_slice %7 {offsets = [0, 0], sizes = [512, 32], strides = [1, 1]} : vector<512x64xf32> to vector<512x32xf32>
    %9 = arith.addf %5, %8 : vector<512x32xf32>
    %c0_8 = arith.constant 0 : index
    %c0_9 = arith.constant 0 : index
    %10 = vector.load %arg6[%c0_8, %c0_9] : memref<1x32xf32, #tpu.memory_space<vmem>>, vector<1x32xf32>
    %11 = vector.broadcast %10 : vector<1x32xf32> to vector<512x32xf32>
    %12 = arith.addf %9, %11 : vector<512x32xf32>
    %cst_10 = arith.constant 0.000000e+00 : f32
    %13 = vector.broadcast %cst_10 : f32 to vector<512x32xf32>
    %14 = arith.maximumf %12, %13 : vector<512x32xf32>
    %15 = vector.extract_strided_slice %7 {offsets = [0, 32], sizes = [512, 32], strides = [1, 1]} : vector<512x64xf32> to vector<512x32xf32>
    %16 = arith.truncf %14 : vector<512x32xf32> to vector<512x32xbf16>
    %c0_11 = arith.constant 0 : index
    %c0_12 = arith.constant 0 : index
    %17 = vector.load %arg8[%c0_11, %c0_12] : memref<32x32xbf16, #tpu.memory_space<vmem>>, vector<32x32xbf16>
    %cst_13 = arith.constant dense<0.000000e+00> : vector<512x32xf32>
    %18 = tpu.matmul %16, %17, %cst_13 {dimension_numbers = #tpu.dot_dimension_numbers<[1], [0], [0], [1], [0, 0, 1, 1], [], []>} : vector<512x32xbf16>, vector<32x32xbf16>, vector<512x32xf32> -> vector<512x32xf32>
    %c0_14 = arith.constant 0 : index
    %c0_15 = arith.constant 0 : index
    %19 = vector.load %arg9[%c0_14, %c0_15] : memref<1x32xf32, #tpu.memory_space<vmem>>, vector<1x32xf32>
    %20 = vector.broadcast %19 : vector<1x32xf32> to vector<512x32xf32>
    %21 = arith.addf %18, %20 : vector<512x32xf32>
    %22 = vector.extract_strided_slice %21 {offsets = [0, 0], sizes = [512, 16], strides = [1, 1]} : vector<512x32xf32> to vector<512x16xf32>
    %23 = vector.extract_strided_slice %21 {offsets = [0, 16], sizes = [512, 16], strides = [1, 1]} : vector<512x32xf32> to vector<512x16xf32>
    %c0_16 = arith.constant 0 : index
    %c0_17 = arith.constant 0 : index
    %24 = vector.load %arg3[%c0_16, %c0_17] : memref<512x16xf32, #tpu.memory_space<vmem>>, vector<512x16xf32>
    %cst_18 = arith.constant 5.000000e-01 : f32
    %25 = vector.broadcast %cst_18 : f32 to vector<512x16xf32>
    %26 = arith.mulf %25, %23 : vector<512x16xf32>
    %27 = math.exp %26 : vector<512x16xf32>
    %28 = arith.mulf %24, %27 : vector<512x16xf32>
    %29 = arith.addf %22, %28 : vector<512x16xf32>
    %30 = arith.truncf %29 : vector<512x16xf32> to vector<512x16xbf16>
    %c0_19 = arith.constant 0 : index
    %c0_20 = arith.constant 0 : index
    %31 = vector.load %arg10[%c0_19, %c0_20] : memref<16x32xbf16, #tpu.memory_space<vmem>>, vector<16x32xbf16>
    %cst_21 = arith.constant dense<0.000000e+00> : vector<512x32xf32>
    %32 = tpu.matmul %30, %31, %cst_21 {dimension_numbers = #tpu.dot_dimension_numbers<[1], [0], [0], [1], [0, 0, 1, 1], [], []>} : vector<512x16xbf16>, vector<16x32xbf16>, vector<512x32xf32> -> vector<512x32xf32>
    %33 = arith.addf %32, %15 : vector<512x32xf32>
    %c0_22 = arith.constant 0 : index
    %c0_23 = arith.constant 0 : index
    %34 = vector.load %arg7[%c0_22, %c0_23] : memref<1x32xf32, #tpu.memory_space<vmem>>, vector<1x32xf32>
    %35 = vector.broadcast %34 : vector<1x32xf32> to vector<512x32xf32>
    %36 = arith.addf %33, %35 : vector<512x32xf32>
    %cst_24 = arith.constant 0.000000e+00 : f32
    %37 = vector.broadcast %cst_24 : f32 to vector<512x32xf32>
    %38 = arith.maximumf %36, %37 : vector<512x32xf32>
    %39 = arith.truncf %38 : vector<512x32xf32> to vector<512x32xbf16>
    %c0_25 = arith.constant 0 : index
    %c0_26 = arith.constant 0 : index
    %40 = vector.load %arg11[%c0_25, %c0_26] : memref<32x64xbf16, #tpu.memory_space<vmem>>, vector<32x64xbf16>
    %cst_27 = arith.constant dense<0.000000e+00> : vector<512x64xf32>
    %41 = tpu.matmul %39, %40, %cst_27 {dimension_numbers = #tpu.dot_dimension_numbers<[1], [0], [0], [1], [0, 0, 1, 1], [], []>} : vector<512x32xbf16>, vector<32x64xbf16>, vector<512x64xf32> -> vector<512x64xf32>
    %c0_28 = arith.constant 0 : index
    %c0_29 = arith.constant 0 : index
    %42 = vector.load %arg12[%c0_28, %c0_29] : memref<1x64xf32, #tpu.memory_space<vmem>>, vector<1x64xf32>
    %43 = vector.broadcast %42 : vector<1x64xf32> to vector<512x64xf32>
    %44 = arith.addf %41, %43 : vector<512x64xf32>
    %c0_30 = arith.constant 0 : index
    %c0_31 = arith.constant 0 : index
    %45 = vector.load %arg13[%c0_30, %c0_31] : memref<512x64xf32, #tpu.memory_space<vmem>>, vector<512x64xf32>
    tpu.vector_store %arg13[%c0_30, %c0_31], %44 {strides = array<i32>} : memref<512x64xf32, #tpu.memory_space<vmem>>, vector<512x64xf32>,
    %c0_32 = arith.constant 0 : index
    %c0_33 = arith.constant 0 : index
    %46 = vector.load %arg14[%c0_32, %c0_33] : memref<512x16xf32, #tpu.memory_space<vmem>>, vector<512x16xf32>
    tpu.vector_store %arg14[%c0_32, %c0_33], %22 {strides = array<i32>} : memref<512x16xf32, #tpu.memory_space<vmem>>, vector<512x16xf32>,
    %c0_34 = arith.constant 0 : index
    %c0_35 = arith.constant 0 : index
    %47 = vector.load %arg15[%c0_34, %c0_35] : memref<512x16xf32, #tpu.memory_space<vmem>>, vector<512x16xf32>
    tpu.vector_store %arg15[%c0_34, %c0_35], %23 {strides = array<i32>} : memref<512x16xf32, #tpu.memory_space<vmem>>, vector<512x16xf32>,
    return
  }
  func.func @transform_0(%arg0: i32) -> (i32, i32) {
    %c0_i32 = arith.constant 0 : i32
    %c0_i32_0 = arith.constant 0 : i32
    return %arg0, %c0_i32 : i32, i32
  }
  func.func @transform_1(%arg0: i32) -> (i32, i32) {
    %c0_i32 = arith.constant 0 : i32
    %c0_i32_0 = arith.constant 0 : i32
    return %arg0, %c0_i32 : i32, i32
  }
  func.func @transform_2(%arg0: i32) -> (i32, i32) {
    %c0_i32 = arith.constant 0 : i32
    %c0_i32_0 = arith.constant 0 : i32
    return %arg0, %c0_i32 : i32, i32
  }
  func.func @transform_3(%arg0: i32) -> (i32, i32) {
    %c0_i32 = arith.constant 0 : i32
    %c0_i32_0 = arith.constant 0 : i32
    %c0_i32_1 = arith.constant 0 : i32
    return %c0_i32, %c0_i32_0 : i32, i32
  }
  func.func @transform_4(%arg0: i32) -> (i32, i32) {
    %c0_i32 = arith.constant 0 : i32
    %c0_i32_0 = arith.constant 0 : i32
    %c0_i32_1 = arith.constant 0 : i32
    return %c0_i32, %c0_i32_0 : i32, i32
  }
  func.func @transform_5(%arg0: i32) -> (i32, i32) {
    %c0_i32 = arith.constant 0 : i32
    %c0_i32_0 = arith.constant 0 : i32
    %c0_i32_1 = arith.constant 0 : i32
    return %c0_i32, %c0_i32_0 : i32, i32
  }
  func.func @transform_6(%arg0: i32) -> (i32, i32) {
    %c0_i32 = arith.constant 0 : i32
    %c0_i32_0 = arith.constant 0 : i32
    %c0_i32_1 = arith.constant 0 : i32
    return %c0_i32, %c0_i32_0 : i32, i32
  }
  func.func @transform_7(%arg0: i32) -> (i32, i32) {
    %c0_i32 = arith.constant 0 : i32
    %c0_i32_0 = arith.constant 0 : i32
    %c0_i32_1 = arith.constant 0 : i32
    return %c0_i32, %c0_i32_0 : i32, i32
  }
  func.func @transform_8(%arg0: i32) -> (i32, i32) {
    %c0_i32 = arith.constant 0 : i32
    %c0_i32_0 = arith.constant 0 : i32
    %c0_i32_1 = arith.constant 0 : i32
    return %c0_i32, %c0_i32_0 : i32, i32
  }
  func.func @transform_9(%arg0: i32) -> (i32, i32) {
    %c0_i32 = arith.constant 0 : i32
    %c0_i32_0 = arith.constant 0 : i32
    %c0_i32_1 = arith.constant 0 : i32
    return %c0_i32, %c0_i32_0 : i32, i32
  }
  func.func @transform_10(%arg0: i32) -> (i32, i32) {
    %c0_i32 = arith.constant 0 : i32
    %c0_i32_0 = arith.constant 0 : i32
    %c0_i32_1 = arith.constant 0 : i32
    return %c0_i32, %c0_i32_0 : i32, i32
  }
  func.func @transform_11(%arg0: i32) -> (i32, i32) {
    %c0_i32 = arith.constant 0 : i32
    %c0_i32_0 = arith.constant 0 : i32
    %c0_i32_1 = arith.constant 0 : i32
    return %c0_i32, %c0_i32_0 : i32, i32
  }
  func.func @transform_12(%arg0: i32) -> (i32, i32) {
    %c0_i32 = arith.constant 0 : i32
    %c0_i32_0 = arith.constant 0 : i32
    return %arg0, %c0_i32 : i32, i32
  }
  func.func @transform_13(%arg0: i32) -> (i32, i32) {
    %c0_i32 = arith.constant 0 : i32
    %c0_i32_0 = arith.constant 0 : i32
    return %arg0, %c0_i32 : i32, i32
  }
  func.func @transform_14(%arg0: i32) -> (i32, i32) {
    %c0_i32 = arith.constant 0 : i32
    %c0_i32_0 = arith.constant 0 : i32
    return %arg0, %c0_i32 : i32, i32
  }
}

</mosaic_0001>

<llo_original>
// kernel: cvae_forward.1
$region0: #{cvae_forward.1}
  #allocation0 [shape = 'u32[]', space=smem, size = 0x4, offset = 0x4, fixed_abs, tag = 'smem constant byte address 0x4 - core index']
  #allocation1 [shape = 'u32[144,128]{1,0:T(1,128)}', space=vmem, size = 0x12000, scoped, tag = 'internal scratch']
  %s0 = inlined_call_operand.vmem [shape: f32[1024,64], index: 0, kind: input, shape index: {}]
  %s1 = inlined_call_operand.vmem [shape: f32[1024,8], index: 1, kind: input, shape index: {}]
  %s2 = inlined_call_operand.vmem [shape: f32[1024,16], index: 2, kind: input, shape index: {}]
  %s3 = inlined_call_operand.vmem [shape: bf16[64,32], index: 3, kind: input, shape index: {}]
  %s4 = inlined_call_operand.vmem [shape: bf16[8,64], index: 4, kind: input, shape index: {}]
  %s5 = inlined_call_operand.vmem [shape: f32[1,32], index: 5, kind: input, shape index: {}]
  %s6 = inlined_call_operand.vmem [shape: f32[1,32], index: 6, kind: input, shape index: {}]
  %s7 = inlined_call_operand.vmem [shape: bf16[32,32], index: 7, kind: input, shape index: {}]
  %s8 = inlined_call_operand.vmem [shape: f32[1,32], index: 8, kind: input, shape index: {}]
  %s9 = inlined_call_operand.vmem [shape: bf16[16,32], index: 9, kind: input, shape index: {}]
  %s10 = inlined_call_operand.vmem [shape: bf16[32,64], index: 10, kind: input, shape index: {}]
  %s11 = inlined_call_operand.vmem [shape: f32[1,64], index: 11, kind: input, shape index: {}]
  %s12 = inlined_call_operand.vmem [shape: f32[1024,64], index: 12, kind: output, shape index: {0}]
  %s13 = inlined_call_operand.vmem [shape: f32[1024,16], index: 13, kind: output, shape index: {1}]
  %s14 = inlined_call_operand.vmem [shape: f32[1024,16], index: 14, kind: output, shape index: {2}]
  %15 = xla_tuple %s12, %s13, %s14
  %s16 = sld [smem:[#allocation0]]
  $region97: #{cvae_forward.1} parent=0
    _
  %s18 = ssub.s32 1, %s16
  %s19 = scalar_select 0, %s18, %s16
  loop: start=0, step=1, limit=4
  $region2: #{cvae_forward.1} parent=0 // loop_pre_header
    _
  $region3: #{cvae_forward.1} parent=0 // loop_header
    %s21 = sphi 0, %s25
    %p22 = scmp.ge.s32.totalorder %s21, 4
    %s31 = sphi 0, %s33
    %s34 = sphi 0, %s31
    %s35 = sphi 0, %s34
    %s51 = sphi 0, %s35
    %s57 = sphi 0, %s59
    %s60 = sphi 0, %s57
    %s61 = sphi 0, %s60
    %s77 = sphi 0, %s61
    %s83 = sphi 0, %s85
    %s86 = sphi 0, %s83
    %s87 = sphi 0, %s86
    %s103 = sphi 0, %s87
    %s107 = sphi 0, %s107
    %s109 = sphi 0, %s107
    %s110 = sphi 0, %s109
    %s124 = sphi 0, %s110
    %s128 = sphi 0, %s128
    %s130 = sphi 0, %s128
    %s131 = sphi 0, %s130
    %s145 = sphi 0, %s131
    %s149 = sphi 0, %s149
    %s151 = sphi 0, %s149
    %s152 = sphi 0, %s151
    %s166 = sphi 0, %s152
    %s170 = sphi 0, %s170
    %s172 = sphi 0, %s170
    %s173 = sphi 0, %s172
    %s187 = sphi 0, %s173
    %s191 = sphi 0, %s191
    %s193 = sphi 0, %s191
    %s194 = sphi 0, %s193
    %s208 = sphi 0, %s194
    %s212 = sphi 0, %s212
    %s214 = sphi 0, %s212
    %s215 = sphi 0, %s214
    %s229 = sphi 0, %s215
    %s233 = sphi 0, %s233
    %s235 = sphi 0, %s233
    %s236 = sphi 0, %s235
    %s250 = sphi 0, %s236
    %s254 = sphi 0, %s254
    %s256 = sphi 0, %s254
    %s257 = sphi 0, %s256
    %s271 = sphi 0, %s257
    %s275 = sphi 0, %s275
    %s277 = sphi 0, %s275
    %s278 = sphi 0, %s277
    %s292 = sphi 0, %s278
    %s298 = sphi 0, %s300
    %s301 = sphi 0, %s298
    %s302 = sphi 0, %s301
    %s318 = sphi 0, %s302
    %s324 = sphi 0, %s326
    %s327 = sphi 0, %s324
    %s328 = sphi 0, %s327
    %s344 = sphi 0, %s328
    %s350 = sphi 0, %s352
    %s353 = sphi 0, %s350
    %s354 = sphi 0, %s353
    %s370 = sphi 0, %s354
  $region4: #{cvae_forward.1} parent=0 // loop_header_branch
    %24 = sbr.rel (%p22) target = $region8
  $region5: #{cvae_forward.1} parent=0 // loop_body
    %s26 = ssub.s32 %s21, 1
    %s27 = ssub.s32 %s21, 2
    %s28 = sadd.s32 %s21, 1
    %s29 = ssub.s32 %s21, %s28
    %p30 = scmp.eq.s32.totalorder %s29, 0
    %s32 = sadd.s32 %s31, 1
    %s33 = scalar_select %p30, %s31, %s32
    %p36 = pneg %p30
    %p37 = scmp.eq.s32.totalorder %s21, 1
    %p38 = por %p36, %p37
    %p39 = scmp.ne.s32.totalorder %s31, %s34
    %p40 = scmp.eq.s32.totalorder %s21, 0
    %p41 = por %p39, %p40
    %p42 = scmp.ne.s32.totalorder %s31, %s34
    %p43 = scmp.eq.s32.totalorder %s26, 1
    %p44 = por %p42, %p43
    %p45 = scmp.ne.s32.totalorder %s34, %s35
    %p46 = scmp.eq.s32.totalorder %s26, 0
    %p47 = por %p45, %p46
    %p48 = scmp.ne.s32.totalorder %s34, %s35
    %p49 = scmp.eq.s32.totalorder %s27, 1
    %p50 = por %p48, %p49
    %p52 = scmp.ne.s32.totalorder %s35, %s51
    %p53 = scmp.eq.s32.totalorder %s27, 0
    %p54 = por %p52, %p53
    %s55 = ssub.s32 %s21, %s28
    %p56 = scmp.eq.s32.totalorder %s55, 0
    %s58 = sadd.s32 %s57, 1
    %s59 = scalar_select %p56, %s57, %s58
    %p62 = pneg %p56
    %p63 = scmp.eq.s32.totalorder %s21, 1
    %p64 = por %p62, %p63
    %p65 = scmp.ne.s32.totalorder %s57, %s60
    %p66 = scmp.eq.s32.totalorder %s21, 0
    %p67 = por %p65, %p66
    %p68 = scmp.ne.s32.totalorder %s57, %s60
    %p69 = scmp.eq.s32.totalorder %s26, 1
    %p70 = por %p68, %p69
    %p71 = scmp.ne.s32.totalorder %s60, %s61
    %p72 = scmp.eq.s32.totalorder %s26, 0
    %p73 = por %p71, %p72
    %p74 = scmp.ne.s32.totalorder %s60, %s61
    %p75 = scmp.eq.s32.totalorder %s27, 1
    %p76 = por %p74, %p75
    %p78 = scmp.ne.s32.totalorder %s61, %s77
    %p79 = scmp.eq.s32.totalorder %s27, 0
    %p80 = por %p78, %p79
    %s81 = ssub.s32 %s21, %s28
    %p82 = scmp.eq.s32.totalorder %s81, 0
    %s84 = sadd.s32 %s83, 1
    %s85 = scalar_select %p82, %s83, %s84
    %p88 = pneg %p82
    %p89 = scmp.eq.s32.totalorder %s21, 1
    %p90 = por %p88, %p89
    %p91 = scmp.ne.s32.totalorder %s83, %s86
    %p92 = scmp.eq.s32.totalorder %s21, 0
    %p93 = por %p91, %p92
    %p94 = scmp.ne.s32.totalorder %s83, %s86
    %p95 = scmp.eq.s32.totalorder %s26, 1
    %p96 = por %p94, %p95
    %p97 = scmp.ne.s32.totalorder %s86, %s87
    %p98 = scmp.eq.s32.totalorder %s26, 0
    %p99 = por %p97, %p98
    %p100 = scmp.ne.s32.totalorder %s86, %s87
    %p101 = scmp.eq.s32.totalorder %s27, 1
    %p102 = por %p100, %p101
    %p104 = scmp.ne.s32.totalorder %s87, %s103
    %p105 = scmp.eq.s32.totalorder %s27, 0
    %p106 = por %p104, %p105
    %s108 = sadd.s32 %s107, 1
    %p111 = scmp.eq.s32.totalorder %s21, 1
    %p112 = scmp.ne.s32.totalorder %s107, %s109
    %p113 = scmp.eq.s32.totalorder %s21, 0
    %p114 = por %p112, %p113
    %p115 = scmp.ne.s32.totalorder %s107, %s109
    %p116 = scmp.eq.s32.totalorder %s26, 1
    %p117 = por %p115, %p116
    %p118 = scmp.ne.s32.totalorder %s109, %s110
    %p119 = scmp.eq.s32.totalorder %s26, 0
    %p120 = por %p118, %p119
    %p121 = scmp.ne.s32.totalorder %s109, %s110
    %p122 = scmp.eq.s32.totalorder %s27, 1
    %p123 = por %p121, %p122
    %p125 = scmp.ne.s32.totalorder %s110, %s124
    %p126 = scmp.eq.s32.totalorder %s27, 0
    %p127 = por %p125, %p126
    %s129 = sadd.s32 %s128, 1
    %p132 = scmp.eq.s32.totalorder %s21, 1
    %p133 = scmp.ne.s32.totalorder %s128, %s130
    %p134 = scmp.eq.s32.totalorder %s21, 0
    %p135 = por %p133, %p134
    %p136 = scmp.ne.s32.totalorder %s128, %s130
    %p137 = scmp.eq.s32.totalorder %s26, 1
    %p138 = por %p136, %p137
    %p139 = scmp.ne.s32.totalorder %s130, %s131
    %p140 = scmp.eq.s32.totalorder %s26, 0
    %p141 = por %p139, %p140
    %p142 = scmp.ne.s32.totalorder %s130, %s131
    %p143 = scmp.eq.s32.totalorder %s27, 1
    %p144 = por %p142, %p143
    %p146 = scmp.ne.s32.totalorder %s131, %s145
    %p147 = scmp.eq.s32.totalorder %s27, 0
    %p148 = por %p146, %p147
    %s150 = sadd.s32 %s149, 1
    %p153 = scmp.eq.s32.totalorder %s21, 1
    %p154 = scmp.ne.s32.totalorder %s149, %s151
    %p155 = scmp.eq.s32.totalorder %s21, 0
    %p156 = por %p154, %p155
    %p157 = scmp.ne.s32.totalorder %s149, %s151
    %p158 = scmp.eq.s32.totalorder %s26, 1
    %p159 = por %p157, %p158
    %p160 = scmp.ne.s32.totalorder %s151, %s152
    %p161 = scmp.eq.s32.totalorder %s26, 0
    %p162 = por %p160, %p161
    %p163 = scmp.ne.s32.totalorder %s151, %s152
    %p164 = scmp.eq.s32.totalorder %s27, 1
    %p165 = por %p163, %p164
    %p167 = scmp.ne.s32.totalorder %s152, %s166
    %p168 = scmp.eq.s32.totalorder %s27, 0
    %p169 = por %p167, %p168
    %s171 = sadd.s32 %s170, 1
    %p174 = scmp.eq.s32.totalorder %s21, 1
    %p175 = scmp.ne.s32.totalorder %s170, %s172
    %p176 = scmp.eq.s32.totalorder %s21, 0
    %p177 = por %p175, %p176
    %p178 = scmp.ne.s32.totalorder %s170, %s172
    %p179 = scmp.eq.s32.totalorder %s26, 1
    %p180 = por %p178, %p179
    %p181 = scmp.ne.s32.totalorder %s172, %s173
    %p182 = scmp.eq.s32.totalorder %s26, 0
    %p183 = por %p181, %p182
    %p184 = scmp.ne.s32.totalorder %s172, %s173
    %p185 = scmp.eq.s32.totalorder %s27, 1
    %p186 = por %p184, %p185
    %p188 = scmp.ne.s32.totalorder %s173, %s187
    %p189 = scmp.eq.s32.totalorder %s27, 0
    %p190 = por %p188, %p189
    %s192 = sadd.s32 %s191, 1
    %p195 = scmp.eq.s32.totalorder %s21, 1
    %p196 = scmp.ne.s32.totalorder %s191, %s193
    %p197 = scmp.eq.s32.totalorder %s21, 0
    %p198 = por %p196, %p197
    %p199 = scmp.ne.s32.totalorder %s191, %s193
    %p200 = scmp.eq.s32.totalorder %s26, 1
    %p201 = por %p199, %p200
    %p202 = scmp.ne.s32.totalorder %s193, %s194
    %p203 = scmp.eq.s32.totalorder %s26, 0
    %p204 = por %p202, %p203
    %p205 = scmp.ne.s32.totalorder %s193, %s194
    %p206 = scmp.eq.s32.totalorder %s27, 1
    %p207 = por %p205, %p206
    %p209 = scmp.ne.s32.totalorder %s194, %s208
    %p210 = scmp.eq.s32.totalorder %s27, 0
    %p211 = por %p209, %p210
    %s213 = sadd.s32 %s212, 1
    %p216 = scmp.eq.s32.totalorder %s21, 1
    %p217 = scmp.ne.s32.totalorder %s212, %s214
    %p218 = scmp.eq.s32.totalorder %s21, 0
    %p219 = por %p217, %p218
    %p220 = scmp.ne.s32.totalorder %s212, %s214
    %p221 = scmp.eq.s32.totalorder %s26, 1
    %p222 = por %p220, %p221
    %p223 = scmp.ne.s32.totalorder %s214, %s215
    %p224 = scmp.eq.s32.totalorder %s26, 0
    %p225 = por %p223, %p224
    %p226 = scmp.ne.s32.totalorder %s214, %s215
    %p227 = scmp.eq.s32.totalorder %s27, 1
    %p228 = por %p226, %p227
    %p230 = scmp.ne.s32.totalorder %s215, %s229
    %p231 = scmp.eq.s32.totalorder %s27, 0
    %p232 = por %p230, %p231
    %s234 = sadd.s32 %s233, 1
    %p237 = scmp.eq.s32.totalorder %s21, 1
    %p238 = scmp.ne.s32.totalorder %s233, %s235
    %p239 = scmp.eq.s32.totalorder %s21, 0
    %p240 = por %p238, %p239
    %p241 = scmp.ne.s32.totalorder %s233, %s235
    %p242 = scmp.eq.s32.totalorder %s26, 1
    %p243 = por %p241, %p242
    %p244 = scmp.ne.s32.totalorder %s235, %s236
    %p245 = scmp.eq.s32.totalorder %s26, 0
    %p246 = por %p244, %p245
    %p247 = scmp.ne.s32.totalorder %s235, %s236
    %p248 = scmp.eq.s32.totalorder %s27, 1
    %p249 = por %p247, %p248
    %p251 = scmp.ne.s32.totalorder %s236, %s250
    %p252 = scmp.eq.s32.totalorder %s27, 0
    %p253 = por %p251, %p252
    %s255 = sadd.s32 %s254, 1
    %p258 = scmp.eq.s32.totalorder %s21, 1
    %p259 = scmp.ne.s32.totalorder %s254, %s256
    %p260 = scmp.eq.s32.totalorder %s21, 0
    %p261 = por %p259, %p260
    %p262 = scmp.ne.s32.totalorder %s254, %s256
    %p263 = scmp.eq.s32.totalorder %s26, 1
    %p264 = por %p262, %p263
    %p265 = scmp.ne.s32.totalorder %s256, %s257
    %p266 = scmp.eq.s32.totalorder %s26, 0
    %p267 = por %p265, %p266
    %p268 = scmp.ne.s32.totalorder %s256, %s257
    %p269 = scmp.eq.s32.totalorder %s27, 1
    %p270 = por %p268, %p269
    %p272 = scmp.ne.s32.totalorder %s257, %s271
    %p273 = scmp.eq.s32.totalorder %s27, 0
    %p274 = por %p272, %p273
    %s276 = sadd.s32 %s275, 1
    %p279 = scmp.eq.s32.totalorder %s21, 1
    %p280 = scmp.ne.s32.totalorder %s275, %s277
    %p281 = scmp.eq.s32.totalorder %s21, 0
    %p282 = por %p280, %p281
    %p283 = scmp.ne.s32.totalorder %s275, %s277
    %p284 = scmp.eq.s32.totalorder %s26, 1
    %p285 = por %p283, %p284
    %p286 = scmp.ne.s32.totalorder %s277, %s278
    %p287 = scmp.eq.s32.totalorder %s26, 0
    %p288 = por %p286, %p287
    %p289 = scmp.ne.s32.totalorder %s277, %s278
    %p290 = scmp.eq.s32.totalorder %s27, 1
    %p291 = por %p289, %p290
    %p293 = scmp.ne.s32.totalorder %s278, %s292
    %p294 = scmp.eq.s32.totalorder %s27, 0
    %p295 = por %p293, %p294
    %s296 = ssub.s32 %s21, %s28
    %p297 = scmp.eq.s32.totalorder %s296, 0
    %s299 = sadd.s32 %s298, 1
    %s300 = scalar_select %p297, %s298, %s299
    %p303 = pneg %p297
    %p304 = scmp.eq.s32.totalorder %s21, 1
    %p305 = por %p303, %p304
    %p306 = scmp.ne.s32.totalorder %s298, %s301
    %p307 = scmp.eq.s32.totalorder %s21, 0
    %p308 = por %p306, %p307
    %p309 = scmp.ne.s32.totalorder %s298, %s301
    %p310 = scmp.eq.s32.totalorder %s26, 1
    %p311 = por %p309, %p310
    %p312 = scmp.ne.s32.totalorder %s301, %s302
    %p313 = scmp.eq.s32.totalorder %s26, 0
    %p314 = por %p312, %p313
    %p315 = scmp.ne.s32.totalorder %s301, %s302
    %p316 = scmp.eq.s32.totalorder %s27, 1
    %p317 = por %p315, %p316
    %p319 = scmp.ne.s32.totalorder %s302, %s318
    %p320 = scmp.eq.s32.totalorder %s27, 0
    %p321 = por %p319, %p320
    %s322 = ssub.s32 %s21, %s28
    %p323 = scmp.eq.s32.totalorder %s322, 0
    %s325 = sadd.s32 %s324, 1
    %s326 = scalar_select %p323, %s324, %s325
    %p329 = pneg %p323
    %p330 = scmp.eq.s32.totalorder %s21, 1
    %p331 = por %p329, %p330
    %p332 = scmp.ne.s32.totalorder %s324, %s327
    %p333 = scmp.eq.s32.totalorder %s21, 0
    %p334 = por %p332, %p333
    %p335 = scmp.ne.s32.totalorder %s324, %s327
    %p336 = scmp.eq.s32.totalorder %s26, 1
    %p337 = por %p335, %p336
    %p338 = scmp.ne.s32.totalorder %s327, %s328
    %p339 = scmp.eq.s32.totalorder %s26, 0
    %p340 = por %p338, %p339
    %p341 = scmp.ne.s32.totalorder %s327, %s328
    %p342 = scmp.eq.s32.totalorder %s27, 1
    %p343 = por %p341, %p342
    %p345 = scmp.ne.s32.totalorder %s328, %s344
    %p346 = scmp.eq.s32.totalorder %s27, 0
    %p347 = por %p345, %p346
    %s348 = ssub.s32 %s21, %s28
    %p349 = scmp.eq.s32.totalorder %s348, 0
    %s351 = sadd.s32 %s350, 1
    %s352 = scalar_select %p349, %s350, %s351
    %p355 = pneg %p349
    %p356 = scmp.eq.s32.totalorder %s21, 1
    %p357 = por %p355, %p356
    %p358 = scmp.ne.s32.totalorder %s350, %s353
    %p359 = scmp.eq.s32.totalorder %s21, 0
    %p360 = por %p358, %p359
    %p361 = scmp.ne.s32.totalorder %s350, %s353
    %p362 = scmp.eq.s32.totalorder %s26, 1
    %p363 = por %p361, %p362
    %p364 = scmp.ne.s32.totalorder %s353, %s354
    %p365 = scmp.eq.s32.totalorder %s26, 0
    %p366 = por %p364, %p365
    %p367 = scmp.ne.s32.totalorder %s353, %s354
    %p368 = scmp.eq.s32.totalorder %s27, 1
    %p369 = por %p367, %p368
    %p371 = scmp.ne.s32.totalorder %s354, %s370
    %p372 = scmp.eq.s32.totalorder %s27, 0
    %p373 = por %p371, %p372
    %p374 = scmp.le.s32.totalorder 1, %s21
    %p375 = scmp.lt.s32.totalorder %s21, 3
    %p376 = pnand %p374, %p375
    %p377 = pneg %p376
    // Predicated region
    $region9: #{cvae_forward.1} parent=5 // pred_check
      _
    $region10: #{cvae_forward.1} parent=5 // pred_check_branch
      %379 = sbr.rel (%p376) target = $region12
    $region11: #{cvae_forward.1} parent=5 // pred_region
      %s380 = ssub.s32 %s21, 1
      // Predicated region
      $region13: #{cvae_forward.1} parent=11 // pred_check
        %p381 = pneg %p120
      $region14: #{cvae_forward.1} parent=11 // pred_check_branch
        %383 = sbr.rel (%p381) target = $region16
      $region15: #{cvae_forward.1} parent=11 // pred_region
        _
      $region16: #{cvae_forward.1} parent=11 // pred_fallthru
        _
      // Predicated region
      $region17: #{cvae_forward.1} parent=11 // pred_check
        %p384 = pneg %p141
      $region18: #{cvae_forward.1} parent=11 // pred_check_branch
        %386 = sbr.rel (%p384) target = $region20
      $region19: #{cvae_forward.1} parent=11 // pred_region
        _
      $region20: #{cvae_forward.1} parent=11 // pred_fallthru
        _
      // Predicated region
      $region21: #{cvae_forward.1} parent=11 // pred_check
        %p387 = pneg %p162
      $region22: #{cvae_forward.1} parent=11 // pred_check_branch
        %389 = sbr.rel (%p387) target = $region24
      $region23: #{cvae_forward.1} parent=11 // pred_region
        _
      $region24: #{cvae_forward.1} parent=11 // pred_fallthru
        _
      // Predicated region
      $region25: #{cvae_forward.1} parent=11 // pred_check
        %p390 = pneg %p183
      $region26: #{cvae_forward.1} parent=11 // pred_check_branch
        %392 = sbr.rel (%p390) target = $region28
      $region27: #{cvae_forward.1} parent=11 // pred_region
        _
      $region28: #{cvae_forward.1} parent=11 // pred_fallthru
        _
      // Predicated region
      $region29: #{cvae_forward.1} parent=11 // pred_check
        %p393 = pneg %p204
      $region30: #{cvae_forward.1} parent=11 // pred_check_branch
        %395 = sbr.rel (%p393) target = $region32
      $region31: #{cvae_forward.1} parent=11 // pred_region
        _
      $region32: #{cvae_forward.1} parent=11 // pred_fallthru
        _
      // Predicated region
      $region33: #{cvae_forward.1} parent=11 // pred_check
        %p396 = pneg %p225
      $region34: #{cvae_forward.1} parent=11 // pred_check_branch
        %398 = sbr.rel (%p396) target = $region36
      $region35: #{cvae_forward.1} parent=11 // pred_region
        _
      $region36: #{cvae_forward.1} parent=11 // pred_fallthru
        _
      // Predicated region
      $region37: #{cvae_forward.1} parent=11 // pred_check
        %p399 = pneg %p246
      $region38: #{cvae_forward.1} parent=11 // pred_check_branch
        %401 = sbr.rel (%p399) target = $region40
      $region39: #{cvae_forward.1} parent=11 // pred_region
        _
      $region40: #{cvae_forward.1} parent=11 // pred_fallthru
        _
      // Predicated region
      $region41: #{cvae_forward.1} parent=11 // pred_check
        %p402 = pneg %p267
      $region42: #{cvae_forward.1} parent=11 // pred_check_branch
        %404 = sbr.rel (%p402) target = $region44
      $region43: #{cvae_forward.1} parent=11 // pred_region
        _
      $region44: #{cvae_forward.1} parent=11 // pred_fallthru
        _
      // Predicated region
      $region45: #{cvae_forward.1} parent=11 // pred_check
        %p405 = pneg %p288
      $region46: #{cvae_forward.1} parent=11 // pred_check_branch
        %407 = sbr.rel (%p405) target = $region48
      $region47: #{cvae_forward.1} parent=11 // pred_region
        _
      $region48: #{cvae_forward.1} parent=11 // pred_fallthru
        _
    $region12: #{cvae_forward.1} parent=5 // pred_fallthru
      _
    %p408 = scmp.lt.s32.totalorder %s21, 2
    // Predicated region
    $region49: #{cvae_forward.1} parent=5 // pred_check
      %p409 = pneg %p408
    $region50: #{cvae_forward.1} parent=5 // pred_check_branch
      %411 = sbr.rel (%p409) target = $region52
    $region51: #{cvae_forward.1} parent=5 // pred_region
      // Predicated region
      $region53: #{cvae_forward.1} parent=51 // pred_check
        %p412 = pneg %p41
      $region54: #{cvae_forward.1} parent=51 // pred_check_branch
        %414 = sbr.rel (%p412) target = $region56
      $region55: #{cvae_forward.1} parent=51 // pred_region
        %s415 = smul.u32 64, %s21
        %p416 = scmp.lt.s32.totalorder %s415, 127
        %s417 = scalar_select %p416, %s415, 127
        %s418 = smul.addr %s417, 8
        %s419 = scalar_lea.vmem %s0, %s418
        %s420 = smul.u32 64, %s21
      $region56: #{cvae_forward.1} parent=51 // pred_fallthru
        _
      // Predicated region
      $region57: #{cvae_forward.1} parent=51 // pred_check
        %p421 = pneg %p67
      $region58: #{cvae_forward.1} parent=51 // pred_check_branch
        %423 = sbr.rel (%p421) target = $region60
      $region59: #{cvae_forward.1} parent=51 // pred_region
        %s424 = smul.u32 64, %s21
        %p425 = scmp.lt.s32.totalorder %s424, 127
        %s426 = scalar_select %p425, %s424, 127
        %s427 = smul.addr %s426, 8
        %s428 = scalar_lea.vmem %s1, %s427
        %s429 = smul.u32 64, %s21
      $region60: #{cvae_forward.1} parent=51 // pred_fallthru
        _
      // Predicated region
      $region61: #{cvae_forward.1} parent=51 // pred_check
        %p430 = pneg %p93
      $region62: #{cvae_forward.1} parent=51 // pred_check_branch
        %432 = sbr.rel (%p430) target = $region64
      $region63: #{cvae_forward.1} parent=51 // pred_region
        %s433 = smul.u32 64, %s21
        %p434 = scmp.lt.s32.totalorder %s433, 127
        %s435 = scalar_select %p434, %s433, 127
        %s436 = smul.addr %s435, 8
        %s437 = scalar_lea.vmem %s2, %s436
        %s438 = smul.u32 64, %s21
      $region64: #{cvae_forward.1} parent=51 // pred_fallthru
        _
    $region52: #{cvae_forward.1} parent=5 // pred_fallthru
      _
    %p439 = scmp.le.s32.totalorder 1, %s21
    %p440 = scmp.lt.s32.totalorder %s21, 3
    %p441 = pnand %p439, %p440
    %p442 = pneg %p441
    // Predicated region
    $region65: #{cvae_forward.1} parent=5 // pred_check
      _
    $region66: #{cvae_forward.1} parent=5 // pred_check_branch
      %444 = sbr.rel (%p441) target = $region68
    $region67: #{cvae_forward.1} parent=5 // pred_region
      %s445 = ssub.s32 %s21, 1
      %s446 = smul.u32 64, %s26
      %p447 = scmp.lt.s32.totalorder %s446, 127
      %s448 = scalar_select %p447, %s446, 127
      %s449 = smul.addr %s448, 8
      %s450 = scalar_lea.vmem %s0, %s449
      %p451 = pneg %p47
      %p452 = pneg %p44
      %s453 = smul.u32 64, %s26
      %p454 = scmp.lt.s32.totalorder %s453, 127
      %s455 = scalar_select %p454, %s453, 127
      %s456 = smul.addr %s455, 8
      %s457 = scalar_lea.vmem %s1, %s456
      %p458 = pneg %p73
      %p459 = pneg %p70
      %s460 = smul.u32 64, %s26
      %p461 = scmp.lt.s32.totalorder %s460, 127
      %s462 = scalar_select %p461, %s460, 127
      %s463 = smul.addr %s462, 8
      %s464 = scalar_lea.vmem %s2, %s463
      %p465 = pneg %p99
      %p466 = pneg %p96
      %p467 = pneg %p120
      %p468 = pneg %p117
      %p469 = pneg %p141
      %p470 = pneg %p138
      %p471 = pneg %p162
      %p472 = pneg %p159
      %p473 = pneg %p183
      %p474 = pneg %p180
      %p475 = pneg %p204
      %p476 = pneg %p201
      %p477 = pneg %p225
      %p478 = pneg %p222
      %p479 = pneg %p246
      %p480 = pneg %p243
      %p481 = pneg %p267
      %p482 = pneg %p264
      %p483 = pneg %p288
      %p484 = pneg %p285
      %p485 = pneg %p314
      %p486 = pneg %p311
      %s487 = smul.u32 64, %s26
      %p488 = scmp.lt.s32.totalorder %s487, 127
      %s489 = scalar_select %p488, %s487, 127
      %s490 = smul.addr %s489, 8
      %s491 = scalar_lea.vmem %s12, %s490
      %p492 = pneg %p340
      %p493 = pneg %p337
      %s494 = smul.u32 64, %s26
      %p495 = scmp.lt.s32.totalorder %s494, 127
      %s496 = scalar_select %p495, %s494, 127
      %s497 = smul.addr %s496, 8
      %s498 = scalar_lea.vmem %s13, %s497
      %p499 = pneg %p366
      %p500 = pneg %p363
      %s501 = smul.u32 64, %s26
      %p502 = scmp.lt.s32.totalorder %s501, 127
      %s503 = scalar_select %p502, %s501, 127
      %s504 = smul.addr %s503, 8
      %s505 = scalar_lea.vmem %s14, %s504
      %s506 = smul.u32 64, %s26
      %p507 = scmp.lt.s32.totalorder %s506, 127
      %s508 = scalar_select %p507, %s506, 127
      %s509 = smul.addr %s508, 8
      %s510 = scalar_lea.vmem %s0, %s509
      %s511 = smul.u32 64, %s26
      %s512 = smul.u32 64, %s26
      %p513 = scmp.lt.s32.totalorder %s512, 127
      %s514 = scalar_select %p513, %s512, 127
      %s515 = smul.addr %s514, 8
      %s516 = scalar_lea.vmem %s1, %s515
      %s517 = smul.u32 64, %s26
      %s518 = smul.u32 64, %s26
      %p519 = scmp.lt.s32.totalorder %s518, 127
      %s520 = scalar_select %p519, %s518, 127
      %s521 = smul.addr %s520, 8
      %s522 = scalar_lea.vmem %s2, %s521
      %s523 = smul.u32 64, %s26
      %s524 = smul.u32 64, %s26
      %p525 = scmp.lt.s32.totalorder %s524, 127
      %s526 = scalar_select %p525, %s524, 127
      %s527 = smul.addr %s526, 8
      %s528 = scalar_lea.vmem %s12, %s527
      %s529 = smul.u32 64, %s26
      %s530 = smul.u32 64, %s26
      %p531 = scmp.lt.s32.totalorder %s530, 127
      %s532 = scalar_select %p531, %s530, 127
      %s533 = smul.addr %s532, 8
      %s534 = scalar_lea.vmem %s13, %s533
      %s535 = smul.u32 64, %s26
      %s536 = smul.u32 64, %s26
      %p537 = scmp.lt.s32.totalorder %s536, 127
      %s538 = scalar_select %p537, %s536, 127
      %s539 = smul.addr %s538, 8
      %s540 = scalar_lea.vmem %s14, %s539
      %s541 = smul.u32 64, %s26
      %v543 = vld [vmem:[%s510] sm:$0xff]
      %v544 = vld [vmem:[%s510 + $0x8] sm:$0xff]
      %v545 = vld [vmem:[%s510 + $0x10] sm:$0xff]
      %v546 = vld [vmem:[%s510 + $0x18] sm:$0xff]
      %v547 = vld [vmem:[%s510 + $0x20] sm:$0xff]
      %v548 = vld [vmem:[%s510 + $0x28] sm:$0xff]
      %v549 = vld [vmem:[%s510 + $0x30] sm:$0xff]
      %v550 = vld [vmem:[%s510 + $0x38] sm:$0xff]
      %v551 = vld [vmem:[%s510 + $0x40] sm:$0xff]
      %v552 = vld [vmem:[%s510 + $0x48] sm:$0xff]
      %v553 = vld [vmem:[%s510 + $0x50] sm:$0xff]
      %v554 = vld [vmem:[%s510 + $0x58] sm:$0xff]
      %v555 = vld [vmem:[%s510 + $0x60] sm:$0xff]
      %v556 = vld [vmem:[%s510 + $0x68] sm:$0xff]
      %v557 = vld [vmem:[%s510 + $0x70] sm:$0xff]
      %v558 = vld [vmem:[%s510 + $0x78] sm:$0xff]
      %v559 = vld [vmem:[%s510 + $0x80] sm:$0xff]
      %v560 = vld [vmem:[%s510 + $0x88] sm:$0xff]
      %v561 = vld [vmem:[%s510 + $0x90] sm:$0xff]
      %v562 = vld [vmem:[%s510 + $0x98] sm:$0xff]
      %v563 = vld [vmem:[%s510 + $0xa0] sm:$0xff]
      %v564 = vld [vmem:[%s510 + $0xa8] sm:$0xff]
      %v565 = vld [vmem:[%s510 + $0xb0] sm:$0xff]
      %v566 = vld [vmem:[%s510 + $0xb8] sm:$0xff]
      %v567 = vld [vmem:[%s510 + $0xc0] sm:$0xff]
      %v568 = vld [vmem:[%s510 + $0xc8] sm:$0xff]
      %v569 = vld [vmem:[%s510 + $0xd0] sm:$0xff]
      %v570 = vld [vmem:[%s510 + $0xd8] sm:$0xff]
      %v571 = vld [vmem:[%s510 + $0xe0] sm:$0xff]
      %v572 = vld [vmem:[%s510 + $0xe8] sm:$0xff]
      %v573 = vld [vmem:[%s510 + $0xf0] sm:$0xff]
      %v574 = vld [vmem:[%s510 + $0xf8] sm:$0xff]
      %v575 = vld [vmem:[%s510 + $0x100] sm:$0xff]
      %v576 = vld [vmem:[%s510 + $0x108] sm:$0xff]
      %v577 = vld [vmem:[%s510 + $0x110] sm:$0xff]
      %v578 = vld [vmem:[%s510 + $0x118] sm:$0xff]
      %v579 = vld [vmem:[%s510 + $0x120] sm:$0xff]
      %v580 = vld [vmem:[%s510 + $0x128] sm:$0xff]
      %v581 = vld [vmem:[%s510 + $0x130] sm:$0xff]
      %v582 = vld [vmem:[%s510 + $0x138] sm:$0xff]
      %v583 = vld [vmem:[%s510 + $0x140] sm:$0xff]
      %v584 = vld [vmem:[%s510 + $0x148] sm:$0xff]
      %v585 = vld [vmem:[%s510 + $0x150] sm:$0xff]
      %v586 = vld [vmem:[%s510 + $0x158] sm:$0xff]
      %v587 = vld [vmem:[%s510 + $0x160] sm:$0xff]
      %v588 = vld [vmem:[%s510 + $0x168] sm:$0xff]
      %v589 = vld [vmem:[%s510 + $0x170] sm:$0xff]
      %v590 = vld [vmem:[%s510 + $0x178] sm:$0xff]
      %v591 = vld [vmem:[%s510 + $0x180] sm:$0xff]
      %v592 = vld [vmem:[%s510 + $0x188] sm:$0xff]
      %v593 = vld [vmem:[%s510 + $0x190] sm:$0xff]
      %v594 = vld [vmem:[%s510 + $0x198] sm:$0xff]
      %v595 = vld [vmem:[%s510 + $0x1a0] sm:$0xff]
      %v596 = vld [vmem:[%s510 + $0x1a8] sm:$0xff]
      %v597 = vld [vmem:[%s510 + $0x1b0] sm:$0xff]
      %v598 = vld [vmem:[%s510 + $0x1b8] sm:$0xff]
      %v599 = vld [vmem:[%s510 + $0x1c0] sm:$0xff]
      %v600 = vld [vmem:[%s510 + $0x1c8] sm:$0xff]
      %v601 = vld [vmem:[%s510 + $0x1d0] sm:$0xff]
      %v602 = vld [vmem:[%s510 + $0x1d8] sm:$0xff]
      %v603 = vld [vmem:[%s510 + $0x1e0] sm:$0xff]
      %v604 = vld [vmem:[%s510 + $0x1e8] sm:$0xff]
      %v605 = vld [vmem:[%s510 + $0x1f0] sm:$0xff]
      %v606 = vld [vmem:[%s510 + $0x1f8] sm:$0xff]
      %v607 = vpack.c.bf16 %v544, %v543
      %v608 = vpack.c.bf16 %v546, %v545
      %v609 = vpack.c.bf16 %v548, %v547
      %v610 = vpack.c.bf16 %v550, %v549
      %v611 = vpack.c.bf16 %v552, %v551
      %v612 = vpack.c.bf16 %v554, %v553
      %v613 = vpack.c.bf16 %v556, %v555
      %v614 = vpack.c.bf16 %v558, %v557
      %v615 = vpack.c.bf16 %v560, %v559
      %v616 = vpack.c.bf16 %v562, %v561
      %v617 = vpack.c.bf16 %v564, %v563
      %v618 = vpack.c.bf16 %v566, %v565
      %v619 = vpack.c.bf16 %v568, %v567
      %v620 = vpack.c.bf16 %v570, %v569
      %v621 = vpack.c.bf16 %v572, %v571
      %v622 = vpack.c.bf16 %v574, %v573
      %v623 = vpack.c.bf16 %v576, %v575
      %v624 = vpack.c.bf16 %v578, %v577
      %v625 = vpack.c.bf16 %v580, %v579
      %v626 = vpack.c.bf16 %v582, %v581
      %v627 = vpack.c.bf16 %v584, %v583
      %v628 = vpack.c.bf16 %v586, %v585
      %v629 = vpack.c.bf16 %v588, %v587
      %v630 = vpack.c.bf16 %v590, %v589
      %v631 = vpack.c.bf16 %v592, %v591
      %v632 = vpack.c.bf16 %v594, %v593
      %v633 = vpack.c.bf16 %v596, %v595
      %v634 = vpack.c.bf16 %v598, %v597
      %v635 = vpack.c.bf16 %v600, %v599
      %v636 = vpack.c.bf16 %v602, %v601
      %v637 = vpack.c.bf16 %v604, %v603
      %v638 = vpack.c.bf16 %v606, %v605
      %v639 = vld [vmem:[%s516] sm:$0xff]
      %v640 = vld [vmem:[%s516 + $0x8] sm:$0xff]
      %v641 = vld [vmem:[%s516 + $0x10] sm:$0xff]
      %v642 = vld [vmem:[%s516 + $0x18] sm:$0xff]
      %v643 = vld [vmem:[%s516 + $0x20] sm:$0xff]
      %v644 = vld [vmem:[%s516 + $0x28] sm:$0xff]
      %v645 = vld [vmem:[%s516 + $0x30] sm:$0xff]
      %v646 = vld [vmem:[%s516 + $0x38] sm:$0xff]
      %v647 = vld [vmem:[%s516 + $0x40] sm:$0xff]
      %v648 = vld [vmem:[%s516 + $0x48] sm:$0xff]
      %v649 = vld [vmem:[%s516 + $0x50] sm:$0xff]
      %v650 = vld [vmem:[%s516 + $0x58] sm:$0xff]
      %v651 = vld [vmem:[%s516 + $0x60] sm:$0xff]
      %v652 = vld [vmem:[%s516 + $0x68] sm:$0xff]
      %v653 = vld [vmem:[%s516 + $0x70] sm:$0xff]
      %v654 = vld [vmem:[%s516 + $0x78] sm:$0xff]
      %v655 = vld [vmem:[%s516 + $0x80] sm:$0xff]
      %v656 = vld [vmem:[%s516 + $0x88] sm:$0xff]
      %v657 = vld [vmem:[%s516 + $0x90] sm:$0xff]
      %v658 = vld [vmem:[%s516 + $0x98] sm:$0xff]
      %v659 = vld [vmem:[%s516 + $0xa0] sm:$0xff]
      %v660 = vld [vmem:[%s516 + $0xa8] sm:$0xff]
      %v661 = vld [vmem:[%s516 + $0xb0] sm:$0xff]
      %v662 = vld [vmem:[%s516 + $0xb8] sm:$0xff]
      %v663 = vld [vmem:[%s516 + $0xc0] sm:$0xff]
      %v664 = vld [vmem:[%s516 + $0xc8] sm:$0xff]
      %v665 = vld [vmem:[%s516 + $0xd0] sm:$0xff]
      %v666 = vld [vmem:[%s516 + $0xd8] sm:$0xff]
      %v667 = vld [vmem:[%s516 + $0xe0] sm:$0xff]
      %v668 = vld [vmem:[%s516 + $0xe8] sm:$0xff]
      %v669 = vld [vmem:[%s516 + $0xf0] sm:$0xff]
      %v670 = vld [vmem:[%s516 + $0xf8] sm:$0xff]
      %v671 = vld [vmem:[%s516 + $0x100] sm:$0xff]
      %v672 = vld [vmem:[%s516 + $0x108] sm:$0xff]
      %v673 = vld [vmem:[%s516 + $0x110] sm:$0xff]
      %v674 = vld [vmem:[%s516 + $0x118] sm:$0xff]
      %v675 = vld [vmem:[%s516 + $0x120] sm:$0xff]
      %v676 = vld [vmem:[%s516 + $0x128] sm:$0xff]
      %v677 = vld [vmem:[%s516 + $0x130] sm:$0xff]
      %v678 = vld [vmem:[%s516 + $0x138] sm:$0xff]
      %v679 = vld [vmem:[%s516 + $0x140] sm:$0xff]
      %v680 = vld [vmem:[%s516 + $0x148] sm:$0xff]
      %v681 = vld [vmem:[%s516 + $0x150] sm:$0xff]
      %v682 = vld [vmem:[%s516 + $0x158] sm:$0xff]
      %v683 = vld [vmem:[%s516 + $0x160] sm:$0xff]
      %v684 = vld [vmem:[%s516 + $0x168] sm:$0xff]
      %v685 = vld [vmem:[%s516 + $0x170] sm:$0xff]
      %v686 = vld [vmem:[%s516 + $0x178] sm:$0xff]
      %v687 = vld [vmem:[%s516 + $0x180] sm:$0xff]
      %v688 = vld [vmem:[%s516 + $0x188] sm:$0xff]
      %v689 = vld [vmem:[%s516 + $0x190] sm:$0xff]
      %v690 = vld [vmem:[%s516 + $0x198] sm:$0xff]
      %v691 = vld [vmem:[%s516 + $0x1a0] sm:$0xff]
      %v692 = vld [vmem:[%s516 + $0x1a8] sm:$0xff]
      %v693 = vld [vmem:[%s516 + $0x1b0] sm:$0xff]
      %v694 = vld [vmem:[%s516 + $0x1b8] sm:$0xff]
      %v695 = vld [vmem:[%s516 + $0x1c0] sm:$0xff]
      %v696 = vld [vmem:[%s516 + $0x1c8] sm:$0xff]
      %v697 = vld [vmem:[%s516 + $0x1d0] sm:$0xff]
      %v698 = vld [vmem:[%s516 + $0x1d8] sm:$0xff]
      %v699 = vld [vmem:[%s516 + $0x1e0] sm:$0xff]
      %v700 = vld [vmem:[%s516 + $0x1e8] sm:$0xff]
      %v701 = vld [vmem:[%s516 + $0x1f0] sm:$0xff]
      %v702 = vld [vmem:[%s516 + $0x1f8] sm:$0xff]
      %v703 = vpack.c.bf16 %v640, %v639
      %v704 = vpack.c.bf16 %v642, %v641
      %v705 = vpack.c.bf16 %v644, %v643
      %v706 = vpack.c.bf16 %v646, %v645
      %v707 = vpack.c.bf16 %v648, %v647
      %v708 = vpack.c.bf16 %v650, %v649
      %v709 = vpack.c.bf16 %v652, %v651
      %v710 = vpack.c.bf16 %v654, %v653
      %v711 = vpack.c.bf16 %v656, %v655
      %v712 = vpack.c.bf16 %v658, %v657
      %v713 = vpack.c.bf16 %v660, %v659
      %v714 = vpack.c.bf16 %v662, %v661
      %v715 = vpack.c.bf16 %v664, %v663
      %v716 = vpack.c.bf16 %v666, %v665
      %v717 = vpack.c.bf16 %v668, %v667
      %v718 = vpack.c.bf16 %v670, %v669
      %v719 = vpack.c.bf16 %v672, %v671
      %v720 = vpack.c.bf16 %v674, %v673
      %v721 = vpack.c.bf16 %v676, %v675
      %v722 = vpack.c.bf16 %v678, %v677
      %v723 = vpack.c.bf16 %v680, %v679
      %v724 = vpack.c.bf16 %v682, %v681
      %v725 = vpack.c.bf16 %v684, %v683
      %v726 = vpack.c.bf16 %v686, %v685
      %v727 = vpack.c.bf16 %v688, %v687
      %v728 = vpack.c.bf16 %v690, %v689
      %v729 = vpack.c.bf16 %v692, %v691
      %v730 = vpack.c.bf16 %v694, %v693
      %v731 = vpack.c.bf16 %v696, %v695
      %v732 = vpack.c.bf16 %v698, %v697
      %v733 = vpack.c.bf16 %v700, %v699
      %v734 = vpack.c.bf16 %v702, %v701
      %v735 = vld [vmem:[%s3] sm:$0xf]
      %v736 = vld [vmem:[%s3 + $0x4] sm:$0xf]
      %v737 = vld [vmem:[%s3 + $0x8] sm:$0xf]
      %v738 = vld [vmem:[%s3 + $0xc] sm:$0xf]
      %v739 = vld [vmem:[%s3 + $0x10] sm:$0xf]
      %v740 = vld [vmem:[%s3 + $0x14] sm:$0xf]
      %v741 = vld [vmem:[%s3 + $0x18] sm:$0xf]
      %v742 = vld [vmem:[%s3 + $0x1c] sm:$0xf]
      %v743 = vld [vmem:[%s4] sm:$0xf]
      %vm744 = vcmask 64512
      %v746 = vsel %vm744, %v703, 0
      %v749 = vsel %vm744, %v704, 0
      %v752 = vsel %vm744, %v705, 0
      %v755 = vsel %vm744, %v706, 0
      %v758 = vsel %vm744, %v707, 0
      %v761 = vsel %vm744, %v708, 0
      %v764 = vsel %vm744, %v709, 0
      %v767 = vsel %vm744, %v710, 0
      %v770 = vsel %vm744, %v711, 0
      %v773 = vsel %vm744, %v712, 0
      %v776 = vsel %vm744, %v713, 0
      %v779 = vsel %vm744, %v714, 0
      %v782 = vsel %vm744, %v715, 0
      %v785 = vsel %vm744, %v716, 0
      %v788 = vsel %vm744, %v717, 0
      %v791 = vsel %vm744, %v718, 0
      %v794 = vsel %vm744, %v719, 0
      %v797 = vsel %vm744, %v720, 0
      %v800 = vsel %vm744, %v721, 0
      %v803 = vsel %vm744, %v722, 0
      %v806 = vsel %vm744, %v723, 0
      %v809 = vsel %vm744, %v724, 0
      %v812 = vsel %vm744, %v725, 0
      %v815 = vsel %vm744, %v726, 0
      %v818 = vsel %vm744, %v727, 0
      %v821 = vsel %vm744, %v728, 0
      %v824 = vsel %vm744, %v729, 0
      %v827 = vsel %vm744, %v730, 0
      %v830 = vsel %vm744, %v731, 0
      %v833 = vsel %vm744, %v732, 0
      %v836 = vsel %vm744, %v733, 0
      %v839 = vsel %vm744, %v734, 0
      %vm841 = vcmask 1043456
      %v843 = vsel %vm841, %v743, 0
      %845 = vmatprep.subr.bf16.mxu0 0
      %846 = vmatpush1.bf16.msra.mxu0 %v843
      %847 = vmatprep.subr.bf16.mxu0 0
      %848 = vmatpush1.bf16.msra.mxu0 0
      %849 = vmatprep.subr.bf16.mxu0 0
      %850 = vmatpush1.bf16.msra.mxu0 0
      %851 = vmatprep.subr.bf16.mxu0 0
      %852 = vmatpush1.bf16.msra.mxu0 0
      %853 = vmatprep.subr.bf16.mxu0 0
      %854 = vmatpush1.bf16.msra.mxu0 0
      %855 = vmatprep.subr.bf16.mxu0 0
      %856 = vmatpush1.bf16.msra.mxu0 0
      %857 = vmatprep.subr.bf16.mxu0 0
      %858 = vmatpush1.bf16.msra.mxu0 0
      %859 = vmatprep.subr.bf16.mxu0 0
      %860 = vmatpush1.bf16.msra.mxu0 0
      %861 = vmatprep.subr.bf16.mxu0 0
      %862 = vmatpush1.bf16.msra.mxu0 0
      %863 = vmatprep.subr.bf16.mxu0 0
      %864 = vmatpush1.bf16.msra.mxu0 0
      %865 = vmatprep.subr.bf16.mxu0 0
      %866 = vmatpush1.bf16.msra.mxu0 0
      %867 = vmatprep.subr.bf16.mxu0 0
      %868 = vmatpush1.bf16.msra.mxu0 0
      %869 = vmatprep.subr.bf16.mxu0 0
      %870 = vmatpush1.bf16.msra.mxu0 0
      %871 = vmatprep.subr.bf16.mxu0 0
      %872 = vmatpush1.bf16.msra.mxu0 0
      %873 = vmatprep.subr.bf16.mxu0 0
      %874 = vmatpush1.bf16.msra.mxu0 0
      %875 = vmatprep.subr.bf16.mxu0 0
      %876 = vmatpush1.bf16.msra.mxu0 0
      %877 = vmatprep.mubr.bf16.mxu0 0
      %878 = vmatmul.mubr.bf16.gmra.mrb[0].mxu0 %v746
      %v879 = vpop.f32.mrb[0].mxu0
      %v880 = vadd.f32 0.0, %v879
      %v881 = vpop.f32.mrb[0].mxu0
      %v882 = vpop.f32.mrb[0].mxu0
      %v883 = vadd.f32 0.0, %v882
      %v884 = vpop.f32.mrb[0].mxu0
      %885 = vmatprep.mubr.bf16.mxu0 0
      %886 = vmatmul.mubr.bf16.gmra.mrb[0].mxu0 %v749
      %v887 = vpop.f32.mrb[0].mxu0
      %v888 = vadd.f32 0.0, %v887
      %v889 = vpop.f32.mrb[0].mxu0
      %v890 = vpop.f32.mrb[0].mxu0
      %v891 = vadd.f32 0.0, %v890
      %v892 = vpop.f32.mrb[0].mxu0
      %893 = vmatprep.mubr.bf16.mxu0 0
      %894 = vmatmul.mubr.bf16.gmra.mrb[0].mxu0 %v752
      %v895 = vpop.f32.mrb[0].mxu0
      %v896 = vadd.f32 0.0, %v895
      %v897 = vpop.f32.mrb[0].mxu0
      %v898 = vpop.f32.mrb[0].mxu0
      %v899 = vadd.f32 0.0, %v898
      %v900 = vpop.f32.mrb[0].mxu0
      %901 = vmatprep.mubr.bf16.mxu0 0
      %902 = vmatmul.mubr.bf16.gmra.mrb[0].mxu0 %v755
      %v903 = vpop.f32.mrb[0].mxu0
      %v904 = vadd.f32 0.0, %v903
      %v905 = vpop.f32.mrb[0].mxu0
      %v906 = vpop.f32.mrb[0].mxu0
      %v907 = vadd.f32 0.0, %v906
      %v908 = vpop.f32.mrb[0].mxu0
      %909 = vmatprep.mubr.bf16.mxu0 0
      %910 = vmatmul.mubr.bf16.gmra.mrb[0].mxu0 %v758
      %v911 = vpop.f32.mrb[0].mxu0
      %v912 = vadd.f32 0.0, %v911
      %v913 = vpop.f32.mrb[0].mxu0
      %v914 = vpop.f32.mrb[0].mxu0
      %v915 = vadd.f32 0.0, %v914
      %v916 = vpop.f32.mrb[0].mxu0
      %917 = vmatprep.mubr.bf16.mxu0 0
      %918 = vmatmul.mubr.bf16.gmra.mrb[0].mxu0 %v761
      %v919 = vpop.f32.mrb[0].mxu0
      %v920 = vadd.f32 0.0, %v919
      %v921 = vpop.f32.mrb[0].mxu0
      %v922 = vpop.f32.mrb[0].mxu0
      %v923 = vadd.f32 0.0, %v922
      %v924 = vpop.f32.mrb[0].mxu0
      %925 = vmatprep.mubr.bf16.mxu0 0
      %926 = vmatmul.mubr.bf16.gmra.mrb[0].mxu0 %v764
      %v927 = vpop.f32.mrb[0].mxu0
      %v928 = vadd.f32 0.0, %v927
      %v929 = vpop.f32.mrb[0].mxu0
      %v930 = vpop.f32.mrb[0].mxu0
      %v931 = vadd.f32 0.0, %v930
      %v932 = vpop.f32.mrb[0].mxu0
      %933 = vmatprep.mubr.bf16.mxu0 0
      %934 = vmatmul.mubr.bf16.gmra.mrb[0].mxu0 %v767
      %v935 = vpop.f32.mrb[0].mxu0
      %v936 = vadd.f32 0.0, %v935
      %v937 = vpop.f32.mrb[0].mxu0
      %v938 = vpop.f32.mrb[0].mxu0
      %v939 = vadd.f32 0.0, %v938
      %v940 = vpop.f32.mrb[0].mxu0
      %941 = vmatprep.mubr.bf16.mxu0 0
      %942 = vmatmul.mubr.bf16.gmra.mrb[0].mxu0 %v770
      %v943 = vpop.f32.mrb[0].mxu0
      %v944 = vadd.f32 0.0, %v943
      %v945 = vpop.f32.mrb[0].mxu0
      %v946 = vpop.f32.mrb[0].mxu0
      %v947 = vadd.f32 0.0, %v946
      %v948 = vpop.f32.mrb[0].mxu0
      %949 = vmatprep.mubr.bf16.mxu0 0
      %950 = vmatmul.mubr.bf16.gmra.mrb[0].mxu0 %v773
      %v951 = vpop.f32.mrb[0].mxu0
      %v952 = vadd.f32 0.0, %v951
      %v953 = vpop.f32.mrb[0].mxu0
      %v954 = vpop.f32.mrb[0].mxu0
      %v955 = vadd.f32 0.0, %v954
      %v956 = vpop.f32.mrb[0].mxu0
      %957 = vmatprep.mubr.bf16.mxu0 0
      %958 = vmatmul.mubr.bf16.gmra.mrb[0].mxu0 %v776
      %v959 = vpop.f32.mrb[0].mxu0
      %v960 = vadd.f32 0.0, %v959
      %v961 = vpop.f32.mrb[0].mxu0
      %v962 = vpop.f32.mrb[0].mxu0
      %v963 = vadd.f32 0.0, %v962
      %v964 = vpop.f32.mrb[0].mxu0
      %965 = vmatprep.mubr.bf16.mxu0 0
      %966 = vmatmul.mubr.bf16.gmra.mrb[0].mxu0 %v779
      %v967 = vpop.f32.mrb[0].mxu0
      %v968 = vadd.f32 0.0, %v967
      %v969 = vpop.f32.mrb[0].mxu0
      %v970 = vpop.f32.mrb[0].mxu0
      %v971 = vadd.f32 0.0, %v970
      %v972 = vpop.f32.mrb[0].mxu0
      %973 = vmatprep.mubr.bf16.mxu0 0
      %974 = vmatmul.mubr.bf16.gmra.mrb[0].mxu0 %v782
      %v975 = vpop.f32.mrb[0].mxu0
      %v976 = vadd.f32 0.0, %v975
      %v977 = vpop.f32.mrb[0].mxu0
      %v978 = vpop.f32.mrb[0].mxu0
      %v979 = vadd.f32 0.0, %v978
      %v980 = vpop.f32.mrb[0].mxu0
      %981 = vmatprep.mubr.bf16.mxu0 0
      %982 = vmatmul.mubr.bf16.gmra.mrb[0].mxu0 %v785
      %v983 = vpop.f32.mrb[0].mxu0
      %v984 = vadd.f32 0.0, %v983
      %v985 = vpop.f32.mrb[0].mxu0
      %v986 = vpop.f32.mrb[0].mxu0
      %v987 = vadd.f32 0.0, %v986
      %v988 = vpop.f32.mrb[0].mxu0
      %989 = vmatprep.mubr.bf16.mxu0 0
      %990 = vmatmul.mubr.bf16.gmra.mrb[0].mxu0 %v788
      %v991 = vpop.f32.mrb[0].mxu0
      %v992 = vadd.f32 0.0, %v991
      %v993 = vpop.f32.mrb[0].mxu0
      %v994 = vpop.f32.mrb[0].mxu0
      %v995 = vadd.f32 0.0, %v994
      %v996 = vpop.f32.mrb[0].mxu0
      %997 = vmatprep.mubr.bf16.mxu0 0
      %998 = vmatmul.mubr.bf16.gmra.mrb[0].mxu0 %v791
      %v999 = vpop.f32.mrb[0].mxu0
      %v1000 = vadd.f32 0.0, %v999
      %v1001 = vpop.f32.mrb[0].mxu0
      %v1002 = vpop.f32.mrb[0].mxu0
      %v1003 = vadd.f32 0.0, %v1002
      %v1004 = vpop.f32.mrb[0].mxu0
      %1005 = vmatprep.mubr.bf16.mxu0 0
      %1006 = vmatmul.mubr.bf16.gmra.mrb[0].mxu0 %v794
      %v1007 = vpop.f32.mrb[0].mxu0
      %v1008 = vadd.f32 0.0, %v1007
      %v1009 = vpop.f32.mrb[0].mxu0
      %v1010 = vpop.f32.mrb[0].mxu0
      %v1011 = vadd.f32 0.0, %v1010
      %v1012 = vpop.f32.mrb[0].mxu0
      %1013 = vmatprep.mubr.bf16.mxu0 0
      %1014 = vmatmul.mubr.bf16.gmra.mrb[0].mxu0 %v797
      %v1015 = vpop.f32.mrb[0].mxu0
      %v1016 = vadd.f32 0.0, %v1015
      %v1017 = vpop.f32.mrb[0].mxu0
      %v1018 = vpop.f32.mrb[0].mxu0
      %v1019 = vadd.f32 0.0, %v1018
      %v1020 = vpop.f32.mrb[0].mxu0
      %1021 = vmatprep.mubr.bf16.mxu0 0
      %1022 = vmatmul.mubr.bf16.gmra.mrb[0].mxu0 %v800
      %v1023 = vpop.f32.mrb[0].mxu0
      %v1024 = vadd.f32 0.0, %v1023
      %v1025 = vpop.f32.mrb[0].mxu0
      %v1026 = vpop.f32.mrb[0].mxu0
      %v1027 = vadd.f32 0.0, %v1026
      %v1028 = vpop.f32.mrb[0].mxu0
      %1029 = vmatprep.mubr.bf16.mxu0 0
      %1030 = vmatmul.mubr.bf16.gmra.mrb[0].mxu0 %v803
      %v1031 = vpop.f32.mrb[0].mxu0
      %v1032 = vadd.f32 0.0, %v1031
      %v1033 = vpop.f32.mrb[0].mxu0
      %v1034 = vpop.f32.mrb[0].mxu0
      %v1035 = vadd.f32 0.0, %v1034
      %v1036 = vpop.f32.mrb[0].mxu0
      %1037 = vmatprep.mubr.bf16.mxu0 0
      %1038 = vmatmul.mubr.bf16.gmra.mrb[0].mxu0 %v806
      %v1039 = vpop.f32.mrb[0].mxu0
      %v1040 = vadd.f32 0.0, %v1039
      %v1041 = vpop.f32.mrb[0].mxu0
      %v1042 = vpop.f32.mrb[0].mxu0
      %v1043 = vadd.f32 0.0, %v1042
      %v1044 = vpop.f32.mrb[0].mxu0
      %1045 = vmatprep.mubr.bf16.mxu0 0
      %1046 = vmatmul.mubr.bf16.gmra.mrb[0].mxu0 %v809
      %v1047 = vpop.f32.mrb[0].mxu0
      %v1048 = vadd.f32 0.0, %v1047
      %v1049 = vpop.f32.mrb[0].mxu0
      %v1050 = vpop.f32.mrb[0].mxu0
      %v1051 = vadd.f32 0.0, %v1050
      %v1052 = vpop.f32.mrb[0].mxu0
      %1053 = vmatprep.mubr.bf16.mxu0 0
      %1054 = vmatmul.mubr.bf16.gmra.mrb[0].mxu0 %v812
      %v1055 = vpop.f32.mrb[0].mxu0
      %v1056 = vadd.f32 0.0, %v1055
      %v1057 = vpop.f32.mrb[0].mxu0
      %v1058 = vpop.f32.mrb[0].mxu0
      %v1059 = vadd.f32 0.0, %v1058
      %v1060 = vpop.f32.mrb[0].mxu0
      %1061 = vmatprep.mubr.bf16.mxu0 0
      %1062 = vmatmul.mubr.bf16.gmra.mrb[0].mxu0 %v815
      %v1063 = vpop.f32.mrb[0].mxu0
      %v1064 = vadd.f32 0.0, %v1063
      %v1065 = vpop.f32.mrb[0].mxu0
      %v1066 = vpop.f32.mrb[0].mxu0
      %v1067 = vadd.f32 0.0, %v1066
      %v1068 = vpop.f32.mrb[0].mxu0
      %1069 = vmatprep.mubr.bf16.mxu0 0
      %1070 = vmatmul.mubr.bf16.gmra.mrb[0].mxu0 %v818
      %v1071 = vpop.f32.mrb[0].mxu0
      %v1072 = vadd.f32 0.0, %v1071
      %v1073 = vpop.f32.mrb[0].mxu0
      %v1074 = vpop.f32.mrb[0].mxu0
      %v1075 = vadd.f32 0.0, %v1074
      %v1076 = vpop.f32.mrb[0].mxu0
      %1077 = vmatprep.mubr.bf16.mxu0 0
      %1078 = vmatmul.mubr.bf16.gmra.mrb[0].mxu0 %v821
      %v1079 = vpop.f32.mrb[0].mxu0
      %v1080 = vadd.f32 0.0, %v1079
      %v1081 = vpop.f32.mrb[0].mxu0
      %v1082 = vpop.f32.mrb[0].mxu0
      %v1083 = vadd.f32 0.0, %v1082
      %v1084 = vpop.f32.mrb[0].mxu0
      %1085 = vmatprep.mubr.bf16.mxu0 0
      %1086 = vmatmul.mubr.bf16.gmra.mrb[0].mxu0 %v824
      %v1087 = vpop.f32.mrb[0].mxu0
      %v1088 = vadd.f32 0.0, %v1087
      %v1089 = vpop.f32.mrb[0].mxu0
      %v1090 = vpop.f32.mrb[0].mxu0
      %v1091 = vadd.f32 0.0, %v1090
      %v1092 = vpop.f32.mrb[0].mxu0
      %1093 = vmatprep.mubr.bf16.mxu0 0
      %1094 = vmatmul.mubr.bf16.gmra.mrb[0].mxu0 %v827
      %v1095 = vpop.f32.mrb[0].mxu0
      %v1096 = vadd.f32 0.0, %v1095
      %v1097 = vpop.f32.mrb[0].mxu0
      %v1098 = vpop.f32.mrb[0].mxu0
      %v1099 = vadd.f32 0.0, %v1098
      %v1100 = vpop.f32.mrb[0].mxu0
      %1101 = vmatprep.mubr.bf16.mxu0 0
      %1102 = vmatmul.mubr.bf16.gmra.mrb[0].mxu0 %v830
      %v1103 = vpop.f32.mrb[0].mxu0
      %v1104 = vadd.f32 0.0, %v1103
      %v1105 = vpop.f32.mrb[0].mxu0
      %v1106 = vpop.f32.mrb[0].mxu0
      %v1107 = vadd.f32 0.0, %v1106
      %v1108 = vpop.f32.mrb[0].mxu0
      %1109 = vmatprep.mubr.bf16.mxu0 0
      %1110 = vmatmul.mubr.bf16.gmra.mrb[0].mxu0 %v833
      %v1111 = vpop.f32.mrb[0].mxu0
      %v1112 = vadd.f32 0.0, %v1111
      %v1113 = vpop.f32.mrb[0].mxu0
      %v1114 = vpop.f32.mrb[0].mxu0
      %v1115 = vadd.f32 0.0, %v1114
      %v1116 = vpop.f32.mrb[0].mxu0
      %1117 = vmatprep.mubr.bf16.mxu0 0
      %1118 = vmatmul.mubr.bf16.gmra.mrb[0].mxu0 %v836
      %v1119 = vpop.f32.mrb[0].mxu0
      %v1120 = vadd.f32 0.0, %v1119
      %v1121 = vpop.f32.mrb[0].mxu0
      %v1122 = vpop.f32.mrb[0].mxu0
      %v1123 = vadd.f32 0.0, %v1122
      %v1124 = vpop.f32.mrb[0].mxu0
      %1125 = vmatprep.mubr.bf16.mxu0 0
      %1126 = vmatmul.mubr.bf16.gmra.mrb[0].mxu0 %v839
      %v1127 = vpop.f32.mrb[0].mxu0
      %v1128 = vadd.f32 0.0, %v1127
      %v1129 = vpop.f32.mrb[0].mxu0
      %v1130 = vpop.f32.mrb[0].mxu0
      %v1131 = vadd.f32 0.0, %v1130
      %v1132 = vpop.f32.mrb[0].mxu0
      %1133 = vdwg.mxu0
      %v1142 = vunpack.c.l.b16 %v735
      %v1143 = vunpack.c.l.b16 %v736
      %v1144 = vunpack.c.l.b16 %v737
      %v1145 = vunpack.c.l.b16 %v738
      %v1146 = vunpack.c.l.b16 %v739
      %v1147 = vunpack.c.l.b16 %v740
      %v1148 = vunpack.c.l.b16 %v741
      %v1149 = vunpack.c.l.b16 %v742
      %v1150 = vpack.c.b16 %v1143, %v1142
      %v1151 = vpack.c.b16 %v1145, %v1144
      %v1152 = vpack.c.b16 %v1147, %v1146
      %v1153 = vpack.c.b16 %v1149, %v1148
      %vm1158 = vcmask 523264
      %v1160 = vsel %vm1158, %v607, 0
      %v1163 = vsel %vm1158, %v608, 0
      %v1166 = vsel %vm1158, %v609, 0
      %v1169 = vsel %vm1158, %v610, 0
      %v1172 = vsel %vm1158, %v611, 0
      %v1175 = vsel %vm1158, %v612, 0
      %v1178 = vsel %vm1158, %v613, 0
      %v1181 = vsel %vm1158, %v614, 0
      %v1184 = vsel %vm1158, %v615, 0
      %v1187 = vsel %vm1158, %v616, 0
      %v1190 = vsel %vm1158, %v617, 0
      %v1193 = vsel %vm1158, %v618, 0
      %v1196 = vsel %vm1158, %v619, 0
      %v1199 = vsel %vm1158, %v620, 0
      %v1202 = vsel %vm1158, %v621, 0
      %v1205 = vsel %vm1158, %v622, 0
      %v1208 = vsel %vm1158, %v623, 0
      %v1211 = vsel %vm1158, %v624, 0
      %v1214 = vsel %vm1158, %v625, 0
      %v1217 = vsel %vm1158, %v626, 0
      %v1220 = vsel %vm1158, %v627, 0
      %v1223 = vsel %vm1158, %v628, 0
      %v1226 = vsel %vm1158, %v629, 0
      %v1229 = vsel %vm1158, %v630, 0
      %v1232 = vsel %vm1158, %v631, 0
      %v1235 = vsel %vm1158, %v632, 0
      %v1238 = vsel %vm1158, %v633, 0
      %v1241 = vsel %vm1158, %v634, 0
      %v1244 = vsel %vm1158, %v635, 0
      %v1247 = vsel %vm1158, %v636, 0
      %v1250 = vsel %vm1158, %v637, 0
      %v1253 = vsel %vm1158, %v638, 0
      %1255 = vmatprep.subr.bf16.mxu0 0
      %1256 = vmatpush1.bf16.msra.mxu0 %v1150
      %1257 = vmatprep.subr.bf16.mxu0 0
      %1258 = vmatpush1.bf16.msra.mxu0 %v1151
      %1259 = vmatprep.subr.bf16.mxu0 0
      %1260 = vmatpush1.bf16.msra.mxu0 %v1152
      %1261 = vmatprep.subr.bf16.mxu0 0
      %1262 = vmatpush1.bf16.msra.mxu0 %v1153
      %1263 = vmatprep.subr.bf16.mxu0 0
      %1264 = vmatpush1.bf16.msra.mxu0 0
      %1265 = vmatprep.subr.bf16.mxu0 0
      %1266 = vmatpush1.bf16.msra.mxu0 0
      %1267 = vmatprep.subr.bf16.mxu0 0
      %1268 = vmatpush1.bf16.msra.mxu0 0
      %1269 = vmatprep.subr.bf16.mxu0 0
      %1270 = vmatpush1.bf16.msra.mxu0 0
      %1271 = vmatprep.subr.bf16.mxu0 0
      %1272 = vmatpush1.bf16.msra.mxu0 0
      %1273 = vmatprep.subr.bf16.mxu0 0
      %1274 = vmatpush1.bf16.msra.mxu0 0
      %1275 = vmatprep.subr.bf16.mxu0 0
      %1276 = vmatpush1.bf16.msra.mxu0 0
      %1277 = vmatprep.subr.bf16.mxu0 0
      %1278 = vmatpush1.bf16.msra.mxu0 0
      %1279 = vmatprep.subr.bf16.mxu0 0
      %1280 = vmatpush1.bf16.msra.mxu0 0
      %1281 = vmatprep.subr.bf16.mxu0 0
      %1282 = vmatpush1.bf16.msra.mxu0 0
      %1283 = vmatprep.subr.bf16.mxu0 0
      %1284 = vmatpush1.bf16.msra.mxu0 0
      %1285 = vmatprep.subr.bf16.mxu0 0
      %1286 = vmatpush1.bf16.msra.mxu0 0
      %1287 = vmatprep.mubr.bf16.mxu0 0
      %1288 = vmatmul.mubr.bf16.gmra.mrb[0].mxu0 %v1160
      %v1289 = vpop.f32.mrb[0].mxu0
      %v1290 = vadd.f32 %v880, %v1289
      %v1291 = vpop.f32.mrb[0].mxu0
      %v1292 = vpop.f32.mrb[0].mxu0
      %v1293 = vadd.f32 %v883, %v1292
      %v1294 = vpop.f32.mrb[0].mxu0
      %1295 = vmatprep.mubr.bf16.mxu0 0
      %1296 = vmatmul.mubr.bf16.gmra.mrb[0].mxu0 %v1163
      %v1297 = vpop.f32.mrb[0].mxu0
      %v1298 = vadd.f32 %v888, %v1297
      %v1299 = vpop.f32.mrb[0].mxu0
      %v1300 = vpop.f32.mrb[0].mxu0
      %v1301 = vadd.f32 %v891, %v1300
      %v1302 = vpop.f32.mrb[0].mxu0
      %1303 = vmatprep.mubr.bf16.mxu0 0
      %1304 = vmatmul.mubr.bf16.gmra.mrb[0].mxu0 %v1166
      %v1305 = vpop.f32.mrb[0].mxu0
      %v1306 = vadd.f32 %v896, %v1305
      %v1307 = vpop.f32.mrb[0].mxu0
      %v1308 = vpop.f32.mrb[0].mxu0
      %v1309 = vadd.f32 %v899, %v1308
      %v1310 = vpop.f32.mrb[0].mxu0
      %1311 = vmatprep.mubr.bf16.mxu0 0
      %1312 = vmatmul.mubr.bf16.gmra.mrb[0].mxu0 %v1169
      %v1313 = vpop.f32.mrb[0].mxu0
      %v1314 = vadd.f32 %v904, %v1313
      %v1315 = vpop.f32.mrb[0].mxu0
      %v1316 = vpop.f32.mrb[0].mxu0
      %v1317 = vadd.f32 %v907, %v1316
      %v1318 = vpop.f32.mrb[0].mxu0
      %1319 = vmatprep.mubr.bf16.mxu0 0
      %1320 = vmatmul.mubr.bf16.gmra.mrb[0].mxu0 %v1172
      %v1321 = vpop.f32.mrb[0].mxu0
      %v1322 = vadd.f32 %v912, %v1321
      %v1323 = vpop.f32.mrb[0].mxu0
      %v1324 = vpop.f32.mrb[0].mxu0
      %v1325 = vadd.f32 %v915, %v1324
      %v1326 = vpop.f32.mrb[0].mxu0
      %1327 = vmatprep.mubr.bf16.mxu0 0
      %1328 = vmatmul.mubr.bf16.gmra.mrb[0].mxu0 %v1175
      %v1329 = vpop.f32.mrb[0].mxu0
      %v1330 = vadd.f32 %v920, %v1329
      %v1331 = vpop.f32.mrb[0].mxu0
      %v1332 = vpop.f32.mrb[0].mxu0
      %v1333 = vadd.f32 %v923, %v1332
      %v1334 = vpop.f32.mrb[0].mxu0
      %1335 = vmatprep.mubr.bf16.mxu0 0
      %1336 = vmatmul.mubr.bf16.gmra.mrb[0].mxu0 %v1178
      %v1337 = vpop.f32.mrb[0].mxu0
      %v1338 = vadd.f32 %v928, %v1337
      %v1339 = vpop.f32.mrb[0].mxu0
      %v1340 = vpop.f32.mrb[0].mxu0
      %v1341 = vadd.f32 %v931, %v1340
      %v1342 = vpop.f32.mrb[0].mxu0
      %1343 = vmatprep.mubr.bf16.mxu0 0
      %1344 = vmatmul.mubr.bf16.gmra.mrb[0].mxu0 %v1181
      %v1345 = vpop.f32.mrb[0].mxu0
      %v1346 = vadd.f32 %v936, %v1345
      %v1347 = vpop.f32.mrb[0].mxu0
      %v1348 = vpop.f32.mrb[0].mxu0
      %v1349 = vadd.f32 %v939, %v1348
      %v1350 = vpop.f32.mrb[0].mxu0
      %1351 = vmatprep.mubr.bf16.mxu0 0
      %1352 = vmatmul.mubr.bf16.gmra.mrb[0].mxu0 %v1184
      %v1353 = vpop.f32.mrb[0].mxu0
      %v1354 = vadd.f32 %v944, %v1353
      %v1355 = vpop.f32.mrb[0].mxu0
      %v1356 = vpop.f32.mrb[0].mxu0
      %v1357 = vadd.f32 %v947, %v1356
      %v1358 = vpop.f32.mrb[0].mxu0
      %1359 = vmatprep.mubr.bf16.mxu0 0
      %1360 = vmatmul.mubr.bf16.gmra.mrb[0].mxu0 %v1187
      %v1361 = vpop.f32.mrb[0].mxu0
      %v1362 = vadd.f32 %v952, %v1361
      %v1363 = vpop.f32.mrb[0].mxu0
      %v1364 = vpop.f32.mrb[0].mxu0
      %v1365 = vadd.f32 %v955, %v1364
      %v1366 = vpop.f32.mrb[0].mxu0
      %1367 = vmatprep.mubr.bf16.mxu0 0
      %1368 = vmatmul.mubr.bf16.gmra.mrb[0].mxu0 %v1190
      %v1369 = vpop.f32.mrb[0].mxu0
      %v1370 = vadd.f32 %v960, %v1369
      %v1371 = vpop.f32.mrb[0].mxu0
      %v1372 = vpop.f32.mrb[0].mxu0
      %v1373 = vadd.f32 %v963, %v1372
      %v1374 = vpop.f32.mrb[0].mxu0
      %1375 = vmatprep.mubr.bf16.mxu0 0
      %1376 = vmatmul.mubr.bf16.gmra.mrb[0].mxu0 %v1193
      %v1377 = vpop.f32.mrb[0].mxu0
      %v1378 = vadd.f32 %v968, %v1377
      %v1379 = vpop.f32.mrb[0].mxu0
      %v1380 = vpop.f32.mrb[0].mxu0
      %v1381 = vadd.f32 %v971, %v1380
      %v1382 = vpop.f32.mrb[0].mxu0
      %1383 = vmatprep.mubr.bf16.mxu0 0
      %1384 = vmatmul.mubr.bf16.gmra.mrb[0].mxu0 %v1196
      %v1385 = vpop.f32.mrb[0].mxu0
      %v1386 = vadd.f32 %v976, %v1385
      %v1387 = vpop.f32.mrb[0].mxu0
      %v1388 = vpop.f32.mrb[0].mxu0
      %v1389 = vadd.f32 %v979, %v1388
      %v1390 = vpop.f32.mrb[0].mxu0
      %1391 = vmatprep.mubr.bf16.mxu0 0
      %1392 = vmatmul.mubr.bf16.gmra.mrb[0].mxu0 %v1199
      %v1393 = vpop.f32.mrb[0].mxu0
      %v1394 = vadd.f32 %v984, %v1393
      %v1395 = vpop.f32.mrb[0].mxu0
      %v1396 = vpop.f32.mrb[0].mxu0
      %v1397 = vadd.f32 %v987, %v1396
      %v1398 = vpop.f32.mrb[0].mxu0
      %1399 = vmatprep.mubr.bf16.mxu0 0
      %1400 = vmatmul.mubr.bf16.gmra.mrb[0].mxu0 %v1202
      %v1401 = vpop.f32.mrb[0].mxu0
      %v1402 = vadd.f32 %v992, %v1401
      %v1403 = vpop.f32.mrb[0].mxu0
      %v1404 = vpop.f32.mrb[0].mxu0
      %v1405 = vadd.f32 %v995, %v1404
      %v1406 = vpop.f32.mrb[0].mxu0
      %1407 = vmatprep.mubr.bf16.mxu0 0
      %1408 = vmatmul.mubr.bf16.gmra.mrb[0].mxu0 %v1205
      %v1409 = vpop.f32.mrb[0].mxu0
      %v1410 = vadd.f32 %v1000, %v1409
      %v1411 = vpop.f32.mrb[0].mxu0
      %v1412 = vpop.f32.mrb[0].mxu0
      %v1413 = vadd.f32 %v1003, %v1412
      %v1414 = vpop.f32.mrb[0].mxu0
      %1415 = vmatprep.mubr.bf16.mxu0 0
      %1416 = vmatmul.mubr.bf16.gmra.mrb[0].mxu0 %v1208
      %v1417 = vpop.f32.mrb[0].mxu0
      %v1418 = vadd.f32 %v1008, %v1417
      %v1419 = vpop.f32.mrb[0].mxu0
      %v1420 = vpop.f32.mrb[0].mxu0
      %v1421 = vadd.f32 %v1011, %v1420
      %v1422 = vpop.f32.mrb[0].mxu0
      %1423 = vmatprep.mubr.bf16.mxu0 0
      %1424 = vmatmul.mubr.bf16.gmra.mrb[0].mxu0 %v1211
      %v1425 = vpop.f32.mrb[0].mxu0
      %v1426 = vadd.f32 %v1016, %v1425
      %v1427 = vpop.f32.mrb[0].mxu0
      %v1428 = vpop.f32.mrb[0].mxu0
      %v1429 = vadd.f32 %v1019, %v1428
      %v1430 = vpop.f32.mrb[0].mxu0
      %1431 = vmatprep.mubr.bf16.mxu0 0
      %1432 = vmatmul.mubr.bf16.gmra.mrb[0].mxu0 %v1214
      %v1433 = vpop.f32.mrb[0].mxu0
      %v1434 = vadd.f32 %v1024, %v1433
      %v1435 = vpop.f32.mrb[0].mxu0
      %v1436 = vpop.f32.mrb[0].mxu0
      %v1437 = vadd.f32 %v1027, %v1436
      %v1438 = vpop.f32.mrb[0].mxu0
      %1439 = vmatprep.mubr.bf16.mxu0 0
      %1440 = vmatmul.mubr.bf16.gmra.mrb[0].mxu0 %v1217
      %v1441 = vpop.f32.mrb[0].mxu0
      %v1442 = vadd.f32 %v1032, %v1441
      %v1443 = vpop.f32.mrb[0].mxu0
      %v1444 = vpop.f32.mrb[0].mxu0
      %v1445 = vadd.f32 %v1035, %v1444
      %v1446 = vpop.f32.mrb[0].mxu0
      %1447 = vmatprep.mubr.bf16.mxu0 0
      %1448 = vmatmul.mubr.bf16.gmra.mrb[0].mxu0 %v1220
      %v1449 = vpop.f32.mrb[0].mxu0
      %v1450 = vadd.f32 %v1040, %v1449
      %v1451 = vpop.f32.mrb[0].mxu0
      %v1452 = vpop.f32.mrb[0].mxu0
      %v1453 = vadd.f32 %v1043, %v1452
      %v1454 = vpop.f32.mrb[0].mxu0
      %1455 = vmatprep.mubr.bf16.mxu0 0
      %1456 = vmatmul.mubr.bf16.gmra.mrb[0].mxu0 %v1223
      %v1457 = vpop.f32.mrb[0].mxu0
      %v1458 = vadd.f32 %v1048, %v1457
      %v1459 = vpop.f32.mrb[0].mxu0
      %v1460 = vpop.f32.mrb[0].mxu0
      %v1461 = vadd.f32 %v1051, %v1460
      %v1462 = vpop.f32.mrb[0].mxu0
      %1463 = vmatprep.mubr.bf16.mxu0 0
      %1464 = vmatmul.mubr.bf16.gmra.mrb[0].mxu0 %v1226
      %v1465 = vpop.f32.mrb[0].mxu0
      %v1466 = vadd.f32 %v1056, %v1465
      %v1467 = vpop.f32.mrb[0].mxu0
      %v1468 = vpop.f32.mrb[0].mxu0
      %v1469 = vadd.f32 %v1059, %v1468
      %v1470 = vpop.f32.mrb[0].mxu0
      %1471 = vmatprep.mubr.bf16.mxu0 0
      %1472 = vmatmul.mubr.bf16.gmra.mrb[0].mxu0 %v1229
      %v1473 = vpop.f32.mrb[0].mxu0
      %v1474 = vadd.f32 %v1064, %v1473
      %v1475 = vpop.f32.mrb[0].mxu0
      %v1476 = vpop.f32.mrb[0].mxu0
      %v1477 = vadd.f32 %v1067, %v1476
      %v1478 = vpop.f32.mrb[0].mxu0
      %1479 = vmatprep.mubr.bf16.mxu0 0
      %1480 = vmatmul.mubr.bf16.gmra.mrb[0].mxu0 %v1232
      %v1481 = vpop.f32.mrb[0].mxu0
      %v1482 = vadd.f32 %v1072, %v1481
      %v1483 = vpop.f32.mrb[0].mxu0
      %v1484 = vpop.f32.mrb[0].mxu0
      %v1485 = vadd.f32 %v1075, %v1484
      %v1486 = vpop.f32.mrb[0].mxu0
      %1487 = vmatprep.mubr.bf16.mxu0 0
      %1488 = vmatmul.mubr.bf16.gmra.mrb[0].mxu0 %v1235
      %v1489 = vpop.f32.mrb[0].mxu0
      %v1490 = vadd.f32 %v1080, %v1489
      %v1491 = vpop.f32.mrb[0].mxu0
      %v1492 = vpop.f32.mrb[0].mxu0
      %v1493 = vadd.f32 %v1083, %v1492
      %v1494 = vpop.f32.mrb[0].mxu0
      %1495 = vmatprep.mubr.bf16.mxu0 0
      %1496 = vmatmul.mubr.bf16.gmra.mrb[0].mxu0 %v1238
      %v1497 = vpop.f32.mrb[0].mxu0
      %v1498 = vadd.f32 %v1088, %v1497
      %v1499 = vpop.f32.mrb[0].mxu0
      %v1500 = vpop.f32.mrb[0].mxu0
      %v1501 = vadd.f32 %v1091, %v1500
      %v1502 = vpop.f32.mrb[0].mxu0
      %1503 = vmatprep.mubr.bf16.mxu0 0
      %1504 = vmatmul.mubr.bf16.gmra.mrb[0].mxu0 %v1241
      %v1505 = vpop.f32.mrb[0].mxu0
      %v1506 = vadd.f32 %v1096, %v1505
      %v1507 = vpop.f32.mrb[0].mxu0
      %v1508 = vpop.f32.mrb[0].mxu0
      %v1509 = vadd.f32 %v1099, %v1508
      %v1510 = vpop.f32.mrb[0].mxu0
      %1511 = vmatprep.mubr.bf16.mxu0 0
      %1512 = vmatmul.mubr.bf16.gmra.mrb[0].mxu0 %v1244
      %v1513 = vpop.f32.mrb[0].mxu0
      %v1514 = vadd.f32 %v1104, %v1513
      %v1515 = vpop.f32.mrb[0].mxu0
      %v1516 = vpop.f32.mrb[0].mxu0
      %v1517 = vadd.f32 %v1107, %v1516
      %v1518 = vpop.f32.mrb[0].mxu0
      %1519 = vmatprep.mubr.bf16.mxu0 0
      %1520 = vmatmul.mubr.bf16.gmra.mrb[0].mxu0 %v1247
      %v1521 = vpop.f32.mrb[0].mxu0
      %v1522 = vadd.f32 %v1112, %v1521
      %v1523 = vpop.f32.mrb[0].mxu0
      %v1524 = vpop.f32.mrb[0].mxu0
      %v1525 = vadd.f32 %v1115, %v1524
      %v1526 = vpop.f32.mrb[0].mxu0
      %1527 = vmatprep.mubr.bf16.mxu0 0
      %1528 = vmatmul.mubr.bf16.gmra.mrb[0].mxu0 %v1250
      %v1529 = vpop.f32.mrb[0].mxu0
      %v1530 = vadd.f32 %v1120, %v1529
      %v1531 = vpop.f32.mrb[0].mxu0
      %v1532 = vpop.f32.mrb[0].mxu0
      %v1533 = vadd.f32 %v1123, %v1532
      %v1534 = vpop.f32.mrb[0].mxu0
      %1535 = vmatprep.mubr.bf16.mxu0 0
      %1536 = vmatmul.mubr.bf16.gmra.mrb[0].mxu0 %v1253
      %v1537 = vpop.f32.mrb[0].mxu0
      %v1538 = vadd.f32 %v1128, %v1537
      %v1539 = vpop.f32.mrb[0].mxu0
      %v1540 = vpop.f32.mrb[0].mxu0
      %v1541 = vadd.f32 %v1131, %v1540
      %v1542 = vpop.f32.mrb[0].mxu0
      %1543 = vdwg.mxu0
      %v1544 = vld [vmem:[%s5] sm:$0x1]
      %v1546 = vlaneseq
      %v1547 = vshrl.u32 %v1546, 7
      %v1548 = vsub.s32 0, %v1547
      %v1549 = vrot.slane %v1544, %v1548
      %v1551 = vadd.f32 %v1290, %v1549
      %v1552 = vadd.f32 %v1293, %v1549
      %v1553 = vadd.f32 %v1298, %v1549
      %v1554 = vadd.f32 %v1301, %v1549
      %v1555 = vadd.f32 %v1306, %v1549
      %v1556 = vadd.f32 %v1309, %v1549
      %v1557 = vadd.f32 %v1314, %v1549
      %v1558 = vadd.f32 %v1317, %v1549
      %v1559 = vadd.f32 %v1322, %v1549
      %v1560 = vadd.f32 %v1325, %v1549
      %v1561 = vadd.f32 %v1330, %v1549
      %v1562 = vadd.f32 %v1333, %v1549
      %v1563 = vadd.f32 %v1338, %v1549
      %v1564 = vadd.f32 %v1341, %v1549
      %v1565 = vadd.f32 %v1346, %v1549
      %v1566 = vadd.f32 %v1349, %v1549
      %v1567 = vadd.f32 %v1354, %v1549
      %v1568 = vadd.f32 %v1357, %v1549
      %v1569 = vadd.f32 %v1362, %v1549
      %v1570 = vadd.f32 %v1365, %v1549
      %v1571 = vadd.f32 %v1370, %v1549
      %v1572 = vadd.f32 %v1373, %v1549
      %v1573 = vadd.f32 %v1378, %v1549
      %v1574 = vadd.f32 %v1381, %v1549
      %v1575 = vadd.f32 %v1386, %v1549
      %v1576 = vadd.f32 %v1389, %v1549
      %v1577 = vadd.f32 %v1394, %v1549
      %v1578 = vadd.f32 %v1397, %v1549
      %v1579 = vadd.f32 %v1402, %v1549
      %v1580 = vadd.f32 %v1405, %v1549
      %v1581 = vadd.f32 %v1410, %v1549
      %v1582 = vadd.f32 %v1413, %v1549
      %v1583 = vadd.f32 %v1418, %v1549
      %v1584 = vadd.f32 %v1421, %v1549
      %v1585 = vadd.f32 %v1426, %v1549
      %v1586 = vadd.f32 %v1429, %v1549
      %v1587 = vadd.f32 %v1434, %v1549
      %v1588 = vadd.f32 %v1437, %v1549
      %v1589 = vadd.f32 %v1442, %v1549
      %v1590 = vadd.f32 %v1445, %v1549
      %v1591 = vadd.f32 %v1450, %v1549
      %v1592 = vadd.f32 %v1453, %v1549
      %v1593 = vadd.f32 %v1458, %v1549
      %v1594 = vadd.f32 %v1461, %v1549
      %v1595 = vadd.f32 %v1466, %v1549
      %v1596 = vadd.f32 %v1469, %v1549
      %v1597 = vadd.f32 %v1474, %v1549
      %v1598 = vadd.f32 %v1477, %v1549
      %v1599 = vadd.f32 %v1482, %v1549
      %v1600 = vadd.f32 %v1485, %v1549
      %v1601 = vadd.f32 %v1490, %v1549
      %v1602 = vadd.f32 %v1493, %v1549
      %v1603 = vadd.f32 %v1498, %v1549
      %v1604 = vadd.f32 %v1501, %v1549
      %v1605 = vadd.f32 %v1506, %v1549
      %v1606 = vadd.f32 %v1509, %v1549
      %v1607 = vadd.f32 %v1514, %v1549
      %v1608 = vadd.f32 %v1517, %v1549
      %v1609 = vadd.f32 %v1522, %v1549
      %v1610 = vadd.f32 %v1525, %v1549
      %v1611 = vadd.f32 %v1530, %v1549
      %v1612 = vadd.f32 %v1533, %v1549
      %v1613 = vadd.f32 %v1538, %v1549
      %v1614 = vadd.f32 %v1541, %v1549
      %v1615 = vmax.f32 %v1551, 0.0
      %v1616 = vmax.f32 %v1552, 0.0
      %v1617 = vmax.f32 %v1553, 0.0
      %v1618 = vmax.f32 %v1554, 0.0
      %v1619 = vmax.f32 %v1555, 0.0
      %v1620 = vmax.f32 %v1556, 0.0
      %v1621 = vmax.f32 %v1557, 0.0
      %v1622 = vmax.f32 %v1558, 0.0
      %v1623 = vmax.f32 %v1559, 0.0
      %v1624 = vmax.f32 %v1560, 0.0
      %v1625 = vmax.f32 %v1561, 0.0
      %v1626 = vmax.f32 %v1562, 0.0
      %v1627 = vmax.f32 %v1563, 0.0
      %v1628 = vmax.f32 %v1564, 0.0
      %v1629 = vmax.f32 %v1565, 0.0
      %v1630 = vmax.f32 %v1566, 0.0
      %v1631 = vmax.f32 %v1567, 0.0
      %v1632 = vmax.f32 %v1568, 0.0
      %v1633 = vmax.f32 %v1569, 0.0
      %v1634 = vmax.f32 %v1570, 0.0
      %v1635 = vmax.f32 %v1571, 0.0
      %v1636 = vmax.f32 %v1572, 0.0
      %v1637 = vmax.f32 %v1573, 0.0
      %v1638 = vmax.f32 %v1574, 0.0
      %v1639 = vmax.f32 %v1575, 0.0
      %v1640 = vmax.f32 %v1576, 0.0
      %v1641 = vmax.f32 %v1577, 0.0
      %v1642 = vmax.f32 %v1578, 0.0
      %v1643 = vmax.f32 %v1579, 0.0
      %v1644 = vmax.f32 %v1580, 0.0
      %v1645 = vmax.f32 %v1581, 0.0
      %v1646 = vmax.f32 %v1582, 0.0
      %v1647 = vmax.f32 %v1583, 0.0
      %v1648 = vmax.f32 %v1584, 0.0
      %v1649 = vmax.f32 %v1585, 0.0
      %v1650 = vmax.f32 %v1586, 0.0
      %v1651 = vmax.f32 %v1587, 0.0
      %v1652 = vmax.f32 %v1588, 0.0
      %v1653 = vmax.f32 %v1589, 0.0
      %v1654 = vmax.f32 %v1590, 0.0
      %v1655 = vmax.f32 %v1591, 0.0
      %v1656 = vmax.f32 %v1592, 0.0
      %v1657 = vmax.f32 %v1593, 0.0
      %v1658 = vmax.f32 %v1594, 0.0
      %v1659 = vmax.f32 %v1595, 0.0
      %v1660 = vmax.f32 %v1596, 0.0
      %v1661 = vmax.f32 %v1597, 0.0
      %v1662 = vmax.f32 %v1598, 0.0
      %v1663 = vmax.f32 %v1599, 0.0
      %v1664 = vmax.f32 %v1600, 0.0
      %v1665 = vmax.f32 %v1601, 0.0
      %v1666 = vmax.f32 %v1602, 0.0
      %v1667 = vmax.f32 %v1603, 0.0
      %v1668 = vmax.f32 %v1604, 0.0
      %v1669 = vmax.f32 %v1605, 0.0
      %v1670 = vmax.f32 %v1606, 0.0
      %v1671 = vmax.f32 %v1607, 0.0
      %v1672 = vmax.f32 %v1608, 0.0
      %v1673 = vmax.f32 %v1609, 0.0
      %v1674 = vmax.f32 %v1610, 0.0
      %v1675 = vmax.f32 %v1611, 0.0
      %v1676 = vmax.f32 %v1612, 0.0
      %v1677 = vmax.f32 %v1613, 0.0
      %v1678 = vmax.f32 %v1614, 0.0
      %v1679 = vpack.c.bf16 %v1616, %v1615
      %v1680 = vpack.c.bf16 %v1618, %v1617
      %v1681 = vpack.c.bf16 %v1620, %v1619
      %v1682 = vpack.c.bf16 %v1622, %v1621
      %v1683 = vpack.c.bf16 %v1624, %v1623
      %v1684 = vpack.c.bf16 %v1626, %v1625
      %v1685 = vpack.c.bf16 %v1628, %v1627
      %v1686 = vpack.c.bf16 %v1630, %v1629
      %v1687 = vpack.c.bf16 %v1632, %v1631
      %v1688 = vpack.c.bf16 %v1634, %v1633
      %v1689 = vpack.c.bf16 %v1636, %v1635
      %v1690 = vpack.c.bf16 %v1638, %v1637
      %v1691 = vpack.c.bf16 %v1640, %v1639
      %v1692 = vpack.c.bf16 %v1642, %v1641
      %v1693 = vpack.c.bf16 %v1644, %v1643
      %v1694 = vpack.c.bf16 %v1646, %v1645
      %v1695 = vpack.c.bf16 %v1648, %v1647
      %v1696 = vpack.c.bf16 %v1650, %v1649
      %v1697 = vpack.c.bf16 %v1652, %v1651
      %v1698 = vpack.c.bf16 %v1654, %v1653
      %v1699 = vpack.c.bf16 %v1656, %v1655
      %v1700 = vpack.c.bf16 %v1658, %v1657
      %v1701 = vpack.c.bf16 %v1660, %v1659
      %v1702 = vpack.c.bf16 %v1662, %v1661
      %v1703 = vpack.c.bf16 %v1664, %v1663
      %v1704 = vpack.c.bf16 %v1666, %v1665
      %v1705 = vpack.c.bf16 %v1668, %v1667
      %v1706 = vpack.c.bf16 %v1670, %v1669
      %v1707 = vpack.c.bf16 %v1672, %v1671
      %v1708 = vpack.c.bf16 %v1674, %v1673
      %v1709 = vpack.c.bf16 %v1676, %v1675
      %v1710 = vpack.c.bf16 %v1678, %v1677
      %v1711 = vld [vmem:[%s7] sm:$0xf]
      %v1712 = vld [vmem:[%s7 + $0x4] sm:$0xf]
      %v1713 = vld [vmem:[%s7 + $0x8] sm:$0xf]
      %v1714 = vld [vmem:[%s7 + $0xc] sm:$0xf]
      %v1715 = vld [vmem:[%s8] sm:$0x1]
      %v1717 = vlaneseq
      %v1718 = vshrl.u32 %v1717, 7
      %v1719 = vsub.s32 0, %v1718
      %v1720 = vrot.slane %v1715, %v1719
      %v1726 = vunpack.c.l.b16 %v1711
      %v1727 = vunpack.c.l.b16 %v1712
      %v1728 = vunpack.c.l.b16 %v1713
      %v1729 = vunpack.c.l.b16 %v1714
      %v1730 = vpack.c.b16 %v1727, %v1726
      %v1731 = vpack.c.b16 %v1729, %v1728
      %vm1734 = vcmask 261120
      %v1736 = vsel %vm1734, %v1679, 0
      %v1739 = vsel %vm1734, %v1680, 0
      %v1742 = vsel %vm1734, %v1681, 0
      %v1745 = vsel %vm1734, %v1682, 0
      %v1748 = vsel %vm1734, %v1683, 0
      %v1751 = vsel %vm1734, %v1684, 0
      %v1754 = vsel %vm1734, %v1685, 0
      %v1757 = vsel %vm1734, %v1686, 0
      %v1760 = vsel %vm1734, %v1687, 0
      %v1763 = vsel %vm1734, %v1688, 0
      %v1766 = vsel %vm1734, %v1689, 0
      %v1769 = vsel %vm1734, %v1690, 0
      %v1772 = vsel %vm1734, %v1691, 0
      %v1775 = vsel %vm1734, %v1692, 0
      %v1778 = vsel %vm1734, %v1693, 0
      %v1781 = vsel %vm1734, %v1694, 0
      %v1784 = vsel %vm1734, %v1695, 0
      %v1787 = vsel %vm1734, %v1696, 0
      %v1790 = vsel %vm1734, %v1697, 0
      %v1793 = vsel %vm1734, %v1698, 0
      %v1796 = vsel %vm1734, %v1699, 0
      %v1799 = vsel %vm1734, %v1700, 0
      %v1802 = vsel %vm1734, %v1701, 0
      %v1805 = vsel %vm1734, %v1702, 0
      %v1808 = vsel %vm1734, %v1703, 0
      %v1811 = vsel %vm1734, %v1704, 0
      %v1814 = vsel %vm1734, %v1705, 0
      %v1817 = vsel %vm1734, %v1706, 0
      %v1820 = vsel %vm1734, %v1707, 0
      %v1823 = vsel %vm1734, %v1708, 0
      %v1826 = vsel %vm1734, %v1709, 0
      %v1829 = vsel %vm1734, %v1710, 0
      %1831 = vmatprep.subr.bf16.mxu0 0
      %1832 = vmatpush1.bf16.msra.mxu0 %v1730
      %1833 = vmatprep.subr.bf16.mxu0 0
      %1834 = vmatpush1.bf16.msra.mxu0 %v1731
      %1835 = vmatprep.subr.bf16.mxu0 0
      %1836 = vmatpush1.bf16.msra.mxu0 0
      %1837 = vmatprep.subr.bf16.mxu0 0
      %1838 = vmatpush1.bf16.msra.mxu0 0
      %1839 = vmatprep.subr.bf16.mxu0 0
      %1840 = vmatpush1.bf16.msra.mxu0 0
      %1841 = vmatprep.subr.bf16.mxu0 0
      %1842 = vmatpush1.bf16.msra.mxu0 0
      %1843 = vmatprep.subr.bf16.mxu0 0
      %1844 = vmatpush1.bf16.msra.mxu0 0
      %1845 = vmatprep.subr.bf16.mxu0 0
      %1846 = vmatpush1.bf16.msra.mxu0 0
      %1847 = vmatprep.subr.bf16.mxu0 0
      %1848 = vmatpush1.bf16.msra.mxu0 0
      %1849 = vmatprep.subr.bf16.mxu0 0
      %1850 = vmatpush1.bf16.msra.mxu0 0
      %1851 = vmatprep.subr.bf16.mxu0 0
      %1852 = vmatpush1.bf16.msra.mxu0 0
      %1853 = vmatprep.subr.bf16.mxu0 0
      %1854 = vmatpush1.bf16.msra.mxu0 0
      %1855 = vmatprep.subr.bf16.mxu0 0
      %1856 = vmatpush1.bf16.msra.mxu0 0
      %1857 = vmatprep.subr.bf16.mxu0 0
      %1858 = vmatpush1.bf16.msra.mxu0 0
      %1859 = vmatprep.subr.bf16.mxu0 0
      %1860 = vmatpush1.bf16.msra.mxu0 0
      %1861 = vmatprep.subr.bf16.mxu0 0
      %1862 = vmatpush1.bf16.msra.mxu0 0
      %1863 = vmatprep.mubr.bf16.mxu0 0
      %1864 = vmatmul.mubr.bf16.gmra.mrb[0].mxu0 %v1736
      %v1865 = vpop.f32.mrb[0].mxu0
      %v1866 = vadd.f32 %v1720, %v1865
      %v1867 = vpop.f32.mrb[0].mxu0
      %v1868 = vpop.f32.mrb[0].mxu0
      %v1869 = vadd.f32 %v1720, %v1868
      %v1870 = vpop.f32.mrb[0].mxu0
      %1871 = vmatprep.mubr.bf16.mxu0 0
      %1872 = vmatmul.mubr.bf16.gmra.mrb[0].mxu0 %v1739
      %v1873 = vpop.f32.mrb[0].mxu0
      %v1874 = vadd.f32 %v1720, %v1873
      %v1875 = vpop.f32.mrb[0].mxu0
      %v1876 = vpop.f32.mrb[0].mxu0
      %v1877 = vadd.f32 %v1720, %v1876
      %v1878 = vpop.f32.mrb[0].mxu0
      %1879 = vmatprep.mubr.bf16.mxu0 0
      %1880 = vmatmul.mubr.bf16.gmra.mrb[0].mxu0 %v1742
      %v1881 = vpop.f32.mrb[0].mxu0
      %v1882 = vadd.f32 %v1720, %v1881
      %v1883 = vpop.f32.mrb[0].mxu0
      %v1884 = vpop.f32.mrb[0].mxu0
      %v1885 = vadd.f32 %v1720, %v1884
      %v1886 = vpop.f32.mrb[0].mxu0
      %1887 = vmatprep.mubr.bf16.mxu0 0
      %1888 = vmatmul.mubr.bf16.gmra.mrb[0].mxu0 %v1745
      %v1889 = vpop.f32.mrb[0].mxu0
      %v1890 = vadd.f32 %v1720, %v1889
      %v1891 = vpop.f32.mrb[0].mxu0
      %v1892 = vpop.f32.mrb[0].mxu0
      %v1893 = vadd.f32 %v1720, %v1892
      %v1894 = vpop.f32.mrb[0].mxu0
      %1895 = vmatprep.mubr.bf16.mxu0 0
      %1896 = vmatmul.mubr.bf16.gmra.mrb[0].mxu0 %v1748
      %v1897 = vpop.f32.mrb[0].mxu0
      %v1898 = vadd.f32 %v1720, %v1897
      %v1899 = vpop.f32.mrb[0].mxu0
      %v1900 = vpop.f32.mrb[0].mxu0
      %v1901 = vadd.f32 %v1720, %v1900
      %v1902 = vpop.f32.mrb[0].mxu0
      %1903 = vmatprep.mubr.bf16.mxu0 0
      %1904 = vmatmul.mubr.bf16.gmra.mrb[0].mxu0 %v1751
      %v1905 = vpop.f32.mrb[0].mxu0
      %v1906 = vadd.f32 %v1720, %v1905
      %v1907 = vpop.f32.mrb[0].mxu0
      %v1908 = vpop.f32.mrb[0].mxu0
      %v1909 = vadd.f32 %v1720, %v1908
      %v1910 = vpop.f32.mrb[0].mxu0
      %1911 = vmatprep.mubr.bf16.mxu0 0
      %1912 = vmatmul.mubr.bf16.gmra.mrb[0].mxu0 %v1754
      %v1913 = vpop.f32.mrb[0].mxu0
      %v1914 = vadd.f32 %v1720, %v1913
      %v1915 = vpop.f32.mrb[0].mxu0
      %v1916 = vpop.f32.mrb[0].mxu0
      %v1917 = vadd.f32 %v1720, %v1916
      %v1918 = vpop.f32.mrb[0].mxu0
      %1919 = vmatprep.mubr.bf16.mxu0 0
      %1920 = vmatmul.mubr.bf16.gmra.mrb[0].mxu0 %v1757
      %v1921 = vpop.f32.mrb[0].mxu0
      %v1922 = vadd.f32 %v1720, %v1921
      %v1923 = vpop.f32.mrb[0].mxu0
      %v1924 = vpop.f32.mrb[0].mxu0
      %v1925 = vadd.f32 %v1720, %v1924
      %v1926 = vpop.f32.mrb[0].mxu0
      %1927 = vmatprep.mubr.bf16.mxu0 0
      %1928 = vmatmul.mubr.bf16.gmra.mrb[0].mxu0 %v1760
      %v1929 = vpop.f32.mrb[0].mxu0
      %v1930 = vadd.f32 %v1720, %v1929
      %v1931 = vpop.f32.mrb[0].mxu0
      %v1932 = vpop.f32.mrb[0].mxu0
      %v1933 = vadd.f32 %v1720, %v1932
      %v1934 = vpop.f32.mrb[0].mxu0
      %1935 = vmatprep.mubr.bf16.mxu0 0
      %1936 = vmatmul.mubr.bf16.gmra.mrb[0].mxu0 %v1763
      %v1937 = vpop.f32.mrb[0].mxu0
      %v1938 = vadd.f32 %v1720, %v1937
      %v1939 = vpop.f32.mrb[0].mxu0
      %v1940 = vpop.f32.mrb[0].mxu0
      %v1941 = vadd.f32 %v1720, %v1940
      %v1942 = vpop.f32.mrb[0].mxu0
      %1943 = vmatprep.mubr.bf16.mxu0 0
      %1944 = vmatmul.mubr.bf16.gmra.mrb[0].mxu0 %v1766
      %v1945 = vpop.f32.mrb[0].mxu0
      %v1946 = vadd.f32 %v1720, %v1945
      %v1947 = vpop.f32.mrb[0].mxu0
      %v1948 = vpop.f32.mrb[0].mxu0
      %v1949 = vadd.f32 %v1720, %v1948
      %v1950 = vpop.f32.mrb[0].mxu0
      %1951 = vmatprep.mubr.bf16.mxu0 0
      %1952 = vmatmul.mubr.bf16.gmra.mrb[0].mxu0 %v1769
      %v1953 = vpop.f32.mrb[0].mxu0
      %v1954 = vadd.f32 %v1720, %v1953
      %v1955 = vpop.f32.mrb[0].mxu0
      %v1956 = vpop.f32.mrb[0].mxu0
      %v1957 = vadd.f32 %v1720, %v1956
      %v1958 = vpop.f32.mrb[0].mxu0
      %1959 = vmatprep.mubr.bf16.mxu0 0
      %1960 = vmatmul.mubr.bf16.gmra.mrb[0].mxu0 %v1772
      %v1961 = vpop.f32.mrb[0].mxu0
      %v1962 = vadd.f32 %v1720, %v1961
      %v1963 = vpop.f32.mrb[0].mxu0
      %v1964 = vpop.f32.mrb[0].mxu0
      %v1965 = vadd.f32 %v1720, %v1964
      %v1966 = vpop.f32.mrb[0].mxu0
      %1967 = vmatprep.mubr.bf16.mxu0 0
      %1968 = vmatmul.mubr.bf16.gmra.mrb[0].mxu0 %v1775
      %v1969 = vpop.f32.mrb[0].mxu0
      %v1970 = vadd.f32 %v1720, %v1969
      %v1971 = vpop.f32.mrb[0].mxu0
      %v1972 = vpop.f32.mrb[0].mxu0
      %v1973 = vadd.f32 %v1720, %v1972
      %v1974 = vpop.f32.mrb[0].mxu0
      %1975 = vmatprep.mubr.bf16.mxu0 0
      %1976 = vmatmul.mubr.bf16.gmra.mrb[0].mxu0 %v1778
      %v1977 = vpop.f32.mrb[0].mxu0
      %v1978 = vadd.f32 %v1720, %v1977
      %v1979 = vpop.f32.mrb[0].mxu0
      %v1980 = vpop.f32.mrb[0].mxu0
      %v1981 = vadd.f32 %v1720, %v1980
      %v1982 = vpop.f32.mrb[0].mxu0
      %1983 = vmatprep.mubr.bf16.mxu0 0
      %1984 = vmatmul.mubr.bf16.gmra.mrb[0].mxu0 %v1781
      %v1985 = vpop.f32.mrb[0].mxu0
      %v1986 = vadd.f32 %v1720, %v1985
      %v1987 = vpop.f32.mrb[0].mxu0
      %v1988 = vpop.f32.mrb[0].mxu0
      %v1989 = vadd.f32 %v1720, %v1988
      %v1990 = vpop.f32.mrb[0].mxu0
      %1991 = vmatprep.mubr.bf16.mxu0 0
      %1992 = vmatmul.mubr.bf16.gmra.mrb[0].mxu0 %v1784
      %v1993 = vpop.f32.mrb[0].mxu0
      %v1994 = vadd.f32 %v1720, %v1993
      %v1995 = vpop.f32.mrb[0].mxu0
      %v1996 = vpop.f32.mrb[0].mxu0
      %v1997 = vadd.f32 %v1720, %v1996
      %v1998 = vpop.f32.mrb[0].mxu0
      %1999 = vmatprep.mubr.bf16.mxu0 0
      %2000 = vmatmul.mubr.bf16.gmra.mrb[0].mxu0 %v1787
      %v2001 = vpop.f32.mrb[0].mxu0
      %v2002 = vadd.f32 %v1720, %v2001
      %v2003 = vpop.f32.mrb[0].mxu0
      %v2004 = vpop.f32.mrb[0].mxu0
      %v2005 = vadd.f32 %v1720, %v2004
      %v2006 = vpop.f32.mrb[0].mxu0
      %2007 = vmatprep.mubr.bf16.mxu0 0
      %2008 = vmatmul.mubr.bf16.gmra.mrb[0].mxu0 %v1790
      %v2009 = vpop.f32.mrb[0].mxu0
      %v2010 = vadd.f32 %v1720, %v2009
      %v2011 = vpop.f32.mrb[0].mxu0
      %v2012 = vpop.f32.mrb[0].mxu0
      %v2013 = vadd.f32 %v1720, %v2012
      %v2014 = vpop.f32.mrb[0].mxu0
      %2015 = vmatprep.mubr.bf16.mxu0 0
      %2016 = vmatmul.mubr.bf16.gmra.mrb[0].mxu0 %v1793
      %v2017 = vpop.f32.mrb[0].mxu0
      %v2018 = vadd.f32 %v1720, %v2017
      %v2019 = vpop.f32.mrb[0].mxu0
      %v2020 = vpop.f32.mrb[0].mxu0
      %v2021 = vadd.f32 %v1720, %v2020
      %v2022 = vpop.f32.mrb[0].mxu0
      %2023 = vmatprep.mubr.bf16.mxu0 0
      %2024 = vmatmul.mubr.bf16.gmra.mrb[0].mxu0 %v1796
      %v2025 = vpop.f32.mrb[0].mxu0
      %v2026 = vadd.f32 %v1720, %v2025
      %v2027 = vpop.f32.mrb[0].mxu0
      %v2028 = vpop.f32.mrb[0].mxu0
      %v2029 = vadd.f32 %v1720, %v2028
      %v2030 = vpop.f32.mrb[0].mxu0
      %2031 = vmatprep.mubr.bf16.mxu0 0
      %2032 = vmatmul.mubr.bf16.gmra.mrb[0].mxu0 %v1799
      %v2033 = vpop.f32.mrb[0].mxu0
      %v2034 = vadd.f32 %v1720, %v2033
      %v2035 = vpop.f32.mrb[0].mxu0
      %v2036 = vpop.f32.mrb[0].mxu0
      %v2037 = vadd.f32 %v1720, %v2036
      %v2038 = vpop.f32.mrb[0].mxu0
      %2039 = vmatprep.mubr.bf16.mxu0 0
      %2040 = vmatmul.mubr.bf16.gmra.mrb[0].mxu0 %v1802
      %v2041 = vpop.f32.mrb[0].mxu0
      %v2042 = vadd.f32 %v1720, %v2041
      %v2043 = vpop.f32.mrb[0].mxu0
      %v2044 = vpop.f32.mrb[0].mxu0
      %v2045 = vadd.f32 %v1720, %v2044
      %v2046 = vpop.f32.mrb[0].mxu0
      %2047 = vmatprep.mubr.bf16.mxu0 0
      %2048 = vmatmul.mubr.bf16.gmra.mrb[0].mxu0 %v1805
      %v2049 = vpop.f32.mrb[0].mxu0
      %v2050 = vadd.f32 %v1720, %v2049
      %v2051 = vpop.f32.mrb[0].mxu0
      %v2052 = vpop.f32.mrb[0].mxu0
      %v2053 = vadd.f32 %v1720, %v2052
      %v2054 = vpop.f32.mrb[0].mxu0
      %2055 = vmatprep.mubr.bf16.mxu0 0
      %2056 = vmatmul.mubr.bf16.gmra.mrb[0].mxu0 %v1808
      %v2057 = vpop.f32.mrb[0].mxu0
      %v2058 = vadd.f32 %v1720, %v2057
      %v2059 = vpop.f32.mrb[0].mxu0
      %v2060 = vpop.f32.mrb[0].mxu0
      %v2061 = vadd.f32 %v1720, %v2060
      %v2062 = vpop.f32.mrb[0].mxu0
      %2063 = vmatprep.mubr.bf16.mxu0 0
      %2064 = vmatmul.mubr.bf16.gmra.mrb[0].mxu0 %v1811
      %v2065 = vpop.f32.mrb[0].mxu0
      %v2066 = vadd.f32 %v1720, %v2065
      %v2067 = vpop.f32.mrb[0].mxu0
      %v2068 = vpop.f32.mrb[0].mxu0
      %v2069 = vadd.f32 %v1720, %v2068
      %v2070 = vpop.f32.mrb[0].mxu0
      %2071 = vmatprep.mubr.bf16.mxu0 0
      %2072 = vmatmul.mubr.bf16.gmra.mrb[0].mxu0 %v1814
      %v2073 = vpop.f32.mrb[0].mxu0
      %v2074 = vadd.f32 %v1720, %v2073
      %v2075 = vpop.f32.mrb[0].mxu0
      %v2076 = vpop.f32.mrb[0].mxu0
      %v2077 = vadd.f32 %v1720, %v2076
      %v2078 = vpop.f32.mrb[0].mxu0
      %2079 = vmatprep.mubr.bf16.mxu0 0
      %2080 = vmatmul.mubr.bf16.gmra.mrb[0].mxu0 %v1817
      %v2081 = vpop.f32.mrb[0].mxu0
      %v2082 = vadd.f32 %v1720, %v2081
      %v2083 = vpop.f32.mrb[0].mxu0
      %v2084 = vpop.f32.mrb[0].mxu0
      %v2085 = vadd.f32 %v1720, %v2084
      %v2086 = vpop.f32.mrb[0].mxu0
      %2087 = vmatprep.mubr.bf16.mxu0 0
      %2088 = vmatmul.mubr.bf16.gmra.mrb[0].mxu0 %v1820
      %v2089 = vpop.f32.mrb[0].mxu0
      %v2090 = vadd.f32 %v1720, %v2089
      %v2091 = vpop.f32.mrb[0].mxu0
      %v2092 = vpop.f32.mrb[0].mxu0
      %v2093 = vadd.f32 %v1720, %v2092
      %v2094 = vpop.f32.mrb[0].mxu0
      %2095 = vmatprep.mubr.bf16.mxu0 0
      %2096 = vmatmul.mubr.bf16.gmra.mrb[0].mxu0 %v1823
      %v2097 = vpop.f32.mrb[0].mxu0
      %v2098 = vadd.f32 %v1720, %v2097
      %v2099 = vpop.f32.mrb[0].mxu0
      %v2100 = vpop.f32.mrb[0].mxu0
      %v2101 = vadd.f32 %v1720, %v2100
      %v2102 = vpop.f32.mrb[0].mxu0
      %2103 = vmatprep.mubr.bf16.mxu0 0
      %2104 = vmatmul.mubr.bf16.gmra.mrb[0].mxu0 %v1826
      %v2105 = vpop.f32.mrb[0].mxu0
      %v2106 = vadd.f32 %v1720, %v2105
      %v2107 = vpop.f32.mrb[0].mxu0
      %v2108 = vpop.f32.mrb[0].mxu0
      %v2109 = vadd.f32 %v1720, %v2108
      %v2110 = vpop.f32.mrb[0].mxu0
      %2111 = vmatprep.mubr.bf16.mxu0 0
      %2112 = vmatmul.mubr.bf16.gmra.mrb[0].mxu0 %v1829
      %v2113 = vpop.f32.mrb[0].mxu0
      %v2114 = vadd.f32 %v1720, %v2113
      %v2115 = vpop.f32.mrb[0].mxu0
      %v2116 = vpop.f32.mrb[0].mxu0
      %v2117 = vadd.f32 %v1720, %v2116
      %v2118 = vpop.f32.mrb[0].mxu0
      %2119 = vdwg.mxu0
      %v2120 = vld [vmem:[%s522] sm:$0xff]
      %v2121 = vld [vmem:[%s522 + $0x8] sm:$0xff]
      %v2122 = vld [vmem:[%s522 + $0x10] sm:$0xff]
      %v2123 = vld [vmem:[%s522 + $0x18] sm:$0xff]
      %v2124 = vld [vmem:[%s522 + $0x20] sm:$0xff]
      %v2125 = vld [vmem:[%s522 + $0x28] sm:$0xff]
      %v2126 = vld [vmem:[%s522 + $0x30] sm:$0xff]
      %v2127 = vld [vmem:[%s522 + $0x38] sm:$0xff]
      %v2128 = vld [vmem:[%s522 + $0x40] sm:$0xff]
      %v2129 = vld [vmem:[%s522 + $0x48] sm:$0xff]
      %v2130 = vld [vmem:[%s522 + $0x50] sm:$0xff]
      %v2131 = vld [vmem:[%s522 + $0x58] sm:$0xff]
      %v2132 = vld [vmem:[%s522 + $0x60] sm:$0xff]
      %v2133 = vld [vmem:[%s522 + $0x68] sm:$0xff]
      %v2134 = vld [vmem:[%s522 + $0x70] sm:$0xff]
      %v2135 = vld [vmem:[%s522 + $0x78] sm:$0xff]
      %v2136 = vld [vmem:[%s522 + $0x80] sm:$0xff]
      %v2137 = vld [vmem:[%s522 + $0x88] sm:$0xff]
      %v2138 = vld [vmem:[%s522 + $0x90] sm:$0xff]
      %v2139 = vld [vmem:[%s522 + $0x98] sm:$0xff]
      %v2140 = vld [vmem:[%s522 + $0xa0] sm:$0xff]
      %v2141 = vld [vmem:[%s522 + $0xa8] sm:$0xff]
      %v2142 = vld [vmem:[%s522 + $0xb0] sm:$0xff]
      %v2143 = vld [vmem:[%s522 + $0xb8] sm:$0xff]
      %v2144 = vld [vmem:[%s522 + $0xc0] sm:$0xff]
      %v2145 = vld [vmem:[%s522 + $0xc8] sm:$0xff]
      %v2146 = vld [vmem:[%s522 + $0xd0] sm:$0xff]
      %v2147 = vld [vmem:[%s522 + $0xd8] sm:$0xff]
      %v2148 = vld [vmem:[%s522 + $0xe0] sm:$0xff]
      %v2149 = vld [vmem:[%s522 + $0xe8] sm:$0xff]
      %v2150 = vld [vmem:[%s522 + $0xf0] sm:$0xff]
      %v2151 = vld [vmem:[%s522 + $0xf8] sm:$0xff]
      %v2152 = vld [vmem:[%s522 + $0x100] sm:$0xff]
      %v2153 = vld [vmem:[%s522 + $0x108] sm:$0xff]
      %v2154 = vld [vmem:[%s522 + $0x110] sm:$0xff]
      %v2155 = vld [vmem:[%s522 + $0x118] sm:$0xff]
      %v2156 = vld [vmem:[%s522 + $0x120] sm:$0xff]
      %v2157 = vld [vmem:[%s522 + $0x128] sm:$0xff]
      %v2158 = vld [vmem:[%s522 + $0x130] sm:$0xff]
      %v2159 = vld [vmem:[%s522 + $0x138] sm:$0xff]
      %v2160 = vld [vmem:[%s522 + $0x140] sm:$0xff]
      %v2161 = vld [vmem:[%s522 + $0x148] sm:$0xff]
      %v2162 = vld [vmem:[%s522 + $0x150] sm:$0xff]
      %v2163 = vld [vmem:[%s522 + $0x158] sm:$0xff]
      %v2164 = vld [vmem:[%s522 + $0x160] sm:$0xff]
      %v2165 = vld [vmem:[%s522 + $0x168] sm:$0xff]
      %v2166 = vld [vmem:[%s522 + $0x170] sm:$0xff]
      %v2167 = vld [vmem:[%s522 + $0x178] sm:$0xff]
      %v2168 = vld [vmem:[%s522 + $0x180] sm:$0xff]
      %v2169 = vld [vmem:[%s522 + $0x188] sm:$0xff]
      %v2170 = vld [vmem:[%s522 + $0x190] sm:$0xff]
      %v2171 = vld [vmem:[%s522 + $0x198] sm:$0xff]
      %v2172 = vld [vmem:[%s522 + $0x1a0] sm:$0xff]
      %v2173 = vld [vmem:[%s522 + $0x1a8] sm:$0xff]
      %v2174 = vld [vmem:[%s522 + $0x1b0] sm:$0xff]
      %v2175 = vld [vmem:[%s522 + $0x1b8] sm:$0xff]
      %v2176 = vld [vmem:[%s522 + $0x1c0] sm:$0xff]
      %v2177 = vld [vmem:[%s522 + $0x1c8] sm:$0xff]
      %v2178 = vld [vmem:[%s522 + $0x1d0] sm:$0xff]
      %v2179 = vld [vmem:[%s522 + $0x1d8] sm:$0xff]
      %v2180 = vld [vmem:[%s522 + $0x1e0] sm:$0xff]
      %v2181 = vld [vmem:[%s522 + $0x1e8] sm:$0xff]
      %v2182 = vld [vmem:[%s522 + $0x1f0] sm:$0xff]
      %v2183 = vld [vmem:[%s522 + $0x1f8] sm:$0xff]
      %v2184 = vmul.f32 %v1866, 0.5
      %v2185 = vmul.f32 %v1869, 0.5
      %v2186 = vmul.f32 %v1874, 0.5
      %v2187 = vmul.f32 %v1877, 0.5
      %v2188 = vmul.f32 %v1882, 0.5
      %v2189 = vmul.f32 %v1885, 0.5
      %v2190 = vmul.f32 %v1890, 0.5
      %v2191 = vmul.f32 %v1893, 0.5
      %v2192 = vmul.f32 %v1898, 0.5
      %v2193 = vmul.f32 %v1901, 0.5
      %v2194 = vmul.f32 %v1906, 0.5
      %v2195 = vmul.f32 %v1909, 0.5
      %v2196 = vmul.f32 %v1914, 0.5
      %v2197 = vmul.f32 %v1917, 0.5
      %v2198 = vmul.f32 %v1922, 0.5
      %v2199 = vmul.f32 %v1925, 0.5
      %v2200 = vmul.f32 %v1930, 0.5
      %v2201 = vmul.f32 %v1933, 0.5
      %v2202 = vmul.f32 %v1938, 0.5
      %v2203 = vmul.f32 %v1941, 0.5
      %v2204 = vmul.f32 %v1946, 0.5
      %v2205 = vmul.f32 %v1949, 0.5
      %v2206 = vmul.f32 %v1954, 0.5
      %v2207 = vmul.f32 %v1957, 0.5
      %v2208 = vmul.f32 %v1962, 0.5
      %v2209 = vmul.f32 %v1965, 0.5
      %v2210 = vmul.f32 %v1970, 0.5
      %v2211 = vmul.f32 %v1973, 0.5
      %v2212 = vmul.f32 %v1978, 0.5
      %v2213 = vmul.f32 %v1981, 0.5
      %v2214 = vmul.f32 %v1986, 0.5
      %v2215 = vmul.f32 %v1989, 0.5
      %v2216 = vmul.f32 %v1994, 0.5
      %v2217 = vmul.f32 %v1997, 0.5
      %v2218 = vmul.f32 %v2002, 0.5
      %v2219 = vmul.f32 %v2005, 0.5
      %v2220 = vmul.f32 %v2010, 0.5
      %v2221 = vmul.f32 %v2013, 0.5
      %v2222 = vmul.f32 %v2018, 0.5
      %v2223 = vmul.f32 %v2021, 0.5
      %v2224 = vmul.f32 %v2026, 0.5
      %v2225 = vmul.f32 %v2029, 0.5
      %v2226 = vmul.f32 %v2034, 0.5
      %v2227 = vmul.f32 %v2037, 0.5
      %v2228 = vmul.f32 %v2042, 0.5
      %v2229 = vmul.f32 %v2045, 0.5
      %v2230 = vmul.f32 %v2050, 0.5
      %v2231 = vmul.f32 %v2053, 0.5
      %v2232 = vmul.f32 %v2058, 0.5
      %v2233 = vmul.f32 %v2061, 0.5
      %v2234 = vmul.f32 %v2066, 0.5
      %v2235 = vmul.f32 %v2069, 0.5
      %v2236 = vmul.f32 %v2074, 0.5
      %v2237 = vmul.f32 %v2077, 0.5
      %v2238 = vmul.f32 %v2082, 0.5
      %v2239 = vmul.f32 %v2085, 0.5
      %v2240 = vmul.f32 %v2090, 0.5
      %v2241 = vmul.f32 %v2093, 0.5
      %v2242 = vmul.f32 %v2098, 0.5
      %v2243 = vmul.f32 %v2101, 0.5
      %v2244 = vmul.f32 %v2106, 0.5
      %v2245 = vmul.f32 %v2109, 0.5
      %v2246 = vmul.f32 %v2114, 0.5
      %v2247 = vmul.f32 %v2117, 0.5
      %v2248 = vmul.f32 %v2184, 1.442695
      %v2249 = vpow.pop %v2248
      %v2250 = vmul.f32 %v2185, 1.442695
      %v2251 = vpow.pop %v2250
      %v2252 = vmul.f32 %v2186, 1.442695
      %v2253 = vpow.pop %v2252
      %v2254 = vmul.f32 %v2187, 1.442695
      %v2255 = vpow.pop %v2254
      %v2256 = vmul.f32 %v2188, 1.442695
      %v2257 = vpow.pop %v2256
      %v2258 = vmul.f32 %v2189, 1.442695
      %v2259 = vpow.pop %v2258
      %v2260 = vmul.f32 %v2190, 1.442695
      %v2261 = vpow.pop %v2260
      %v2262 = vmul.f32 %v2191, 1.442695
      %v2263 = vpow.pop %v2262
      %v2264 = vmul.f32 %v2192, 1.442695
      %v2265 = vpow.pop %v2264
      %v2266 = vmul.f32 %v2193, 1.442695
      %v2267 = vpow.pop %v2266
      %v2268 = vmul.f32 %v2194, 1.442695
      %v2269 = vpow.pop %v2268
      %v2270 = vmul.f32 %v2195, 1.442695
      %v2271 = vpow.pop %v2270
      %v2272 = vmul.f32 %v2196, 1.442695
      %v2273 = vpow.pop %v2272
      %v2274 = vmul.f32 %v2197, 1.442695
      %v2275 = vpow.pop %v2274
      %v2276 = vmul.f32 %v2198, 1.442695
      %v2277 = vpow.pop %v2276
      %v2278 = vmul.f32 %v2199, 1.442695
      %v2279 = vpow.pop %v2278
      %v2280 = vmul.f32 %v2200, 1.442695
      %v2281 = vpow.pop %v2280
      %v2282 = vmul.f32 %v2201, 1.442695
      %v2283 = vpow.pop %v2282
      %v2284 = vmul.f32 %v2202, 1.442695
      %v2285 = vpow.pop %v2284
      %v2286 = vmul.f32 %v2203, 1.442695
      %v2287 = vpow.pop %v2286
      %v2288 = vmul.f32 %v2204, 1.442695
      %v2289 = vpow.pop %v2288
      %v2290 = vmul.f32 %v2205, 1.442695
      %v2291 = vpow.pop %v2290
      %v2292 = vmul.f32 %v2206, 1.442695
      %v2293 = vpow.pop %v2292
      %v2294 = vmul.f32 %v2207, 1.442695
      %v2295 = vpow.pop %v2294
      %v2296 = vmul.f32 %v2208, 1.442695
      %v2297 = vpow.pop %v2296
      %v2298 = vmul.f32 %v2209, 1.442695
      %v2299 = vpow.pop %v2298
      %v2300 = vmul.f32 %v2210, 1.442695
      %v2301 = vpow.pop %v2300
      %v2302 = vmul.f32 %v2211, 1.442695
      %v2303 = vpow.pop %v2302
      %v2304 = vmul.f32 %v2212, 1.442695
      %v2305 = vpow.pop %v2304
      %v2306 = vmul.f32 %v2213, 1.442695
      %v2307 = vpow.pop %v2306
      %v2308 = vmul.f32 %v2214, 1.442695
      %v2309 = vpow.pop %v2308
      %v2310 = vmul.f32 %v2215, 1.442695
      %v2311 = vpow.pop %v2310
      %v2312 = vmul.f32 %v2216, 1.442695
      %v2313 = vpow.pop %v2312
      %v2314 = vmul.f32 %v2217, 1.442695
      %v2315 = vpow.pop %v2314
      %v2316 = vmul.f32 %v2218, 1.442695
      %v2317 = vpow.pop %v2316
      %v2318 = vmul.f32 %v2219, 1.442695
      %v2319 = vpow.pop %v2318
      %v2320 = vmul.f32 %v2220, 1.442695
      %v2321 = vpow.pop %v2320
      %v2322 = vmul.f32 %v2221, 1.442695
      %v2323 = vpow.pop %v2322
      %v2324 = vmul.f32 %v2222, 1.442695
      %v2325 = vpow.pop %v2324
      %v2326 = vmul.f32 %v2223, 1.442695
      %v2327 = vpow.pop %v2326
      %v2328 = vmul.f32 %v2224, 1.442695
      %v2329 = vpow.pop %v2328
      %v2330 = vmul.f32 %v2225, 1.442695
      %v2331 = vpow.pop %v2330
      %v2332 = vmul.f32 %v2226, 1.442695
      %v2333 = vpow.pop %v2332
      %v2334 = vmul.f32 %v2227, 1.442695
      %v2335 = vpow.pop %v2334
      %v2336 = vmul.f32 %v2228, 1.442695
      %v2337 = vpow.pop %v2336
      %v2338 = vmul.f32 %v2229, 1.442695
      %v2339 = vpow.pop %v2338
      %v2340 = vmul.f32 %v2230, 1.442695
      %v2341 = vpow.pop %v2340
      %v2342 = vmul.f32 %v2231, 1.442695
      %v2343 = vpow.pop %v2342
      %v2344 = vmul.f32 %v2232, 1.442695
      %v2345 = vpow.pop %v2344
      %v2346 = vmul.f32 %v2233, 1.442695
      %v2347 = vpow.pop %v2346
      %v2348 = vmul.f32 %v2234, 1.442695
      %v2349 = vpow.pop %v2348
      %v2350 = vmul.f32 %v2235, 1.442695
      %v2351 = vpow.pop %v2350
      %v2352 = vmul.f32 %v2236, 1.442695
      %v2353 = vpow.pop %v2352
      %v2354 = vmul.f32 %v2237, 1.442695
      %v2355 = vpow.pop %v2354
      %v2356 = vmul.f32 %v2238, 1.442695
      %v2357 = vpow.pop %v2356
      %v2358 = vmul.f32 %v2239, 1.442695
      %v2359 = vpow.pop %v2358
      %v2360 = vmul.f32 %v2240, 1.442695
      %v2361 = vpow.pop %v2360
      %v2362 = vmul.f32 %v2241, 1.442695
      %v2363 = vpow.pop %v2362
      %v2364 = vmul.f32 %v2242, 1.442695
      %v2365 = vpow.pop %v2364
      %v2366 = vmul.f32 %v2243, 1.442695
      %v2367 = vpow.pop %v2366
      %v2368 = vmul.f32 %v2244, 1.442695
      %v2369 = vpow.pop %v2368
      %v2370 = vmul.f32 %v2245, 1.442695
      %v2371 = vpow.pop %v2370
      %v2372 = vmul.f32 %v2246, 1.442695
      %v2373 = vpow.pop %v2372
      %v2374 = vmul.f32 %v2247, 1.442695
      %v2375 = vpow.pop %v2374
      %2440 = vrot.lane.b32.xlu0 %v2249, 112
      %v2441 = vpop.permute.xlu0 %2440
      %2442 = vrot.lane.b32.xlu0 %v2251, 112
      %v2443 = vpop.permute.xlu0 %2442
      %2444 = vrot.lane.b32.xlu0 %v2253, 112
      %v2445 = vpop.permute.xlu0 %2444
      %2446 = vrot.lane.b32.xlu0 %v2255, 112
      %v2447 = vpop.permute.xlu0 %2446
      %2448 = vrot.lane.b32.xlu0 %v2257, 112
      %v2449 = vpop.permute.xlu0 %2448
      %2450 = vrot.lane.b32.xlu0 %v2259, 112
      %v2451 = vpop.permute.xlu0 %2450
      %2452 = vrot.lane.b32.xlu0 %v2261, 112
      %v2453 = vpop.permute.xlu0 %2452
      %2454 = vrot.lane.b32.xlu0 %v2263, 112
      %v2455 = vpop.permute.xlu0 %2454
      %2456 = vrot.lane.b32.xlu0 %v2265, 112
      %v2457 = vpop.permute.xlu0 %2456
      %2458 = vrot.lane.b32.xlu0 %v2267, 112
      %v2459 = vpop.permute.xlu0 %2458
      %2460 = vrot.lane.b32.xlu0 %v2269, 112
      %v2461 = vpop.permute.xlu0 %2460
      %2462 = vrot.lane.b32.xlu0 %v2271, 112
      %v2463 = vpop.permute.xlu0 %2462
      %2464 = vrot.lane.b32.xlu0 %v2273, 112
      %v2465 = vpop.permute.xlu0 %2464
      %2466 = vrot.lane.b32.xlu0 %v2275, 112
      %v2467 = vpop.permute.xlu0 %2466
      %2468 = vrot.lane.b32.xlu0 %v2277, 112
      %v2469 = vpop.permute.xlu0 %2468
      %2470 = vrot.lane.b32.xlu0 %v2279, 112
      %v2471 = vpop.permute.xlu0 %2470
      %2472 = vrot.lane.b32.xlu0 %v2281, 112
      %v2473 = vpop.permute.xlu0 %2472
      %2474 = vrot.lane.b32.xlu0 %v2283, 112
      %v2475 = vpop.permute.xlu0 %2474
      %2476 = vrot.lane.b32.xlu0 %v2285, 112
      %v2477 = vpop.permute.xlu0 %2476
      %2478 = vrot.lane.b32.xlu0 %v2287, 112
      %v2479 = vpop.permute.xlu0 %2478
      %2480 = vrot.lane.b32.xlu0 %v2289, 112
      %v2481 = vpop.permute.xlu0 %2480
      %2482 = vrot.lane.b32.xlu0 %v2291, 112
      %v2483 = vpop.permute.xlu0 %2482
      %2484 = vrot.lane.b32.xlu0 %v2293, 112
      %v2485 = vpop.permute.xlu0 %2484
      %2486 = vrot.lane.b32.xlu0 %v2295, 112
      %v2487 = vpop.permute.xlu0 %2486
      %2488 = vrot.lane.b32.xlu0 %v2297, 112
      %v2489 = vpop.permute.xlu0 %2488
      %2490 = vrot.lane.b32.xlu0 %v2299, 112
      %v2491 = vpop.permute.xlu0 %2490
      %2492 = vrot.lane.b32.xlu0 %v2301, 112
      %v2493 = vpop.permute.xlu0 %2492
      %2494 = vrot.lane.b32.xlu0 %v2303, 112
      %v2495 = vpop.permute.xlu0 %2494
      %2496 = vrot.lane.b32.xlu0 %v2305, 112
      %v2497 = vpop.permute.xlu0 %2496
      %2498 = vrot.lane.b32.xlu0 %v2307, 112
      %v2499 = vpop.permute.xlu0 %2498
      %2500 = vrot.lane.b32.xlu0 %v2309, 112
      %v2501 = vpop.permute.xlu0 %2500
      %2502 = vrot.lane.b32.xlu0 %v2311, 112
      %v2503 = vpop.permute.xlu0 %2502
      %2504 = vrot.lane.b32.xlu0 %v2313, 112
      %v2505 = vpop.permute.xlu0 %2504
      %2506 = vrot.lane.b32.xlu0 %v2315, 112
      %v2507 = vpop.permute.xlu0 %2506
      %2508 = vrot.lane.b32.xlu0 %v2317, 112
      %v2509 = vpop.permute.xlu0 %2508
      %2510 = vrot.lane.b32.xlu0 %v2319, 112
      %v2511 = vpop.permute.xlu0 %2510
      %2512 = vrot.lane.b32.xlu0 %v2321, 112
      %v2513 = vpop.permute.xlu0 %2512
      %2514 = vrot.lane.b32.xlu0 %v2323, 112
      %v2515 = vpop.permute.xlu0 %2514
      %2516 = vrot.lane.b32.xlu0 %v2325, 112
      %v2517 = vpop.permute.xlu0 %2516
      %2518 = vrot.lane.b32.xlu0 %v2327, 112
      %v2519 = vpop.permute.xlu0 %2518
      %2520 = vrot.lane.b32.xlu0 %v2329, 112
      %v2521 = vpop.permute.xlu0 %2520
      %2522 = vrot.lane.b32.xlu0 %v2331, 112
      %v2523 = vpop.permute.xlu0 %2522
      %2524 = vrot.lane.b32.xlu0 %v2333, 112
      %v2525 = vpop.permute.xlu0 %2524
      %2526 = vrot.lane.b32.xlu0 %v2335, 112
      %v2527 = vpop.permute.xlu0 %2526
      %2528 = vrot.lane.b32.xlu0 %v2337, 112
      %v2529 = vpop.permute.xlu0 %2528
      %2530 = vrot.lane.b32.xlu0 %v2339, 112
      %v2531 = vpop.permute.xlu0 %2530
      %2532 = vrot.lane.b32.xlu0 %v2341, 112
      %v2533 = vpop.permute.xlu0 %2532
      %2534 = vrot.lane.b32.xlu0 %v2343, 112
      %v2535 = vpop.permute.xlu0 %2534
      %2536 = vrot.lane.b32.xlu0 %v2345, 112
      %v2537 = vpop.permute.xlu0 %2536
      %2538 = vrot.lane.b32.xlu0 %v2347, 112
      %v2539 = vpop.permute.xlu0 %2538
      %2540 = vrot.lane.b32.xlu0 %v2349, 112
      %v2541 = vpop.permute.xlu0 %2540
      %2542 = vrot.lane.b32.xlu0 %v2351, 112
      %v2543 = vpop.permute.xlu0 %2542
      %2544 = vrot.lane.b32.xlu0 %v2353, 112
      %v2545 = vpop.permute.xlu0 %2544
      %2546 = vrot.lane.b32.xlu0 %v2355, 112
      %v2547 = vpop.permute.xlu0 %2546
      %2548 = vrot.lane.b32.xlu0 %v2357, 112
      %v2549 = vpop.permute.xlu0 %2548
      %2550 = vrot.lane.b32.xlu0 %v2359, 112
      %v2551 = vpop.permute.xlu0 %2550
      %2552 = vrot.lane.b32.xlu0 %v2361, 112
      %v2553 = vpop.permute.xlu0 %2552
      %2554 = vrot.lane.b32.xlu0 %v2363, 112
      %v2555 = vpop.permute.xlu0 %2554
      %2556 = vrot.lane.b32.xlu0 %v2365, 112
      %v2557 = vpop.permute.xlu0 %2556
      %2558 = vrot.lane.b32.xlu0 %v2367, 112
      %v2559 = vpop.permute.xlu0 %2558
      %2560 = vrot.lane.b32.xlu0 %v2369, 112
      %v2561 = vpop.permute.xlu0 %2560
      %2562 = vrot.lane.b32.xlu0 %v2371, 112
      %v2563 = vpop.permute.xlu0 %2562
      %2564 = vrot.lane.b32.xlu0 %v2373, 112
      %v2565 = vpop.permute.xlu0 %2564
      %2566 = vrot.lane.b32.xlu0 %v2375, 112
      %v2567 = vpop.permute.xlu0 %2566
      %v2632 = vmul.f32 %v2120, %v2441
      %v2633 = vmul.f32 %v2121, %v2443
      %v2634 = vmul.f32 %v2122, %v2445
      %v2635 = vmul.f32 %v2123, %v2447
      %v2636 = vmul.f32 %v2124, %v2449
      %v2637 = vmul.f32 %v2125, %v2451
      %v2638 = vmul.f32 %v2126, %v2453
      %v2639 = vmul.f32 %v2127, %v2455
      %v2640 = vmul.f32 %v2128, %v2457
      %v2641 = vmul.f32 %v2129, %v2459
      %v2642 = vmul.f32 %v2130, %v2461
      %v2643 = vmul.f32 %v2131, %v2463
      %v2644 = vmul.f32 %v2132, %v2465
      %v2645 = vmul.f32 %v2133, %v2467
      %v2646 = vmul.f32 %v2134, %v2469
      %v2647 = vmul.f32 %v2135, %v2471
      %v2648 = vmul.f32 %v2136, %v2473
      %v2649 = vmul.f32 %v2137, %v2475
      %v2650 = vmul.f32 %v2138, %v2477
      %v2651 = vmul.f32 %v2139, %v2479
      %v2652 = vmul.f32 %v2140, %v2481
      %v2653 = vmul.f32 %v2141, %v2483
      %v2654 = vmul.f32 %v2142, %v2485
      %v2655 = vmul.f32 %v2143, %v2487
      %v2656 = vmul.f32 %v2144, %v2489
      %v2657 = vmul.f32 %v2145, %v2491
      %v2658 = vmul.f32 %v2146, %v2493
      %v2659 = vmul.f32 %v2147, %v2495
      %v2660 = vmul.f32 %v2148, %v2497
      %v2661 = vmul.f32 %v2149, %v2499
      %v2662 = vmul.f32 %v2150, %v2501
      %v2663 = vmul.f32 %v2151, %v2503
      %v2664 = vmul.f32 %v2152, %v2505
      %v2665 = vmul.f32 %v2153, %v2507
      %v2666 = vmul.f32 %v2154, %v2509
      %v2667 = vmul.f32 %v2155, %v2511
      %v2668 = vmul.f32 %v2156, %v2513
      %v2669 = vmul.f32 %v2157, %v2515
      %v2670 = vmul.f32 %v2158, %v2517
      %v2671 = vmul.f32 %v2159, %v2519
      %v2672 = vmul.f32 %v2160, %v2521
      %v2673 = vmul.f32 %v2161, %v2523
      %v2674 = vmul.f32 %v2162, %v2525
      %v2675 = vmul.f32 %v2163, %v2527
      %v2676 = vmul.f32 %v2164, %v2529
      %v2677 = vmul.f32 %v2165, %v2531
      %v2678 = vmul.f32 %v2166, %v2533
      %v2679 = vmul.f32 %v2167, %v2535
      %v2680 = vmul.f32 %v2168, %v2537
      %v2681 = vmul.f32 %v2169, %v2539
      %v2682 = vmul.f32 %v2170, %v2541
      %v2683 = vmul.f32 %v2171, %v2543
      %v2684 = vmul.f32 %v2172, %v2545
      %v2685 = vmul.f32 %v2173, %v2547
      %v2686 = vmul.f32 %v2174, %v2549
      %v2687 = vmul.f32 %v2175, %v2551
      %v2688 = vmul.f32 %v2176, %v2553
      %v2689 = vmul.f32 %v2177, %v2555
      %v2690 = vmul.f32 %v2178, %v2557
      %v2691 = vmul.f32 %v2179, %v2559
      %v2692 = vmul.f32 %v2180, %v2561
      %v2693 = vmul.f32 %v2181, %v2563
      %v2694 = vmul.f32 %v2182, %v2565
      %v2695 = vmul.f32 %v2183, %v2567
      %v2696 = vadd.f32 %v1866, %v2632
      %v2697 = vadd.f32 %v1869, %v2633
      %v2698 = vadd.f32 %v1874, %v2634
      %v2699 = vadd.f32 %v1877, %v2635
      %v2700 = vadd.f32 %v1882, %v2636
      %v2701 = vadd.f32 %v1885, %v2637
      %v2702 = vadd.f32 %v1890, %v2638
      %v2703 = vadd.f32 %v1893, %v2639
      %v2704 = vadd.f32 %v1898, %v2640
      %v2705 = vadd.f32 %v1901, %v2641
      %v2706 = vadd.f32 %v1906, %v2642
      %v2707 = vadd.f32 %v1909, %v2643
      %v2708 = vadd.f32 %v1914, %v2644
      %v2709 = vadd.f32 %v1917, %v2645
      %v2710 = vadd.f32 %v1922, %v2646
      %v2711 = vadd.f32 %v1925, %v2647
      %v2712 = vadd.f32 %v1930, %v2648
      %v2713 = vadd.f32 %v1933, %v2649
      %v2714 = vadd.f32 %v1938, %v2650
      %v2715 = vadd.f32 %v1941, %v2651
      %v2716 = vadd.f32 %v1946, %v2652
      %v2717 = vadd.f32 %v1949, %v2653
      %v2718 = vadd.f32 %v1954, %v2654
      %v2719 = vadd.f32 %v1957, %v2655
      %v2720 = vadd.f32 %v1962, %v2656
      %v2721 = vadd.f32 %v1965, %v2657
      %v2722 = vadd.f32 %v1970, %v2658
      %v2723 = vadd.f32 %v1973, %v2659
      %v2724 = vadd.f32 %v1978, %v2660
      %v2725 = vadd.f32 %v1981, %v2661
      %v2726 = vadd.f32 %v1986, %v2662
      %v2727 = vadd.f32 %v1989, %v2663
      %v2728 = vadd.f32 %v1994, %v2664
      %v2729 = vadd.f32 %v1997, %v2665
      %v2730 = vadd.f32 %v2002, %v2666
      %v2731 = vadd.f32 %v2005, %v2667
      %v2732 = vadd.f32 %v2010, %v2668
      %v2733 = vadd.f32 %v2013, %v2669
      %v2734 = vadd.f32 %v2018, %v2670
      %v2735 = vadd.f32 %v2021, %v2671
      %v2736 = vadd.f32 %v2026, %v2672
      %v2737 = vadd.f32 %v2029, %v2673
      %v2738 = vadd.f32 %v2034, %v2674
      %v2739 = vadd.f32 %v2037, %v2675
      %v2740 = vadd.f32 %v2042, %v2676
      %v2741 = vadd.f32 %v2045, %v2677
      %v2742 = vadd.f32 %v2050, %v2678
      %v2743 = vadd.f32 %v2053, %v2679
      %v2744 = vadd.f32 %v2058, %v2680
      %v2745 = vadd.f32 %v2061, %v2681
      %v2746 = vadd.f32 %v2066, %v2682
      %v2747 = vadd.f32 %v2069, %v2683
      %v2748 = vadd.f32 %v2074, %v2684
      %v2749 = vadd.f32 %v2077, %v2685
      %v2750 = vadd.f32 %v2082, %v2686
      %v2751 = vadd.f32 %v2085, %v2687
      %v2752 = vadd.f32 %v2090, %v2688
      %v2753 = vadd.f32 %v2093, %v2689
      %v2754 = vadd.f32 %v2098, %v2690
      %v2755 = vadd.f32 %v2101, %v2691
      %v2756 = vadd.f32 %v2106, %v2692
      %v2757 = vadd.f32 %v2109, %v2693
      %v2758 = vadd.f32 %v2114, %v2694
      %v2759 = vadd.f32 %v2117, %v2695
      %v2760 = vpack.c.bf16 %v2697, %v2696
      %v2761 = vpack.c.bf16 %v2699, %v2698
      %v2762 = vpack.c.bf16 %v2701, %v2700
      %v2763 = vpack.c.bf16 %v2703, %v2702
      %v2764 = vpack.c.bf16 %v2705, %v2704
      %v2765 = vpack.c.bf16 %v2707, %v2706
      %v2766 = vpack.c.bf16 %v2709, %v2708
      %v2767 = vpack.c.bf16 %v2711, %v2710
      %v2768 = vpack.c.bf16 %v2713, %v2712
      %v2769 = vpack.c.bf16 %v2715, %v2714
      %v2770 = vpack.c.bf16 %v2717, %v2716
      %v2771 = vpack.c.bf16 %v2719, %v2718
      %v2772 = vpack.c.bf16 %v2721, %v2720
      %v2773 = vpack.c.bf16 %v2723, %v2722
      %v2774 = vpack.c.bf16 %v2725, %v2724
      %v2775 = vpack.c.bf16 %v2727, %v2726
      %v2776 = vpack.c.bf16 %v2729, %v2728
      %v2777 = vpack.c.bf16 %v2731, %v2730
      %v2778 = vpack.c.bf16 %v2733, %v2732
      %v2779 = vpack.c.bf16 %v2735, %v2734
      %v2780 = vpack.c.bf16 %v2737, %v2736
      %v2781 = vpack.c.bf16 %v2739, %v2738
      %v2782 = vpack.c.bf16 %v2741, %v2740
      %v2783 = vpack.c.bf16 %v2743, %v2742
      %v2784 = vpack.c.bf16 %v2745, %v2744
      %v2785 = vpack.c.bf16 %v2747, %v2746
      %v2786 = vpack.c.bf16 %v2749, %v2748
      %v2787 = vpack.c.bf16 %v2751, %v2750
      %v2788 = vpack.c.bf16 %v2753, %v2752
      %v2789 = vpack.c.bf16 %v2755, %v2754
      %v2790 = vpack.c.bf16 %v2757, %v2756
      %v2791 = vpack.c.bf16 %v2759, %v2758
      %v2792 = vld [vmem:[%s9] sm:$0xf]
      %v2793 = vld [vmem:[%s9 + $0x4] sm:$0xf]
      %v2796 = vunpack.c.l.b16 %v2792
      %v2797 = vunpack.c.l.b16 %v2793
      %v2798 = vpack.c.b16 %v2797, %v2796
      %2864 = vrot.lane.b32.xlu0 %v880, 96
      %v2865 = vpop.permute.xlu0 %2864
      %2866 = vrot.lane.b32.xlu0 %v883, 96
      %v2867 = vpop.permute.xlu0 %2866
      %2868 = vrot.lane.b32.xlu0 %v888, 96
      %v2869 = vpop.permute.xlu0 %2868
      %2870 = vrot.lane.b32.xlu0 %v891, 96
      %v2871 = vpop.permute.xlu0 %2870
      %2872 = vrot.lane.b32.xlu0 %v896, 96
      %v2873 = vpop.permute.xlu0 %2872
      %2874 = vrot.lane.b32.xlu0 %v899, 96
      %v2875 = vpop.permute.xlu0 %2874
      %2876 = vrot.lane.b32.xlu0 %v904, 96
      %v2877 = vpop.permute.xlu0 %2876
      %2878 = vrot.lane.b32.xlu0 %v907, 96
      %v2879 = vpop.permute.xlu0 %2878
      %2880 = vrot.lane.b32.xlu0 %v912, 96
      %v2881 = vpop.permute.xlu0 %2880
      %2882 = vrot.lane.b32.xlu0 %v915, 96
      %v2883 = vpop.permute.xlu0 %2882
      %2884 = vrot.lane.b32.xlu0 %v920, 96
      %v2885 = vpop.permute.xlu0 %2884
      %2886 = vrot.lane.b32.xlu0 %v923, 96
      %v2887 = vpop.permute.xlu0 %2886
      %2888 = vrot.lane.b32.xlu0 %v928, 96
      %v2889 = vpop.permute.xlu0 %2888
      %2890 = vrot.lane.b32.xlu0 %v931, 96
      %v2891 = vpop.permute.xlu0 %2890
      %2892 = vrot.lane.b32.xlu0 %v936, 96
      %v2893 = vpop.permute.xlu0 %2892
      %2894 = vrot.lane.b32.xlu0 %v939, 96
      %v2895 = vpop.permute.xlu0 %2894
      %2896 = vrot.lane.b32.xlu0 %v944, 96
      %v2897 = vpop.permute.xlu0 %2896
      %2898 = vrot.lane.b32.xlu0 %v947, 96
      %v2899 = vpop.permute.xlu0 %2898
      %2900 = vrot.lane.b32.xlu0 %v952, 96
      %v2901 = vpop.permute.xlu0 %2900
      %2902 = vrot.lane.b32.xlu0 %v955, 96
      %v2903 = vpop.permute.xlu0 %2902
      %2904 = vrot.lane.b32.xlu0 %v960, 96
      %v2905 = vpop.permute.xlu0 %2904
      %2906 = vrot.lane.b32.xlu0 %v963, 96
      %v2907 = vpop.permute.xlu0 %2906
      %2908 = vrot.lane.b32.xlu0 %v968, 96
      %v2909 = vpop.permute.xlu0 %2908
      %2910 = vrot.lane.b32.xlu0 %v971, 96
      %v2911 = vpop.permute.xlu0 %2910
      %2912 = vrot.lane.b32.xlu0 %v976, 96
      %v2913 = vpop.permute.xlu0 %2912
      %2914 = vrot.lane.b32.xlu0 %v979, 96
      %v2915 = vpop.permute.xlu0 %2914
      %2916 = vrot.lane.b32.xlu0 %v984, 96
      %v2917 = vpop.permute.xlu0 %2916
      %2918 = vrot.lane.b32.xlu0 %v987, 96
      %v2919 = vpop.permute.xlu0 %2918
      %2920 = vrot.lane.b32.xlu0 %v992, 96
      %v2921 = vpop.permute.xlu0 %2920
      %2922 = vrot.lane.b32.xlu0 %v995, 96
      %v2923 = vpop.permute.xlu0 %2922
      %2924 = vrot.lane.b32.xlu0 %v1000, 96
      %v2925 = vpop.permute.xlu0 %2924
      %2926 = vrot.lane.b32.xlu0 %v1003, 96
      %v2927 = vpop.permute.xlu0 %2926
      %2928 = vrot.lane.b32.xlu0 %v1008, 96
      %v2929 = vpop.permute.xlu0 %2928
      %2930 = vrot.lane.b32.xlu0 %v1011, 96
      %v2931 = vpop.permute.xlu0 %2930
      %2932 = vrot.lane.b32.xlu0 %v1016, 96
      %v2933 = vpop.permute.xlu0 %2932
      %2934 = vrot.lane.b32.xlu0 %v1019, 96
      %v2935 = vpop.permute.xlu0 %2934
      %2936 = vrot.lane.b32.xlu0 %v1024, 96
      %v2937 = vpop.permute.xlu0 %2936
      %2938 = vrot.lane.b32.xlu0 %v1027, 96
      %v2939 = vpop.permute.xlu0 %2938
      %2940 = vrot.lane.b32.xlu0 %v1032, 96
      %v2941 = vpop.permute.xlu0 %2940
      %2942 = vrot.lane.b32.xlu0 %v1035, 96
      %v2943 = vpop.permute.xlu0 %2942
      %2944 = vrot.lane.b32.xlu0 %v1040, 96
      %v2945 = vpop.permute.xlu0 %2944
      %2946 = vrot.lane.b32.xlu0 %v1043, 96
      %v2947 = vpop.permute.xlu0 %2946
      %2948 = vrot.lane.b32.xlu0 %v1048, 96
      %v2949 = vpop.permute.xlu0 %2948
      %2950 = vrot.lane.b32.xlu0 %v1051, 96
      %v2951 = vpop.permute.xlu0 %2950
      %2952 = vrot.lane.b32.xlu0 %v1056, 96
      %v2953 = vpop.permute.xlu0 %2952
      %2954 = vrot.lane.b32.xlu0 %v1059, 96
      %v2955 = vpop.permute.xlu0 %2954
      %2956 = vrot.lane.b32.xlu0 %v1064, 96
      %v2957 = vpop.permute.xlu0 %2956
      %2958 = vrot.lane.b32.xlu0 %v1067, 96
      %v2959 = vpop.permute.xlu0 %2958
      %2960 = vrot.lane.b32.xlu0 %v1072, 96
      %v2961 = vpop.permute.xlu0 %2960
      %2962 = vrot.lane.b32.xlu0 %v1075, 96
      %v2963 = vpop.permute.xlu0 %2962
      %2964 = vrot.lane.b32.xlu0 %v1080, 96
      %v2965 = vpop.permute.xlu0 %2964
      %2966 = vrot.lane.b32.xlu0 %v1083, 96
      %v2967 = vpop.permute.xlu0 %2966
      %2968 = vrot.lane.b32.xlu0 %v1088, 96
      %v2969 = vpop.permute.xlu0 %2968
      %2970 = vrot.lane.b32.xlu0 %v1091, 96
      %v2971 = vpop.permute.xlu0 %2970
      %2972 = vrot.lane.b32.xlu0 %v1096, 96
      %v2973 = vpop.permute.xlu0 %2972
      %2974 = vrot.lane.b32.xlu0 %v1099, 96
      %v2975 = vpop.permute.xlu0 %2974
      %2976 = vrot.lane.b32.xlu0 %v1104, 96
      %v2977 = vpop.permute.xlu0 %2976
      %2978 = vrot.lane.b32.xlu0 %v1107, 96
      %v2979 = vpop.permute.xlu0 %2978
      %2980 = vrot.lane.b32.xlu0 %v1112, 96
      %v2981 = vpop.permute.xlu0 %2980
      %2982 = vrot.lane.b32.xlu0 %v1115, 96
      %v2983 = vpop.permute.xlu0 %2982
      %2984 = vrot.lane.b32.xlu0 %v1120, 96
      %v2985 = vpop.permute.xlu0 %2984
      %2986 = vrot.lane.b32.xlu0 %v1123, 96
      %v2987 = vpop.permute.xlu0 %2986
      %2988 = vrot.lane.b32.xlu0 %v1128, 96
      %v2989 = vpop.permute.xlu0 %2988
      %2990 = vrot.lane.b32.xlu0 %v1131, 96
      %v2991 = vpop.permute.xlu0 %2990
      %vm3056 = vcmask 130048
      %v3058 = vsel %vm3056, %v2760, 0
      %v3061 = vsel %vm3056, %v2761, 0
      %v3064 = vsel %vm3056, %v2762, 0
      %v3067 = vsel %vm3056, %v2763, 0
      %v3070 = vsel %vm3056, %v2764, 0
      %v3073 = vsel %vm3056, %v2765, 0
      %v3076 = vsel %vm3056, %v2766, 0
      %v3079 = vsel %vm3056, %v2767, 0
      %v3082 = vsel %vm3056, %v2768, 0
      %v3085 = vsel %vm3056, %v2769, 0
      %v3088 = vsel %vm3056, %v2770, 0
      %v3091 = vsel %vm3056, %v2771, 0
      %v3094 = vsel %vm3056, %v2772, 0
      %v3097 = vsel %vm3056, %v2773, 0
      %v3100 = vsel %vm3056, %v2774, 0
      %v3103 = vsel %vm3056, %v2775, 0
      %v3106 = vsel %vm3056, %v2776, 0
      %v3109 = vsel %vm3056, %v2777, 0
      %v3112 = vsel %vm3056, %v2778, 0
      %v3115 = vsel %vm3056, %v2779, 0
      %v3118 = vsel %vm3056, %v2780, 0
      %v3121 = vsel %vm3056, %v2781, 0
      %v3124 = vsel %vm3056, %v2782, 0
      %v3127 = vsel %vm3056, %v2783, 0
      %v3130 = vsel %vm3056, %v2784, 0
      %v3133 = vsel %vm3056, %v2785, 0
      %v3136 = vsel %vm3056, %v2786, 0
      %v3139 = vsel %vm3056, %v2787, 0
      %v3142 = vsel %vm3056, %v2788, 0
      %v3145 = vsel %vm3056, %v2789, 0
      %v3148 = vsel %vm3056, %v2790, 0
      %v3151 = vsel %vm3056, %v2791, 0
      %3153 = vmatprep.subr.bf16.mxu0 0
      %3154 = vmatpush1.bf16.msra.mxu0 %v2798
      %3155 = vmatprep.subr.bf16.mxu0 0
      %3156 = vmatpush1.bf16.msra.mxu0 0
      %3157 = vmatprep.subr.bf16.mxu0 0
      %3158 = vmatpush1.bf16.msra.mxu0 0
      %3159 = vmatprep.subr.bf16.mxu0 0
      %3160 = vmatpush1.bf16.msra.mxu0 0
      %3161 = vmatprep.subr.bf16.mxu0 0
      %3162 = vmatpush1.bf16.msra.mxu0 0
      %3163 = vmatprep.subr.bf16.mxu0 0
      %3164 = vmatpush1.bf16.msra.mxu0 0
      %3165 = vmatprep.subr.bf16.mxu0 0
      %3166 = vmatpush1.bf16.msra.mxu0 0
      %3167 = vmatprep.subr.bf16.mxu0 0
      %3168 = vmatpush1.bf16.msra.mxu0 0
      %3169 = vmatprep.subr.bf16.mxu0 0
      %3170 = vmatpush1.bf16.msra.mxu0 0
      %3171 = vmatprep.subr.bf16.mxu0 0
      %3172 = vmatpush1.bf16.msra.mxu0 0
      %3173 = vmatprep.subr.bf16.mxu0 0
      %3174 = vmatpush1.bf16.msra.mxu0 0
      %3175 = vmatprep.subr.bf16.mxu0 0
      %3176 = vmatpush1.bf16.msra.mxu0 0
      %3177 = vmatprep.subr.bf16.mxu0 0
      %3178 = vmatpush1.bf16.msra.mxu0 0
      %3179 = vmatprep.subr.bf16.mxu0 0
      %3180 = vmatpush1.bf16.msra.mxu0 0
      %3181 = vmatprep.subr.bf16.mxu0 0
      %3182 = vmatpush1.bf16.msra.mxu0 0
      %3183 = vmatprep.subr.bf16.mxu0 0
      %3184 = vmatpush1.bf16.msra.mxu0 0
      %3185 = vmatprep.mubr.bf16.mxu0 0
      %3186 = vmatmul.mubr.bf16.gmra.mrb[0].mxu0 %v3058
      %v3187 = vpop.f32.mrb[0].mxu0
      %v3188 = vadd.f32 %v2865, %v3187
      %v3189 = vpop.f32.mrb[0].mxu0
      %v3190 = vpop.f32.mrb[0].mxu0
      %v3191 = vadd.f32 %v2867, %v3190
      %v3192 = vpop.f32.mrb[0].mxu0
      %3193 = vmatprep.mubr.bf16.mxu0 0
      %3194 = vmatmul.mubr.bf16.gmra.mrb[0].mxu0 %v3061
      %v3195 = vpop.f32.mrb[0].mxu0
      %v3196 = vadd.f32 %v2869, %v3195
      %v3197 = vpop.f32.mrb[0].mxu0
      %v3198 = vpop.f32.mrb[0].mxu0
      %v3199 = vadd.f32 %v2871, %v3198
      %v3200 = vpop.f32.mrb[0].mxu0
      %3201 = vmatprep.mubr.bf16.mxu0 0
      %3202 = vmatmul.mubr.bf16.gmra.mrb[0].mxu0 %v3064
      %v3203 = vpop.f32.mrb[0].mxu0
      %v3204 = vadd.f32 %v2873, %v3203
      %v3205 = vpop.f32.mrb[0].mxu0
      %v3206 = vpop.f32.mrb[0].mxu0
      %v3207 = vadd.f32 %v2875, %v3206
      %v3208 = vpop.f32.mrb[0].mxu0
      %3209 = vmatprep.mubr.bf16.mxu0 0
      %3210 = vmatmul.mubr.bf16.gmra.mrb[0].mxu0 %v3067
      %v3211 = vpop.f32.mrb[0].mxu0
      %v3212 = vadd.f32 %v2877, %v3211
      %v3213 = vpop.f32.mrb[0].mxu0
      %v3214 = vpop.f32.mrb[0].mxu0
      %v3215 = vadd.f32 %v2879, %v3214
      %v3216 = vpop.f32.mrb[0].mxu0
      %3217 = vmatprep.mubr.bf16.mxu0 0
      %3218 = vmatmul.mubr.bf16.gmra.mrb[0].mxu0 %v3070
      %v3219 = vpop.f32.mrb[0].mxu0
      %v3220 = vadd.f32 %v2881, %v3219
      %v3221 = vpop.f32.mrb[0].mxu0
      %v3222 = vpop.f32.mrb[0].mxu0
      %v3223 = vadd.f32 %v2883, %v3222
      %v3224 = vpop.f32.mrb[0].mxu0
      %3225 = vmatprep.mubr.bf16.mxu0 0
      %3226 = vmatmul.mubr.bf16.gmra.mrb[0].mxu0 %v3073
      %v3227 = vpop.f32.mrb[0].mxu0
      %v3228 = vadd.f32 %v2885, %v3227
      %v3229 = vpop.f32.mrb[0].mxu0
      %v3230 = vpop.f32.mrb[0].mxu0
      %v3231 = vadd.f32 %v2887, %v3230
      %v3232 = vpop.f32.mrb[0].mxu0
      %3233 = vmatprep.mubr.bf16.mxu0 0
      %3234 = vmatmul.mubr.bf16.gmra.mrb[0].mxu0 %v3076
      %v3235 = vpop.f32.mrb[0].mxu0
      %v3236 = vadd.f32 %v2889, %v3235
      %v3237 = vpop.f32.mrb[0].mxu0
      %v3238 = vpop.f32.mrb[0].mxu0
      %v3239 = vadd.f32 %v2891, %v3238
      %v3240 = vpop.f32.mrb[0].mxu0
      %3241 = vmatprep.mubr.bf16.mxu0 0
      %3242 = vmatmul.mubr.bf16.gmra.mrb[0].mxu0 %v3079
      %v3243 = vpop.f32.mrb[0].mxu0
      %v3244 = vadd.f32 %v2893, %v3243
      %v3245 = vpop.f32.mrb[0].mxu0
      %v3246 = vpop.f32.mrb[0].mxu0
      %v3247 = vadd.f32 %v2895, %v3246
      %v3248 = vpop.f32.mrb[0].mxu0
      %3249 = vmatprep.mubr.bf16.mxu0 0
      %3250 = vmatmul.mubr.bf16.gmra.mrb[0].mxu0 %v3082
      %v3251 = vpop.f32.mrb[0].mxu0
      %v3252 = vadd.f32 %v2897, %v3251
      %v3253 = vpop.f32.mrb[0].mxu0
      %v3254 = vpop.f32.mrb[0].mxu0
      %v3255 = vadd.f32 %v2899, %v3254
      %v3256 = vpop.f32.mrb[0].mxu0
      %3257 = vmatprep.mubr.bf16.mxu0 0
      %3258 = vmatmul.mubr.bf16.gmra.mrb[0].mxu0 %v3085
      %v3259 = vpop.f32.mrb[0].mxu0
      %v3260 = vadd.f32 %v2901, %v3259
      %v3261 = vpop.f32.mrb[0].mxu0
      %v3262 = vpop.f32.mrb[0].mxu0
      %v3263 = vadd.f32 %v2903, %v3262
      %v3264 = vpop.f32.mrb[0].mxu0
      %3265 = vmatprep.mubr.bf16.mxu0 0
      %3266 = vmatmul.mubr.bf16.gmra.mrb[0].mxu0 %v3088
      %v3267 = vpop.f32.mrb[0].mxu0
      %v3268 = vadd.f32 %v2905, %v3267
      %v3269 = vpop.f32.mrb[0].mxu0
      %v3270 = vpop.f32.mrb[0].mxu0
      %v3271 = vadd.f32 %v2907, %v3270
      %v3272 = vpop.f32.mrb[0].mxu0
      %3273 = vmatprep.mubr.bf16.mxu0 0
      %3274 = vmatmul.mubr.bf16.gmra.mrb[0].mxu0 %v3091
      %v3275 = vpop.f32.mrb[0].mxu0
      %v3276 = vadd.f32 %v2909, %v3275
      %v3277 = vpop.f32.mrb[0].mxu0
      %v3278 = vpop.f32.mrb[0].mxu0
      %v3279 = vadd.f32 %v2911, %v3278
      %v3280 = vpop.f32.mrb[0].mxu0
      %3281 = vmatprep.mubr.bf16.mxu0 0
      %3282 = vmatmul.mubr.bf16.gmra.mrb[0].mxu0 %v3094
      %v3283 = vpop.f32.mrb[0].mxu0
      %v3284 = vadd.f32 %v2913, %v3283
      %v3285 = vpop.f32.mrb[0].mxu0
      %v3286 = vpop.f32.mrb[0].mxu0
      %v3287 = vadd.f32 %v2915, %v3286
      %v3288 = vpop.f32.mrb[0].mxu0
      %3289 = vmatprep.mubr.bf16.mxu0 0
      %3290 = vmatmul.mubr.bf16.gmra.mrb[0].mxu0 %v3097
      %v3291 = vpop.f32.mrb[0].mxu0
      %v3292 = vadd.f32 %v2917, %v3291
      %v3293 = vpop.f32.mrb[0].mxu0
      %v3294 = vpop.f32.mrb[0].mxu0
      %v3295 = vadd.f32 %v2919, %v3294
      %v3296 = vpop.f32.mrb[0].mxu0
      %3297 = vmatprep.mubr.bf16.mxu0 0
      %3298 = vmatmul.mubr.bf16.gmra.mrb[0].mxu0 %v3100
      %v3299 = vpop.f32.mrb[0].mxu0
      %v3300 = vadd.f32 %v2921, %v3299
      %v3301 = vpop.f32.mrb[0].mxu0
      %v3302 = vpop.f32.mrb[0].mxu0
      %v3303 = vadd.f32 %v2923, %v3302
      %v3304 = vpop.f32.mrb[0].mxu0
      %3305 = vmatprep.mubr.bf16.mxu0 0
      %3306 = vmatmul.mubr.bf16.gmra.mrb[0].mxu0 %v3103
      %v3307 = vpop.f32.mrb[0].mxu0
      %v3308 = vadd.f32 %v2925, %v3307
      %v3309 = vpop.f32.mrb[0].mxu0
      %v3310 = vpop.f32.mrb[0].mxu0
      %v3311 = vadd.f32 %v2927, %v3310
      %v3312 = vpop.f32.mrb[0].mxu0
      %3313 = vmatprep.mubr.bf16.mxu0 0
      %3314 = vmatmul.mubr.bf16.gmra.mrb[0].mxu0 %v3106
      %v3315 = vpop.f32.mrb[0].mxu0
      %v3316 = vadd.f32 %v2929, %v3315
      %v3317 = vpop.f32.mrb[0].mxu0
      %v3318 = vpop.f32.mrb[0].mxu0
      %v3319 = vadd.f32 %v2931, %v3318
      %v3320 = vpop.f32.mrb[0].mxu0
      %3321 = vmatprep.mubr.bf16.mxu0 0
      %3322 = vmatmul.mubr.bf16.gmra.mrb[0].mxu0 %v3109
      %v3323 = vpop.f32.mrb[0].mxu0
      %v3324 = vadd.f32 %v2933, %v3323
      %v3325 = vpop.f32.mrb[0].mxu0
      %v3326 = vpop.f32.mrb[0].mxu0
      %v3327 = vadd.f32 %v2935, %v3326
      %v3328 = vpop.f32.mrb[0].mxu0
      %3329 = vmatprep.mubr.bf16.mxu0 0
      %3330 = vmatmul.mubr.bf16.gmra.mrb[0].mxu0 %v3112
      %v3331 = vpop.f32.mrb[0].mxu0
      %v3332 = vadd.f32 %v2937, %v3331
      %v3333 = vpop.f32.mrb[0].mxu0
      %v3334 = vpop.f32.mrb[0].mxu0
      %v3335 = vadd.f32 %v2939, %v3334
      %v3336 = vpop.f32.mrb[0].mxu0
      %3337 = vmatprep.mubr.bf16.mxu0 0
      %3338 = vmatmul.mubr.bf16.gmra.mrb[0].mxu0 %v3115
      %v3339 = vpop.f32.mrb[0].mxu0
      %v3340 = vadd.f32 %v2941, %v3339
      %v3341 = vpop.f32.mrb[0].mxu0
      %v3342 = vpop.f32.mrb[0].mxu0
      %v3343 = vadd.f32 %v2943, %v3342
      %v3344 = vpop.f32.mrb[0].mxu0
      %3345 = vmatprep.mubr.bf16.mxu0 0
      %3346 = vmatmul.mubr.bf16.gmra.mrb[0].mxu0 %v3118
      %v3347 = vpop.f32.mrb[0].mxu0
      %v3348 = vadd.f32 %v2945, %v3347
      %v3349 = vpop.f32.mrb[0].mxu0
      %v3350 = vpop.f32.mrb[0].mxu0
      %v3351 = vadd.f32 %v2947, %v3350
      %v3352 = vpop.f32.mrb[0].mxu0
      %3353 = vmatprep.mubr.bf16.mxu0 0
      %3354 = vmatmul.mubr.bf16.gmra.mrb[0].mxu0 %v3121
      %v3355 = vpop.f32.mrb[0].mxu0
      %v3356 = vadd.f32 %v2949, %v3355
      %v3357 = vpop.f32.mrb[0].mxu0
      %v3358 = vpop.f32.mrb[0].mxu0
      %v3359 = vadd.f32 %v2951, %v3358
      %v3360 = vpop.f32.mrb[0].mxu0
      %3361 = vmatprep.mubr.bf16.mxu0 0
      %3362 = vmatmul.mubr.bf16.gmra.mrb[0].mxu0 %v3124
      %v3363 = vpop.f32.mrb[0].mxu0
      %v3364 = vadd.f32 %v2953, %v3363
      %v3365 = vpop.f32.mrb[0].mxu0
      %v3366 = vpop.f32.mrb[0].mxu0
      %v3367 = vadd.f32 %v2955, %v3366
      %v3368 = vpop.f32.mrb[0].mxu0
      %3369 = vmatprep.mubr.bf16.mxu0 0
      %3370 = vmatmul.mubr.bf16.gmra.mrb[0].mxu0 %v3127
      %v3371 = vpop.f32.mrb[0].mxu0
      %v3372 = vadd.f32 %v2957, %v3371
      %v3373 = vpop.f32.mrb[0].mxu0
      %v3374 = vpop.f32.mrb[0].mxu0
      %v3375 = vadd.f32 %v2959, %v3374
      %v3376 = vpop.f32.mrb[0].mxu0
      %3377 = vmatprep.mubr.bf16.mxu0 0
      %3378 = vmatmul.mubr.bf16.gmra.mrb[0].mxu0 %v3130
      %v3379 = vpop.f32.mrb[0].mxu0
      %v3380 = vadd.f32 %v2961, %v3379
      %v3381 = vpop.f32.mrb[0].mxu0
      %v3382 = vpop.f32.mrb[0].mxu0
      %v3383 = vadd.f32 %v2963, %v3382
      %v3384 = vpop.f32.mrb[0].mxu0
      %3385 = vmatprep.mubr.bf16.mxu0 0
      %3386 = vmatmul.mubr.bf16.gmra.mrb[0].mxu0 %v3133
      %v3387 = vpop.f32.mrb[0].mxu0
      %v3388 = vadd.f32 %v2965, %v3387
      %v3389 = vpop.f32.mrb[0].mxu0
      %v3390 = vpop.f32.mrb[0].mxu0
      %v3391 = vadd.f32 %v2967, %v3390
      %v3392 = vpop.f32.mrb[0].mxu0
      %3393 = vmatprep.mubr.bf16.mxu0 0
      %3394 = vmatmul.mubr.bf16.gmra.mrb[0].mxu0 %v3136
      %v3395 = vpop.f32.mrb[0].mxu0
      %v3396 = vadd.f32 %v2969, %v3395
      %v3397 = vpop.f32.mrb[0].mxu0
      %v3398 = vpop.f32.mrb[0].mxu0
      %v3399 = vadd.f32 %v2971, %v3398
      %v3400 = vpop.f32.mrb[0].mxu0
      %3401 = vmatprep.mubr.bf16.mxu0 0
      %3402 = vmatmul.mubr.bf16.gmra.mrb[0].mxu0 %v3139
      %v3403 = vpop.f32.mrb[0].mxu0
      %v3404 = vadd.f32 %v2973, %v3403
      %v3405 = vpop.f32.mrb[0].mxu0
      %v3406 = vpop.f32.mrb[0].mxu0
      %v3407 = vadd.f32 %v2975, %v3406
      %v3408 = vpop.f32.mrb[0].mxu0
      %3409 = vmatprep.mubr.bf16.mxu0 0
      %3410 = vmatmul.mubr.bf16.gmra.mrb[0].mxu0 %v3142
      %v3411 = vpop.f32.mrb[0].mxu0
      %v3412 = vadd.f32 %v2977, %v3411
      %v3413 = vpop.f32.mrb[0].mxu0
      %v3414 = vpop.f32.mrb[0].mxu0
      %v3415 = vadd.f32 %v2979, %v3414
      %v3416 = vpop.f32.mrb[0].mxu0
      %3417 = vmatprep.mubr.bf16.mxu0 0
      %3418 = vmatmul.mubr.bf16.gmra.mrb[0].mxu0 %v3145
      %v3419 = vpop.f32.mrb[0].mxu0
      %v3420 = vadd.f32 %v2981, %v3419
      %v3421 = vpop.f32.mrb[0].mxu0
      %v3422 = vpop.f32.mrb[0].mxu0
      %v3423 = vadd.f32 %v2983, %v3422
      %v3424 = vpop.f32.mrb[0].mxu0
      %3425 = vmatprep.mubr.bf16.mxu0 0
      %3426 = vmatmul.mubr.bf16.gmra.mrb[0].mxu0 %v3148
      %v3427 = vpop.f32.mrb[0].mxu0
      %v3428 = vadd.f32 %v2985, %v3427
      %v3429 = vpop.f32.mrb[0].mxu0
      %v3430 = vpop.f32.mrb[0].mxu0
      %v3431 = vadd.f32 %v2987, %v3430
      %v3432 = vpop.f32.mrb[0].mxu0
      %3433 = vmatprep.mubr.bf16.mxu0 0
      %3434 = vmatmul.mubr.bf16.gmra.mrb[0].mxu0 %v3151
      %v3435 = vpop.f32.mrb[0].mxu0
      %v3436 = vadd.f32 %v2989, %v3435
      %v3437 = vpop.f32.mrb[0].mxu0
      %v3438 = vpop.f32.mrb[0].mxu0
      %v3439 = vadd.f32 %v2991, %v3438
      %v3440 = vpop.f32.mrb[0].mxu0
      %3441 = vdwg.mxu0
      %v3442 = vld [vmem:[%s6] sm:$0x1]
      %v3444 = vlaneseq
      %v3445 = vshrl.u32 %v3444, 7
      %v3446 = vsub.s32 0, %v3445
      %v3447 = vrot.slane %v3442, %v3446
      %v3449 = vadd.f32 %v3188, %v3447
      %v3450 = vadd.f32 %v3191, %v3447
      %v3451 = vadd.f32 %v3196, %v3447
      %v3452 = vadd.f32 %v3199, %v3447
      %v3453 = vadd.f32 %v3204, %v3447
      %v3454 = vadd.f32 %v3207, %v3447
      %v3455 = vadd.f32 %v3212, %v3447
      %v3456 = vadd.f32 %v3215, %v3447
      %v3457 = vadd.f32 %v3220, %v3447
      %v3458 = vadd.f32 %v3223, %v3447
      %v3459 = vadd.f32 %v3228, %v3447
      %v3460 = vadd.f32 %v3231, %v3447
      %v3461 = vadd.f32 %v3236, %v3447
      %v3462 = vadd.f32 %v3239, %v3447
      %v3463 = vadd.f32 %v3244, %v3447
      %v3464 = vadd.f32 %v3247, %v3447
      %v3465 = vadd.f32 %v3252, %v3447
      %v3466 = vadd.f32 %v3255, %v3447
      %v3467 = vadd.f32 %v3260, %v3447
      %v3468 = vadd.f32 %v3263, %v3447
      %v3469 = vadd.f32 %v3268, %v3447
      %v3470 = vadd.f32 %v3271, %v3447
      %v3471 = vadd.f32 %v3276, %v3447
      %v3472 = vadd.f32 %v3279, %v3447
      %v3473 = vadd.f32 %v3284, %v3447
      %v3474 = vadd.f32 %v3287, %v3447
      %v3475 = vadd.f32 %v3292, %v3447
      %v3476 = vadd.f32 %v3295, %v3447
      %v3477 = vadd.f32 %v3300, %v3447
      %v3478 = vadd.f32 %v3303, %v3447
      %v3479 = vadd.f32 %v3308, %v3447
      %v3480 = vadd.f32 %v3311, %v3447
      %v3481 = vadd.f32 %v3316, %v3447
      %v3482 = vadd.f32 %v3319, %v3447
      %v3483 = vadd.f32 %v3324, %v3447
      %v3484 = vadd.f32 %v3327, %v3447
      %v3485 = vadd.f32 %v3332, %v3447
      %v3486 = vadd.f32 %v3335, %v3447
      %v3487 = vadd.f32 %v3340, %v3447
      %v3488 = vadd.f32 %v3343, %v3447
      %v3489 = vadd.f32 %v3348, %v3447
      %v3490 = vadd.f32 %v3351, %v3447
      %v3491 = vadd.f32 %v3356, %v3447
      %v3492 = vadd.f32 %v3359, %v3447
      %v3493 = vadd.f32 %v3364, %v3447
      %v3494 = vadd.f32 %v3367, %v3447
      %v3495 = vadd.f32 %v3372, %v3447
      %v3496 = vadd.f32 %v3375, %v3447
      %v3497 = vadd.f32 %v3380, %v3447
      %v3498 = vadd.f32 %v3383, %v3447
      %v3499 = vadd.f32 %v3388, %v3447
      %v3500 = vadd.f32 %v3391, %v3447
      %v3501 = vadd.f32 %v3396, %v3447
      %v3502 = vadd.f32 %v3399, %v3447
      %v3503 = vadd.f32 %v3404, %v3447
      %v3504 = vadd.f32 %v3407, %v3447
      %v3505 = vadd.f32 %v3412, %v3447
      %v3506 = vadd.f32 %v3415, %v3447
      %v3507 = vadd.f32 %v3420, %v3447
      %v3508 = vadd.f32 %v3423, %v3447
      %v3509 = vadd.f32 %v3428, %v3447
      %v3510 = vadd.f32 %v3431, %v3447
      %v3511 = vadd.f32 %v3436, %v3447
      %v3512 = vadd.f32 %v3439, %v3447
      %v3513 = vmax.f32 %v3449, 0.0
      %v3514 = vmax.f32 %v3450, 0.0
      %v3515 = vmax.f32 %v3451, 0.0
      %v3516 = vmax.f32 %v3452, 0.0
      %v3517 = vmax.f32 %v3453, 0.0
      %v3518 = vmax.f32 %v3454, 0.0
      %v3519 = vmax.f32 %v3455, 0.0
      %v3520 = vmax.f32 %v3456, 0.0
      %v3521 = vmax.f32 %v3457, 0.0
      %v3522 = vmax.f32 %v3458, 0.0
      %v3523 = vmax.f32 %v3459, 0.0
      %v3524 = vmax.f32 %v3460, 0.0
      %v3525 = vmax.f32 %v3461, 0.0
      %v3526 = vmax.f32 %v3462, 0.0
      %v3527 = vmax.f32 %v3463, 0.0
      %v3528 = vmax.f32 %v3464, 0.0
      %v3529 = vmax.f32 %v3465, 0.0
      %v3530 = vmax.f32 %v3466, 0.0
      %v3531 = vmax.f32 %v3467, 0.0
      %v3532 = vmax.f32 %v3468, 0.0
      %v3533 = vmax.f32 %v3469, 0.0
      %v3534 = vmax.f32 %v3470, 0.0
      %v3535 = vmax.f32 %v3471, 0.0
      %v3536 = vmax.f32 %v3472, 0.0
      %v3537 = vmax.f32 %v3473, 0.0
      %v3538 = vmax.f32 %v3474, 0.0
      %v3539 = vmax.f32 %v3475, 0.0
      %v3540 = vmax.f32 %v3476, 0.0
      %v3541 = vmax.f32 %v3477, 0.0
      %v3542 = vmax.f32 %v3478, 0.0
      %v3543 = vmax.f32 %v3479, 0.0
      %v3544 = vmax.f32 %v3480, 0.0
      %v3545 = vmax.f32 %v3481, 0.0
      %v3546 = vmax.f32 %v3482, 0.0
      %v3547 = vmax.f32 %v3483, 0.0
      %v3548 = vmax.f32 %v3484, 0.0
      %v3549 = vmax.f32 %v3485, 0.0
      %v3550 = vmax.f32 %v3486, 0.0
      %v3551 = vmax.f32 %v3487, 0.0
      %v3552 = vmax.f32 %v3488, 0.0
      %v3553 = vmax.f32 %v3489, 0.0
      %v3554 = vmax.f32 %v3490, 0.0
      %v3555 = vmax.f32 %v3491, 0.0
      %v3556 = vmax.f32 %v3492, 0.0
      %v3557 = vmax.f32 %v3493, 0.0
      %v3558 = vmax.f32 %v3494, 0.0
      %v3559 = vmax.f32 %v3495, 0.0
      %v3560 = vmax.f32 %v3496, 0.0
      %v3561 = vmax.f32 %v3497, 0.0
      %v3562 = vmax.f32 %v3498, 0.0
      %v3563 = vmax.f32 %v3499, 0.0
      %v3564 = vmax.f32 %v3500, 0.0
      %v3565 = vmax.f32 %v3501, 0.0
      %v3566 = vmax.f32 %v3502, 0.0
      %v3567 = vmax.f32 %v3503, 0.0
      %v3568 = vmax.f32 %v3504, 0.0
      %v3569 = vmax.f32 %v3505, 0.0
      %v3570 = vmax.f32 %v3506, 0.0
      %v3571 = vmax.f32 %v3507, 0.0
      %v3572 = vmax.f32 %v3508, 0.0
      %v3573 = vmax.f32 %v3509, 0.0
      %v3574 = vmax.f32 %v3510, 0.0
      %v3575 = vmax.f32 %v3511, 0.0
      %v3576 = vmax.f32 %v3512, 0.0
      %v3577 = vpack.c.bf16 %v3514, %v3513
      %v3578 = vpack.c.bf16 %v3516, %v3515
      %v3579 = vpack.c.bf16 %v3518, %v3517
      %v3580 = vpack.c.bf16 %v3520, %v3519
      %v3581 = vpack.c.bf16 %v3522, %v3521
      %v3582 = vpack.c.bf16 %v3524, %v3523
      %v3583 = vpack.c.bf16 %v3526, %v3525
      %v3584 = vpack.c.bf16 %v3528, %v3527
      %v3585 = vpack.c.bf16 %v3530, %v3529
      %v3586 = vpack.c.bf16 %v3532, %v3531
      %v3587 = vpack.c.bf16 %v3534, %v3533
      %v3588 = vpack.c.bf16 %v3536, %v3535
      %v3589 = vpack.c.bf16 %v3538, %v3537
      %v3590 = vpack.c.bf16 %v3540, %v3539
      %v3591 = vpack.c.bf16 %v3542, %v3541
      %v3592 = vpack.c.bf16 %v3544, %v3543
      %v3593 = vpack.c.bf16 %v3546, %v3545
      %v3594 = vpack.c.bf16 %v3548, %v3547
      %v3595 = vpack.c.bf16 %v3550, %v3549
      %v3596 = vpack.c.bf16 %v3552, %v3551
      %v3597 = vpack.c.bf16 %v3554, %v3553
      %v3598 = vpack.c.bf16 %v3556, %v3555
      %v3599 = vpack.c.bf16 %v3558, %v3557
      %v3600 = vpack.c.bf16 %v3560, %v3559
      %v3601 = vpack.c.bf16 %v3562, %v3561
      %v3602 = vpack.c.bf16 %v3564, %v3563
      %v3603 = vpack.c.bf16 %v3566, %v3565
      %v3604 = vpack.c.bf16 %v3568, %v3567
      %v3605 = vpack.c.bf16 %v3570, %v3569
      %v3606 = vpack.c.bf16 %v3572, %v3571
      %v3607 = vpack.c.bf16 %v3574, %v3573
      %v3608 = vpack.c.bf16 %v3576, %v3575
      %v3609 = vld [vmem:[%s10] sm:$0xf]
      %v3610 = vld [vmem:[%s10 + $0x4] sm:$0xf]
      %v3611 = vld [vmem:[%s10 + $0x8] sm:$0xf]
      %v3612 = vld [vmem:[%s10 + $0xc] sm:$0xf]
      %v3613 = vld [vmem:[%s11] sm:$0x1]
      %v3615 = vlaneseq
      %v3616 = vshrl.u32 %v3615, 7
      %v3617 = vsub.s32 0, %v3616
      %v3618 = vrot.slane %v3613, %v3617
      %v3624 = vunpack.c.l.b16 %v3609
      %v3625 = vunpack.c.l.b16 %v3610
      %v3626 = vunpack.c.l.b16 %v3611
      %v3627 = vunpack.c.l.b16 %v3612
      %v3628 = vpack.c.b16 %v3625, %v3624
      %v3629 = vpack.c.b16 %v3627, %v3626
      %v3633 = vsel %vm1734, %v3577, 0
      %v3636 = vsel %vm1734, %v3578, 0
      %v3639 = vsel %vm1734, %v3579, 0
      %v3642 = vsel %vm1734, %v3580, 0
      %v3645 = vsel %vm1734, %v3581, 0
      %v3648 = vsel %vm1734, %v3582, 0
      %v3651 = vsel %vm1734, %v3583, 0
      %v3654 = vsel %vm1734, %v3584, 0
      %v3657 = vsel %vm1734, %v3585, 0
      %v3660 = vsel %vm1734, %v3586, 0
      %v3663 = vsel %vm1734, %v3587, 0
      %v3666 = vsel %vm1734, %v3588, 0
      %v3669 = vsel %vm1734, %v3589, 0
      %v3672 = vsel %vm1734, %v3590, 0
      %v3675 = vsel %vm1734, %v3591, 0
      %v3678 = vsel %vm1734, %v3592, 0
      %v3681 = vsel %vm1734, %v3593, 0
      %v3684 = vsel %vm1734, %v3594, 0
      %v3687 = vsel %vm1734, %v3595, 0
      %v3690 = vsel %vm1734, %v3596, 0
      %v3693 = vsel %vm1734, %v3597, 0
      %v3696 = vsel %vm1734, %v3598, 0
      %v3699 = vsel %vm1734, %v3599, 0
      %v3702 = vsel %vm1734, %v3600, 0
      %v3705 = vsel %vm1734, %v3601, 0
      %v3708 = vsel %vm1734, %v3602, 0
      %v3711 = vsel %vm1734, %v3603, 0
      %v3714 = vsel %vm1734, %v3604, 0
      %v3717 = vsel %vm1734, %v3605, 0
      %v3720 = vsel %vm1734, %v3606, 0
      %v3723 = vsel %vm1734, %v3607, 0
      %v3726 = vsel %vm1734, %v3608, 0
      %3728 = vmatprep.subr.bf16.mxu0 0
      %3729 = vmatpush1.bf16.msra.mxu0 %v3628
      %3730 = vmatprep.subr.bf16.mxu0 0
      %3731 = vmatpush1.bf16.msra.mxu0 %v3629
      %3732 = vmatprep.subr.bf16.mxu0 0
      %3733 = vmatpush1.bf16.msra.mxu0 0
      %3734 = vmatprep.subr.bf16.mxu0 0
      %3735 = vmatpush1.bf16.msra.mxu0 0
      %3736 = vmatprep.subr.bf16.mxu0 0
      %3737 = vmatpush1.bf16.msra.mxu0 0
      %3738 = vmatprep.subr.bf16.mxu0 0
      %3739 = vmatpush1.bf16.msra.mxu0 0
      %3740 = vmatprep.subr.bf16.mxu0 0
      %3741 = vmatpush1.bf16.msra.mxu0 0
      %3742 = vmatprep.subr.bf16.mxu0 0
      %3743 = vmatpush1.bf16.msra.mxu0 0
      %3744 = vmatprep.subr.bf16.mxu0 0
      %3745 = vmatpush1.bf16.msra.mxu0 0
      %3746 = vmatprep.subr.bf16.mxu0 0
      %3747 = vmatpush1.bf16.msra.mxu0 0
      %3748 = vmatprep.subr.bf16.mxu0 0
      %3749 = vmatpush1.bf16.msra.mxu0 0
      %3750 = vmatprep.subr.bf16.mxu0 0
      %3751 = vmatpush1.bf16.msra.mxu0 0
      %3752 = vmatprep.subr.bf16.mxu0 0
      %3753 = vmatpush1.bf16.msra.mxu0 0
      %3754 = vmatprep.subr.bf16.mxu0 0
      %3755 = vmatpush1.bf16.msra.mxu0 0
      %3756 = vmatprep.subr.bf16.mxu0 0
      %3757 = vmatpush1.bf16.msra.mxu0 0
      %3758 = vmatprep.subr.bf16.mxu0 0
      %3759 = vmatpush1.bf16.msra.mxu0 0
      %3760 = vmatprep.mubr.bf16.mxu0 0
      %3761 = vmatmul.mubr.bf16.gmra.mrb[0].mxu0 %v3633
      %v3762 = vpop.f32.mrb[0].mxu0
      %v3763 = vadd.f32 %v3618, %v3762
      %v3764 = vpop.f32.mrb[0].mxu0
      %v3765 = vpop.f32.mrb[0].mxu0
      %v3766 = vadd.f32 %v3618, %v3765
      %v3767 = vpop.f32.mrb[0].mxu0
      %3768 = vmatprep.mubr.bf16.mxu0 0
      %3769 = vmatmul.mubr.bf16.gmra.mrb[0].mxu0 %v3636
      %v3770 = vpop.f32.mrb[0].mxu0
      %v3771 = vadd.f32 %v3618, %v3770
      %v3772 = vpop.f32.mrb[0].mxu0
      %v3773 = vpop.f32.mrb[0].mxu0
      %v3774 = vadd.f32 %v3618, %v3773
      %v3775 = vpop.f32.mrb[0].mxu0
      %3776 = vmatprep.mubr.bf16.mxu0 0
      %3777 = vmatmul.mubr.bf16.gmra.mrb[0].mxu0 %v3639
      %v3778 = vpop.f32.mrb[0].mxu0
      %v3779 = vadd.f32 %v3618, %v3778
      %v3780 = vpop.f32.mrb[0].mxu0
      %v3781 = vpop.f32.mrb[0].mxu0
      %v3782 = vadd.f32 %v3618, %v3781
      %v3783 = vpop.f32.mrb[0].mxu0
      %3784 = vmatprep.mubr.bf16.mxu0 0
      %3785 = vmatmul.mubr.bf16.gmra.mrb[0].mxu0 %v3642
      %v3786 = vpop.f32.mrb[0].mxu0
      %v3787 = vadd.f32 %v3618, %v3786
      %v3788 = vpop.f32.mrb[0].mxu0
      %v3789 = vpop.f32.mrb[0].mxu0
      %v3790 = vadd.f32 %v3618, %v3789
      %v3791 = vpop.f32.mrb[0].mxu0
      %3792 = vmatprep.mubr.bf16.mxu0 0
      %3793 = vmatmul.mubr.bf16.gmra.mrb[0].mxu0 %v3645
      %v3794 = vpop.f32.mrb[0].mxu0
      %v3795 = vadd.f32 %v3618, %v3794
      %v3796 = vpop.f32.mrb[0].mxu0
      %v3797 = vpop.f32.mrb[0].mxu0
      %v3798 = vadd.f32 %v3618, %v3797
      %v3799 = vpop.f32.mrb[0].mxu0
      %3800 = vmatprep.mubr.bf16.mxu0 0
      %3801 = vmatmul.mubr.bf16.gmra.mrb[0].mxu0 %v3648
      %v3802 = vpop.f32.mrb[0].mxu0
      %v3803 = vadd.f32 %v3618, %v3802
      %v3804 = vpop.f32.mrb[0].mxu0
      %v3805 = vpop.f32.mrb[0].mxu0
      %v3806 = vadd.f32 %v3618, %v3805
      %v3807 = vpop.f32.mrb[0].mxu0
      %3808 = vmatprep.mubr.bf16.mxu0 0
      %3809 = vmatmul.mubr.bf16.gmra.mrb[0].mxu0 %v3651
      %v3810 = vpop.f32.mrb[0].mxu0
      %v3811 = vadd.f32 %v3618, %v3810
      %v3812 = vpop.f32.mrb[0].mxu0
      %v3813 = vpop.f32.mrb[0].mxu0
      %v3814 = vadd.f32 %v3618, %v3813
      %v3815 = vpop.f32.mrb[0].mxu0
      %3816 = vmatprep.mubr.bf16.mxu0 0
      %3817 = vmatmul.mubr.bf16.gmra.mrb[0].mxu0 %v3654
      %v3818 = vpop.f32.mrb[0].mxu0
      %v3819 = vadd.f32 %v3618, %v3818
      %v3820 = vpop.f32.mrb[0].mxu0
      %v3821 = vpop.f32.mrb[0].mxu0
      %v3822 = vadd.f32 %v3618, %v3821
      %v3823 = vpop.f32.mrb[0].mxu0
      %3824 = vmatprep.mubr.bf16.mxu0 0
      %3825 = vmatmul.mubr.bf16.gmra.mrb[0].mxu0 %v3657
      %v3826 = vpop.f32.mrb[0].mxu0
      %v3827 = vadd.f32 %v3618, %v3826
      %v3828 = vpop.f32.mrb[0].mxu0
      %v3829 = vpop.f32.mrb[0].mxu0
      %v3830 = vadd.f32 %v3618, %v3829
      %v3831 = vpop.f32.mrb[0].mxu0
      %3832 = vmatprep.mubr.bf16.mxu0 0
      %3833 = vmatmul.mubr.bf16.gmra.mrb[0].mxu0 %v3660
      %v3834 = vpop.f32.mrb[0].mxu0
      %v3835 = vadd.f32 %v3618, %v3834
      %v3836 = vpop.f32.mrb[0].mxu0
      %v3837 = vpop.f32.mrb[0].mxu0
      %v3838 = vadd.f32 %v3618, %v3837
      %v3839 = vpop.f32.mrb[0].mxu0
      %3840 = vmatprep.mubr.bf16.mxu0 0
      %3841 = vmatmul.mubr.bf16.gmra.mrb[0].mxu0 %v3663
      %v3842 = vpop.f32.mrb[0].mxu0
      %v3843 = vadd.f32 %v3618, %v3842
      %v3844 = vpop.f32.mrb[0].mxu0
      %v3845 = vpop.f32.mrb[0].mxu0
      %v3846 = vadd.f32 %v3618, %v3845
      %v3847 = vpop.f32.mrb[0].mxu0
      %3848 = vmatprep.mubr.bf16.mxu0 0
      %3849 = vmatmul.mubr.bf16.gmra.mrb[0].mxu0 %v3666
      %v3850 = vpop.f32.mrb[0].mxu0
      %v3851 = vadd.f32 %v3618, %v3850
      %v3852 = vpop.f32.mrb[0].mxu0
      %v3853 = vpop.f32.mrb[0].mxu0
      %v3854 = vadd.f32 %v3618, %v3853
      %v3855 = vpop.f32.mrb[0].mxu0
      %3856 = vmatprep.mubr.bf16.mxu0 0
      %3857 = vmatmul.mubr.bf16.gmra.mrb[0].mxu0 %v3669
      %v3858 = vpop.f32.mrb[0].mxu0
      %v3859 = vadd.f32 %v3618, %v3858
      %v3860 = vpop.f32.mrb[0].mxu0
      %v3861 = vpop.f32.mrb[0].mxu0
      %v3862 = vadd.f32 %v3618, %v3861
      %v3863 = vpop.f32.mrb[0].mxu0
      %3864 = vmatprep.mubr.bf16.mxu0 0
      %3865 = vmatmul.mubr.bf16.gmra.mrb[0].mxu0 %v3672
      %v3866 = vpop.f32.mrb[0].mxu0
      %v3867 = vadd.f32 %v3618, %v3866
      %v3868 = vpop.f32.mrb[0].mxu0
      %v3869 = vpop.f32.mrb[0].mxu0
      %v3870 = vadd.f32 %v3618, %v3869
      %v3871 = vpop.f32.mrb[0].mxu0
      %3872 = vmatprep.mubr.bf16.mxu0 0
      %3873 = vmatmul.mubr.bf16.gmra.mrb[0].mxu0 %v3675
      %v3874 = vpop.f32.mrb[0].mxu0
      %v3875 = vadd.f32 %v3618, %v3874
      %v3876 = vpop.f32.mrb[0].mxu0
      %v3877 = vpop.f32.mrb[0].mxu0
      %v3878 = vadd.f32 %v3618, %v3877
      %v3879 = vpop.f32.mrb[0].mxu0
      %3880 = vmatprep.mubr.bf16.mxu0 0
      %3881 = vmatmul.mubr.bf16.gmra.mrb[0].mxu0 %v3678
      %v3882 = vpop.f32.mrb[0].mxu0
      %v3883 = vadd.f32 %v3618, %v3882
      %v3884 = vpop.f32.mrb[0].mxu0
      %v3885 = vpop.f32.mrb[0].mxu0
      %v3886 = vadd.f32 %v3618, %v3885
      %v3887 = vpop.f32.mrb[0].mxu0
      %3888 = vmatprep.mubr.bf16.mxu0 0
      %3889 = vmatmul.mubr.bf16.gmra.mrb[0].mxu0 %v3681
      %v3890 = vpop.f32.mrb[0].mxu0
      %v3891 = vadd.f32 %v3618, %v3890
      %v3892 = vpop.f32.mrb[0].mxu0
      %v3893 = vpop.f32.mrb[0].mxu0
      %v3894 = vadd.f32 %v3618, %v3893
      %v3895 = vpop.f32.mrb[0].mxu0
      %3896 = vmatprep.mubr.bf16.mxu0 0
      %3897 = vmatmul.mubr.bf16.gmra.mrb[0].mxu0 %v3684
      %v3898 = vpop.f32.mrb[0].mxu0
      %v3899 = vadd.f32 %v3618, %v3898
      %v3900 = vpop.f32.mrb[0].mxu0
      %v3901 = vpop.f32.mrb[0].mxu0
      %v3902 = vadd.f32 %v3618, %v3901
      %v3903 = vpop.f32.mrb[0].mxu0
      %3904 = vmatprep.mubr.bf16.mxu0 0
      %3905 = vmatmul.mubr.bf16.gmra.mrb[0].mxu0 %v3687
      %v3906 = vpop.f32.mrb[0].mxu0
      %v3907 = vadd.f32 %v3618, %v3906
      %v3908 = vpop.f32.mrb[0].mxu0
      %v3909 = vpop.f32.mrb[0].mxu0
      %v3910 = vadd.f32 %v3618, %v3909
      %v3911 = vpop.f32.mrb[0].mxu0
      %3912 = vmatprep.mubr.bf16.mxu0 0
      %3913 = vmatmul.mubr.bf16.gmra.mrb[0].mxu0 %v3690
      %v3914 = vpop.f32.mrb[0].mxu0
      %v3915 = vadd.f32 %v3618, %v3914
      %v3916 = vpop.f32.mrb[0].mxu0
      %v3917 = vpop.f32.mrb[0].mxu0
      %v3918 = vadd.f32 %v3618, %v3917
      %v3919 = vpop.f32.mrb[0].mxu0
      %3920 = vmatprep.mubr.bf16.mxu0 0
      %3921 = vmatmul.mubr.bf16.gmra.mrb[0].mxu0 %v3693
      %v3922 = vpop.f32.mrb[0].mxu0
      %v3923 = vadd.f32 %v3618, %v3922
      %v3924 = vpop.f32.mrb[0].mxu0
      %v3925 = vpop.f32.mrb[0].mxu0
      %v3926 = vadd.f32 %v3618, %v3925
      %v3927 = vpop.f32.mrb[0].mxu0
      %3928 = vmatprep.mubr.bf16.mxu0 0
      %3929 = vmatmul.mubr.bf16.gmra.mrb[0].mxu0 %v3696
      %v3930 = vpop.f32.mrb[0].mxu0
      %v3931 = vadd.f32 %v3618, %v3930
      %v3932 = vpop.f32.mrb[0].mxu0
      %v3933 = vpop.f32.mrb[0].mxu0
      %v3934 = vadd.f32 %v3618, %v3933
      %v3935 = vpop.f32.mrb[0].mxu0
      %3936 = vmatprep.mubr.bf16.mxu0 0
      %3937 = vmatmul.mubr.bf16.gmra.mrb[0].mxu0 %v3699
      %v3938 = vpop.f32.mrb[0].mxu0
      %v3939 = vadd.f32 %v3618, %v3938
      %v3940 = vpop.f32.mrb[0].mxu0
      %v3941 = vpop.f32.mrb[0].mxu0
      %v3942 = vadd.f32 %v3618, %v3941
      %v3943 = vpop.f32.mrb[0].mxu0
      %3944 = vmatprep.mubr.bf16.mxu0 0
      %3945 = vmatmul.mubr.bf16.gmra.mrb[0].mxu0 %v3702
      %v3946 = vpop.f32.mrb[0].mxu0
      %v3947 = vadd.f32 %v3618, %v3946
      %v3948 = vpop.f32.mrb[0].mxu0
      %v3949 = vpop.f32.mrb[0].mxu0
      %v3950 = vadd.f32 %v3618, %v3949
      %v3951 = vpop.f32.mrb[0].mxu0
      %3952 = vmatprep.mubr.bf16.mxu0 0
      %3953 = vmatmul.mubr.bf16.gmra.mrb[0].mxu0 %v3705
      %v3954 = vpop.f32.mrb[0].mxu0
      %v3955 = vadd.f32 %v3618, %v3954
      %v3956 = vpop.f32.mrb[0].mxu0
      %v3957 = vpop.f32.mrb[0].mxu0
      %v3958 = vadd.f32 %v3618, %v3957
      %v3959 = vpop.f32.mrb[0].mxu0
      %3960 = vmatprep.mubr.bf16.mxu0 0
      %3961 = vmatmul.mubr.bf16.gmra.mrb[0].mxu0 %v3708
      %v3962 = vpop.f32.mrb[0].mxu0
      %v3963 = vadd.f32 %v3618, %v3962
      %v3964 = vpop.f32.mrb[0].mxu0
      %v3965 = vpop.f32.mrb[0].mxu0
      %v3966 = vadd.f32 %v3618, %v3965
      %v3967 = vpop.f32.mrb[0].mxu0
      %3968 = vmatprep.mubr.bf16.mxu0 0
      %3969 = vmatmul.mubr.bf16.gmra.mrb[0].mxu0 %v3711
      %v3970 = vpop.f32.mrb[0].mxu0
      %v3971 = vadd.f32 %v3618, %v3970
      %v3972 = vpop.f32.mrb[0].mxu0
      %v3973 = vpop.f32.mrb[0].mxu0
      %v3974 = vadd.f32 %v3618, %v3973
      %v3975 = vpop.f32.mrb[0].mxu0
      %3976 = vmatprep.mubr.bf16.mxu0 0
      %3977 = vmatmul.mubr.bf16.gmra.mrb[0].mxu0 %v3714
      %v3978 = vpop.f32.mrb[0].mxu0
      %v3979 = vadd.f32 %v3618, %v3978
      %v3980 = vpop.f32.mrb[0].mxu0
      %v3981 = vpop.f32.mrb[0].mxu0
      %v3982 = vadd.f32 %v3618, %v3981
      %v3983 = vpop.f32.mrb[0].mxu0
      %3984 = vmatprep.mubr.bf16.mxu0 0
      %3985 = vmatmul.mubr.bf16.gmra.mrb[0].mxu0 %v3717
      %v3986 = vpop.f32.mrb[0].mxu0
      %v3987 = vadd.f32 %v3618, %v3986
      %v3988 = vpop.f32.mrb[0].mxu0
      %v3989 = vpop.f32.mrb[0].mxu0
      %v3990 = vadd.f32 %v3618, %v3989
      %v3991 = vpop.f32.mrb[0].mxu0
      %3992 = vmatprep.mubr.bf16.mxu0 0
      %3993 = vmatmul.mubr.bf16.gmra.mrb[0].mxu0 %v3720
      %v3994 = vpop.f32.mrb[0].mxu0
      %v3995 = vadd.f32 %v3618, %v3994
      %v3996 = vpop.f32.mrb[0].mxu0
      %v3997 = vpop.f32.mrb[0].mxu0
      %v3998 = vadd.f32 %v3618, %v3997
      %v3999 = vpop.f32.mrb[0].mxu0
      %4000 = vmatprep.mubr.bf16.mxu0 0
      %4001 = vmatmul.mubr.bf16.gmra.mrb[0].mxu0 %v3723
      %v4002 = vpop.f32.mrb[0].mxu0
      %v4003 = vadd.f32 %v3618, %v4002
      %v4004 = vpop.f32.mrb[0].mxu0
      %v4005 = vpop.f32.mrb[0].mxu0
      %v4006 = vadd.f32 %v3618, %v4005
      %v4007 = vpop.f32.mrb[0].mxu0
      %4008 = vmatprep.mubr.bf16.mxu0 0
      %4009 = vmatmul.mubr.bf16.gmra.mrb[0].mxu0 %v3726
      %v4010 = vpop.f32.mrb[0].mxu0
      %v4011 = vadd.f32 %v3618, %v4010
      %v4012 = vpop.f32.mrb[0].mxu0
      %v4013 = vpop.f32.mrb[0].mxu0
      %v4014 = vadd.f32 %v3618, %v4013
      %v4015 = vpop.f32.mrb[0].mxu0
      %4016 = vdwg.mxu0
      %4017 = vst.msk [vmem:[%s528] sm:$0xff] %vm1158, %v3763
      %4018 = vst.msk [vmem:[%s528 + $0x8] sm:$0xff] %vm1158, %v3766
      %4019 = vst.msk [vmem:[%s528 + $0x10] sm:$0xff] %vm1158, %v3771
      %4020 = vst.msk [vmem:[%s528 + $0x18] sm:$0xff] %vm1158, %v3774
      %4021 = vst.msk [vmem:[%s528 + $0x20] sm:$0xff] %vm1158, %v3779
      %4022 = vst.msk [vmem:[%s528 + $0x28] sm:$0xff] %vm1158, %v3782
      %4023 = vst.msk [vmem:[%s528 + $0x30] sm:$0xff] %vm1158, %v3787
      %4024 = vst.msk [vmem:[%s528 + $0x38] sm:$0xff] %vm1158, %v3790
      %4025 = vst.msk [vmem:[%s528 + $0x40] sm:$0xff] %vm1158, %v3795
      %4026 = vst.msk [vmem:[%s528 + $0x48] sm:$0xff] %vm1158, %v3798
      %4027 = vst.msk [vmem:[%s528 + $0x50] sm:$0xff] %vm1158, %v3803
      %4028 = vst.msk [vmem:[%s528 + $0x58] sm:$0xff] %vm1158, %v3806
      %4029 = vst.msk [vmem:[%s528 + $0x60] sm:$0xff] %vm1158, %v3811
      %4030 = vst.msk [vmem:[%s528 + $0x68] sm:$0xff] %vm1158, %v3814
      %4031 = vst.msk [vmem:[%s528 + $0x70] sm:$0xff] %vm1158, %v3819
      %4032 = vst.msk [vmem:[%s528 + $0x78] sm:$0xff] %vm1158, %v3822
      %4033 = vst.msk [vmem:[%s528 + $0x80] sm:$0xff] %vm1158, %v3827
      %4034 = vst.msk [vmem:[%s528 + $0x88] sm:$0xff] %vm1158, %v3830
      %4035 = vst.msk [vmem:[%s528 + $0x90] sm:$0xff] %vm1158, %v3835
      %4036 = vst.msk [vmem:[%s528 + $0x98] sm:$0xff] %vm1158, %v3838
      %4037 = vst.msk [vmem:[%s528 + $0xa0] sm:$0xff] %vm1158, %v3843
      %4038 = vst.msk [vmem:[%s528 + $0xa8] sm:$0xff] %vm1158, %v3846
      %4039 = vst.msk [vmem:[%s528 + $0xb0] sm:$0xff] %vm1158, %v3851
      %4040 = vst.msk [vmem:[%s528 + $0xb8] sm:$0xff] %vm1158, %v3854
      %4041 = vst.msk [vmem:[%s528 + $0xc0] sm:$0xff] %vm1158, %v3859
      %4042 = vst.msk [vmem:[%s528 + $0xc8] sm:$0xff] %vm1158, %v3862
      %4043 = vst.msk [vmem:[%s528 + $0xd0] sm:$0xff] %vm1158, %v3867
      %4044 = vst.msk [vmem:[%s528 + $0xd8] sm:$0xff] %vm1158, %v3870
      %4045 = vst.msk [vmem:[%s528 + $0xe0] sm:$0xff] %vm1158, %v3875
      %4046 = vst.msk [vmem:[%s528 + $0xe8] sm:$0xff] %vm1158, %v3878
      %4047 = vst.msk [vmem:[%s528 + $0xf0] sm:$0xff] %vm1158, %v3883
      %4048 = vst.msk [vmem:[%s528 + $0xf8] sm:$0xff] %vm1158, %v3886
      %4049 = vst.msk [vmem:[%s528 + $0x100] sm:$0xff] %vm1158, %v3891
      %4050 = vst.msk [vmem:[%s528 + $0x108] sm:$0xff] %vm1158, %v3894
      %4051 = vst.msk [vmem:[%s528 + $0x110] sm:$0xff] %vm1158, %v3899
      %4052 = vst.msk [vmem:[%s528 + $0x118] sm:$0xff] %vm1158, %v3902
      %4053 = vst.msk [vmem:[%s528 + $0x120] sm:$0xff] %vm1158, %v3907
      %4054 = vst.msk [vmem:[%s528 + $0x128] sm:$0xff] %vm1158, %v3910
      %4055 = vst.msk [vmem:[%s528 + $0x130] sm:$0xff] %vm1158, %v3915
      %4056 = vst.msk [vmem:[%s528 + $0x138] sm:$0xff] %vm1158, %v3918
      %4057 = vst.msk [vmem:[%s528 + $0x140] sm:$0xff] %vm1158, %v3923
      %4058 = vst.msk [vmem:[%s528 + $0x148] sm:$0xff] %vm1158, %v3926
      %4059 = vst.msk [vmem:[%s528 + $0x150] sm:$0xff] %vm1158, %v3931
      %4060 = vst.msk [vmem:[%s528 + $0x158] sm:$0xff] %vm1158, %v3934
      %4061 = vst.msk [vmem:[%s528 + $0x160] sm:$0xff] %vm1158, %v3939
      %4062 = vst.msk [vmem:[%s528 + $0x168] sm:$0xff] %vm1158, %v3942
      %4063 = vst.msk [vmem:[%s528 + $0x170] sm:$0xff] %vm1158, %v3947
      %4064 = vst.msk [vmem:[%s528 + $0x178] sm:$0xff] %vm1158, %v3950
      %4065 = vst.msk [vmem:[%s528 + $0x180] sm:$0xff] %vm1158, %v3955
      %4066 = vst.msk [vmem:[%s528 + $0x188] sm:$0xff] %vm1158, %v3958
      %4067 = vst.msk [vmem:[%s528 + $0x190] sm:$0xff] %vm1158, %v3963
      %4068 = vst.msk [vmem:[%s528 + $0x198] sm:$0xff] %vm1158, %v3966
      %4069 = vst.msk [vmem:[%s528 + $0x1a0] sm:$0xff] %vm1158, %v3971
      %4070 = vst.msk [vmem:[%s528 + $0x1a8] sm:$0xff] %vm1158, %v3974
      %4071 = vst.msk [vmem:[%s528 + $0x1b0] sm:$0xff] %vm1158, %v3979
      %4072 = vst.msk [vmem:[%s528 + $0x1b8] sm:$0xff] %vm1158, %v3982
      %4073 = vst.msk [vmem:[%s528 + $0x1c0] sm:$0xff] %vm1158, %v3987
      %4074 = vst.msk [vmem:[%s528 + $0x1c8] sm:$0xff] %vm1158, %v3990
      %4075 = vst.msk [vmem:[%s528 + $0x1d0] sm:$0xff] %vm1158, %v3995
      %4076 = vst.msk [vmem:[%s528 + $0x1d8] sm:$0xff] %vm1158, %v3998
      %4077 = vst.msk [vmem:[%s528 + $0x1e0] sm:$0xff] %vm1158, %v4003
      %4078 = vst.msk [vmem:[%s528 + $0x1e8] sm:$0xff] %vm1158, %v4006
      %4079 = vst.msk [vmem:[%s528 + $0x1f0] sm:$0xff] %vm1158, %v4011
      %4080 = vst.msk [vmem:[%s528 + $0x1f8] sm:$0xff] %vm1158, %v4014
      %4081 = vst.msk [vmem:[%s534] sm:$0xff] %vm3056, %v1866
      %4082 = vst.msk [vmem:[%s534 + $0x8] sm:$0xff] %vm3056, %v1869
      %4083 = vst.msk [vmem:[%s534 + $0x10] sm:$0xff] %vm3056, %v1874
      %4084 = vst.msk [vmem:[%s534 + $0x18] sm:$0xff] %vm3056, %v1877
      %4085 = vst.msk [vmem:[%s534 + $0x20] sm:$0xff] %vm3056, %v1882
      %4086 = vst.msk [vmem:[%s534 + $0x28] sm:$0xff] %vm3056, %v1885
      %4087 = vst.msk [vmem:[%s534 + $0x30] sm:$0xff] %vm3056, %v1890
      %4088 = vst.msk [vmem:[%s534 + $0x38] sm:$0xff] %vm3056, %v1893
      %4089 = vst.msk [vmem:[%s534 + $0x40] sm:$0xff] %vm3056, %v1898
      %4090 = vst.msk [vmem:[%s534 + $0x48] sm:$0xff] %vm3056, %v1901
      %4091 = vst.msk [vmem:[%s534 + $0x50] sm:$0xff] %vm3056, %v1906
      %4092 = vst.msk [vmem:[%s534 + $0x58] sm:$0xff] %vm3056, %v1909
      %4093 = vst.msk [vmem:[%s534 + $0x60] sm:$0xff] %vm3056, %v1914
      %4094 = vst.msk [vmem:[%s534 + $0x68] sm:$0xff] %vm3056, %v1917
      %4095 = vst.msk [vmem:[%s534 + $0x70] sm:$0xff] %vm3056, %v1922
      %4096 = vst.msk [vmem:[%s534 + $0x78] sm:$0xff] %vm3056, %v1925
      %4097 = vst.msk [vmem:[%s534 + $0x80] sm:$0xff] %vm3056, %v1930
      %4098 = vst.msk [vmem:[%s534 + $0x88] sm:$0xff] %vm3056, %v1933
      %4099 = vst.msk [vmem:[%s534 + $0x90] sm:$0xff] %vm3056, %v1938
      %4100 = vst.msk [vmem:[%s534 + $0x98] sm:$0xff] %vm3056, %v1941
      %4101 = vst.msk [vmem:[%s534 + $0xa0] sm:$0xff] %vm3056, %v1946
      %4102 = vst.msk [vmem:[%s534 + $0xa8] sm:$0xff] %vm3056, %v1949
      %4103 = vst.msk [vmem:[%s534 + $0xb0] sm:$0xff] %vm3056, %v1954
      %4104 = vst.msk [vmem:[%s534 + $0xb8] sm:$0xff] %vm3056, %v1957
      %4105 = vst.msk [vmem:[%s534 + $0xc0] sm:$0xff] %vm3056, %v1962
      %4106 = vst.msk [vmem:[%s534 + $0xc8] sm:$0xff] %vm3056, %v1965
      %4107 = vst.msk [vmem:[%s534 + $0xd0] sm:$0xff] %vm3056, %v1970
      %4108 = vst.msk [vmem:[%s534 + $0xd8] sm:$0xff] %vm3056, %v1973
      %4109 = vst.msk [vmem:[%s534 + $0xe0] sm:$0xff] %vm3056, %v1978
      %4110 = vst.msk [vmem:[%s534 + $0xe8] sm:$0xff] %vm3056, %v1981
      %4111 = vst.msk [vmem:[%s534 + $0xf0] sm:$0xff] %vm3056, %v1986
      %4112 = vst.msk [vmem:[%s534 + $0xf8] sm:$0xff] %vm3056, %v1989
      %4113 = vst.msk [vmem:[%s534 + $0x100] sm:$0xff] %vm3056, %v1994
      %4114 = vst.msk [vmem:[%s534 + $0x108] sm:$0xff] %vm3056, %v1997
      %4115 = vst.msk [vmem:[%s534 + $0x110] sm:$0xff] %vm3056, %v2002
      %4116 = vst.msk [vmem:[%s534 + $0x118] sm:$0xff] %vm3056, %v2005
      %4117 = vst.msk [vmem:[%s534 + $0x120] sm:$0xff] %vm3056, %v2010
      %4118 = vst.msk [vmem:[%s534 + $0x128] sm:$0xff] %vm3056, %v2013
      %4119 = vst.msk [vmem:[%s534 + $0x130] sm:$0xff] %vm3056, %v2018
      %4120 = vst.msk [vmem:[%s534 + $0x138] sm:$0xff] %vm3056, %v2021
      %4121 = vst.msk [vmem:[%s534 + $0x140] sm:$0xff] %vm3056, %v2026
      %4122 = vst.msk [vmem:[%s534 + $0x148] sm:$0xff] %vm3056, %v2029
      %4123 = vst.msk [vmem:[%s534 + $0x150] sm:$0xff] %vm3056, %v2034
      %4124 = vst.msk [vmem:[%s534 + $0x158] sm:$0xff] %vm3056, %v2037
      %4125 = vst.msk [vmem:[%s534 + $0x160] sm:$0xff] %vm3056, %v2042
      %4126 = vst.msk [vmem:[%s534 + $0x168] sm:$0xff] %vm3056, %v2045
      %4127 = vst.msk [vmem:[%s534 + $0x170] sm:$0xff] %vm3056, %v2050
      %4128 = vst.msk [vmem:[%s534 + $0x178] sm:$0xff] %vm3056, %v2053
      %4129 = vst.msk [vmem:[%s534 + $0x180] sm:$0xff] %vm3056, %v2058
      %4130 = vst.msk [vmem:[%s534 + $0x188] sm:$0xff] %vm3056, %v2061
      %4131 = vst.msk [vmem:[%s534 + $0x190] sm:$0xff] %vm3056, %v2066
      %4132 = vst.msk [vmem:[%s534 + $0x198] sm:$0xff] %vm3056, %v2069
      %4133 = vst.msk [vmem:[%s534 + $0x1a0] sm:$0xff] %vm3056, %v2074
      %4134 = vst.msk [vmem:[%s534 + $0x1a8] sm:$0xff] %vm3056, %v2077
      %4135 = vst.msk [vmem:[%s534 + $0x1b0] sm:$0xff] %vm3056, %v2082
      %4136 = vst.msk [vmem:[%s534 + $0x1b8] sm:$0xff] %vm3056, %v2085
      %4137 = vst.msk [vmem:[%s534 + $0x1c0] sm:$0xff] %vm3056, %v2090
      %4138 = vst.msk [vmem:[%s534 + $0x1c8] sm:$0xff] %vm3056, %v2093
      %4139 = vst.msk [vmem:[%s534 + $0x1d0] sm:$0xff] %vm3056, %v2098
      %4140 = vst.msk [vmem:[%s534 + $0x1d8] sm:$0xff] %vm3056, %v2101
      %4141 = vst.msk [vmem:[%s534 + $0x1e0] sm:$0xff] %vm3056, %v2106
      %4142 = vst.msk [vmem:[%s534 + $0x1e8] sm:$0xff] %vm3056, %v2109
      %4143 = vst.msk [vmem:[%s534 + $0x1f0] sm:$0xff] %vm3056, %v2114
      %4144 = vst.msk [vmem:[%s534 + $0x1f8] sm:$0xff] %vm3056, %v2117
      %4209 = vrot.lane.b32.xlu0 %v1866, 112
      %v4210 = vpop.permute.xlu0 %4209
      %4211 = vrot.lane.b32.xlu0 %v1869, 112
      %v4212 = vpop.permute.xlu0 %4211
      %4213 = vrot.lane.b32.xlu0 %v1874, 112
      %v4214 = vpop.permute.xlu0 %4213
      %4215 = vrot.lane.b32.xlu0 %v1877, 112
      %v4216 = vpop.permute.xlu0 %4215
      %4217 = vrot.lane.b32.xlu0 %v1882, 112
      %v4218 = vpop.permute.xlu0 %4217
      %4219 = vrot.lane.b32.xlu0 %v1885, 112
      %v4220 = vpop.permute.xlu0 %4219
      %4221 = vrot.lane.b32.xlu0 %v1890, 112
      %v4222 = vpop.permute.xlu0 %4221
      %4223 = vrot.lane.b32.xlu0 %v1893, 112
      %v4224 = vpop.permute.xlu0 %4223
      %4225 = vrot.lane.b32.xlu0 %v1898, 112
      %v4226 = vpop.permute.xlu0 %4225
      %4227 = vrot.lane.b32.xlu0 %v1901, 112
      %v4228 = vpop.permute.xlu0 %4227
      %4229 = vrot.lane.b32.xlu0 %v1906, 112
      %v4230 = vpop.permute.xlu0 %4229
      %4231 = vrot.lane.b32.xlu0 %v1909, 112
      %v4232 = vpop.permute.xlu0 %4231
      %4233 = vrot.lane.b32.xlu0 %v1914, 112
      %v4234 = vpop.permute.xlu0 %4233
      %4235 = vrot.lane.b32.xlu0 %v1917, 112
      %v4236 = vpop.permute.xlu0 %4235
      %4237 = vrot.lane.b32.xlu0 %v1922, 112
      %v4238 = vpop.permute.xlu0 %4237
      %4239 = vrot.lane.b32.xlu0 %v1925, 112
      %v4240 = vpop.permute.xlu0 %4239
      %4241 = vrot.lane.b32.xlu0 %v1930, 112
      %v4242 = vpop.permute.xlu0 %4241
      %4243 = vrot.lane.b32.xlu0 %v1933, 112
      %v4244 = vpop.permute.xlu0 %4243
      %4245 = vrot.lane.b32.xlu0 %v1938, 112
      %v4246 = vpop.permute.xlu0 %4245
      %4247 = vrot.lane.b32.xlu0 %v1941, 112
      %v4248 = vpop.permute.xlu0 %4247
      %4249 = vrot.lane.b32.xlu0 %v1946, 112
      %v4250 = vpop.permute.xlu0 %4249
      %4251 = vrot.lane.b32.xlu0 %v1949, 112
      %v4252 = vpop.permute.xlu0 %4251
      %4253 = vrot.lane.b32.xlu0 %v1954, 112
      %v4254 = vpop.permute.xlu0 %4253
      %4255 = vrot.lane.b32.xlu0 %v1957, 112
      %v4256 = vpop.permute.xlu0 %4255
      %4257 = vrot.lane.b32.xlu0 %v1962, 112
      %v4258 = vpop.permute.xlu0 %4257
      %4259 = vrot.lane.b32.xlu0 %v1965, 112
      %v4260 = vpop.permute.xlu0 %4259
      %4261 = vrot.lane.b32.xlu0 %v1970, 112
      %v4262 = vpop.permute.xlu0 %4261
      %4263 = vrot.lane.b32.xlu0 %v1973, 112
      %v4264 = vpop.permute.xlu0 %4263
      %4265 = vrot.lane.b32.xlu0 %v1978, 112
      %v4266 = vpop.permute.xlu0 %4265
      %4267 = vrot.lane.b32.xlu0 %v1981, 112
      %v4268 = vpop.permute.xlu0 %4267
      %4269 = vrot.lane.b32.xlu0 %v1986, 112
      %v4270 = vpop.permute.xlu0 %4269
      %4271 = vrot.lane.b32.xlu0 %v1989, 112
      %v4272 = vpop.permute.xlu0 %4271
      %4273 = vrot.lane.b32.xlu0 %v1994, 112
      %v4274 = vpop.permute.xlu0 %4273
      %4275 = vrot.lane.b32.xlu0 %v1997, 112
      %v4276 = vpop.permute.xlu0 %4275
      %4277 = vrot.lane.b32.xlu0 %v2002, 112
      %v4278 = vpop.permute.xlu0 %4277
      %4279 = vrot.lane.b32.xlu0 %v2005, 112
      %v4280 = vpop.permute.xlu0 %4279
      %4281 = vrot.lane.b32.xlu0 %v2010, 112
      %v4282 = vpop.permute.xlu0 %4281
      %4283 = vrot.lane.b32.xlu0 %v2013, 112
      %v4284 = vpop.permute.xlu0 %4283
      %4285 = vrot.lane.b32.xlu0 %v2018, 112
      %v4286 = vpop.permute.xlu0 %4285
      %4287 = vrot.lane.b32.xlu0 %v2021, 112
      %v4288 = vpop.permute.xlu0 %4287
      %4289 = vrot.lane.b32.xlu0 %v2026, 112
      %v4290 = vpop.permute.xlu0 %4289
      %4291 = vrot.lane.b32.xlu0 %v2029, 112
      %v4292 = vpop.permute.xlu0 %4291
      %4293 = vrot.lane.b32.xlu0 %v2034, 112
      %v4294 = vpop.permute.xlu0 %4293
      %4295 = vrot.lane.b32.xlu0 %v2037, 112
      %v4296 = vpop.permute.xlu0 %4295
      %4297 = vrot.lane.b32.xlu0 %v2042, 112
      %v4298 = vpop.permute.xlu0 %4297
      %4299 = vrot.lane.b32.xlu0 %v2045, 112
      %v4300 = vpop.permute.xlu0 %4299
      %4301 = vrot.lane.b32.xlu0 %v2050, 112
      %v4302 = vpop.permute.xlu0 %4301
      %4303 = vrot.lane.b32.xlu0 %v2053, 112
      %v4304 = vpop.permute.xlu0 %4303
      %4305 = vrot.lane.b32.xlu0 %v2058, 112
      %v4306 = vpop.permute.xlu0 %4305
      %4307 = vrot.lane.b32.xlu0 %v2061, 112
      %v4308 = vpop.permute.xlu0 %4307
      %4309 = vrot.lane.b32.xlu0 %v2066, 112
      %v4310 = vpop.permute.xlu0 %4309
      %4311 = vrot.lane.b32.xlu0 %v2069, 112
      %v4312 = vpop.permute.xlu0 %4311
      %4313 = vrot.lane.b32.xlu0 %v2074, 112
      %v4314 = vpop.permute.xlu0 %4313
      %4315 = vrot.lane.b32.xlu0 %v2077, 112
      %v4316 = vpop.permute.xlu0 %4315
      %4317 = vrot.lane.b32.xlu0 %v2082, 112
      %v4318 = vpop.permute.xlu0 %4317
      %4319 = vrot.lane.b32.xlu0 %v2085, 112
      %v4320 = vpop.permute.xlu0 %4319
      %4321 = vrot.lane.b32.xlu0 %v2090, 112
      %v4322 = vpop.permute.xlu0 %4321
      %4323 = vrot.lane.b32.xlu0 %v2093, 112
      %v4324 = vpop.permute.xlu0 %4323
      %4325 = vrot.lane.b32.xlu0 %v2098, 112
      %v4326 = vpop.permute.xlu0 %4325
      %4327 = vrot.lane.b32.xlu0 %v2101, 112
      %v4328 = vpop.permute.xlu0 %4327
      %4329 = vrot.lane.b32.xlu0 %v2106, 112
      %v4330 = vpop.permute.xlu0 %4329
      %4331 = vrot.lane.b32.xlu0 %v2109, 112
      %v4332 = vpop.permute.xlu0 %4331
      %4333 = vrot.lane.b32.xlu0 %v2114, 112
      %v4334 = vpop.permute.xlu0 %4333
      %4335 = vrot.lane.b32.xlu0 %v2117, 112
      %v4336 = vpop.permute.xlu0 %4335
      %4401 = vst.msk [vmem:[%s540] sm:$0xff] %vm3056, %v4210
      %4402 = vst.msk [vmem:[%s540 + $0x8] sm:$0xff] %vm3056, %v4212
      %4403 = vst.msk [vmem:[%s540 + $0x10] sm:$0xff] %vm3056, %v4214
      %4404 = vst.msk [vmem:[%s540 + $0x18] sm:$0xff] %vm3056, %v4216
      %4405 = vst.msk [vmem:[%s540 + $0x20] sm:$0xff] %vm3056, %v4218
      %4406 = vst.msk [vmem:[%s540 + $0x28] sm:$0xff] %vm3056, %v4220
      %4407 = vst.msk [vmem:[%s540 + $0x30] sm:$0xff] %vm3056, %v4222
      %4408 = vst.msk [vmem:[%s540 + $0x38] sm:$0xff] %vm3056, %v4224
      %4409 = vst.msk [vmem:[%s540 + $0x40] sm:$0xff] %vm3056, %v4226
      %4410 = vst.msk [vmem:[%s540 + $0x48] sm:$0xff] %vm3056, %v4228
      %4411 = vst.msk [vmem:[%s540 + $0x50] sm:$0xff] %vm3056, %v4230
      %4412 = vst.msk [vmem:[%s540 + $0x58] sm:$0xff] %vm3056, %v4232
      %4413 = vst.msk [vmem:[%s540 + $0x60] sm:$0xff] %vm3056, %v4234
      %4414 = vst.msk [vmem:[%s540 + $0x68] sm:$0xff] %vm3056, %v4236
      %4415 = vst.msk [vmem:[%s540 + $0x70] sm:$0xff] %vm3056, %v4238
      %4416 = vst.msk [vmem:[%s540 + $0x78] sm:$0xff] %vm3056, %v4240
      %4417 = vst.msk [vmem:[%s540 + $0x80] sm:$0xff] %vm3056, %v4242
      %4418 = vst.msk [vmem:[%s540 + $0x88] sm:$0xff] %vm3056, %v4244
      %4419 = vst.msk [vmem:[%s540 + $0x90] sm:$0xff] %vm3056, %v4246
      %4420 = vst.msk [vmem:[%s540 + $0x98] sm:$0xff] %vm3056, %v4248
      %4421 = vst.msk [vmem:[%s540 + $0xa0] sm:$0xff] %vm3056, %v4250
      %4422 = vst.msk [vmem:[%s540 + $0xa8] sm:$0xff] %vm3056, %v4252
      %4423 = vst.msk [vmem:[%s540 + $0xb0] sm:$0xff] %vm3056, %v4254
      %4424 = vst.msk [vmem:[%s540 + $0xb8] sm:$0xff] %vm3056, %v4256
      %4425 = vst.msk [vmem:[%s540 + $0xc0] sm:$0xff] %vm3056, %v4258
      %4426 = vst.msk [vmem:[%s540 + $0xc8] sm:$0xff] %vm3056, %v4260
      %4427 = vst.msk [vmem:[%s540 + $0xd0] sm:$0xff] %vm3056, %v4262
      %4428 = vst.msk [vmem:[%s540 + $0xd8] sm:$0xff] %vm3056, %v4264
      %4429 = vst.msk [vmem:[%s540 + $0xe0] sm:$0xff] %vm3056, %v4266
      %4430 = vst.msk [vmem:[%s540 + $0xe8] sm:$0xff] %vm3056, %v4268
      %4431 = vst.msk [vmem:[%s540 + $0xf0] sm:$0xff] %vm3056, %v4270
      %4432 = vst.msk [vmem:[%s540 + $0xf8] sm:$0xff] %vm3056, %v4272
      %4433 = vst.msk [vmem:[%s540 + $0x100] sm:$0xff] %vm3056, %v4274
      %4434 = vst.msk [vmem:[%s540 + $0x108] sm:$0xff] %vm3056, %v4276
      %4435 = vst.msk [vmem:[%s540 + $0x110] sm:$0xff] %vm3056, %v4278
      %4436 = vst.msk [vmem:[%s540 + $0x118] sm:$0xff] %vm3056, %v4280
      %4437 = vst.msk [vmem:[%s540 + $0x120] sm:$0xff] %vm3056, %v4282
      %4438 = vst.msk [vmem:[%s540 + $0x128] sm:$0xff] %vm3056, %v4284
      %4439 = vst.msk [vmem:[%s540 + $0x130] sm:$0xff] %vm3056, %v4286
      %4440 = vst.msk [vmem:[%s540 + $0x138] sm:$0xff] %vm3056, %v4288
      %4441 = vst.msk [vmem:[%s540 + $0x140] sm:$0xff] %vm3056, %v4290
      %4442 = vst.msk [vmem:[%s540 + $0x148] sm:$0xff] %vm3056, %v4292
      %4443 = vst.msk [vmem:[%s540 + $0x150] sm:$0xff] %vm3056, %v4294
      %4444 = vst.msk [vmem:[%s540 + $0x158] sm:$0xff] %vm3056, %v4296
      %4445 = vst.msk [vmem:[%s540 + $0x160] sm:$0xff] %vm3056, %v4298
      %4446 = vst.msk [vmem:[%s540 + $0x168] sm:$0xff] %vm3056, %v4300
      %4447 = vst.msk [vmem:[%s540 + $0x170] sm:$0xff] %vm3056, %v4302
      %4448 = vst.msk [vmem:[%s540 + $0x178] sm:$0xff] %vm3056, %v4304
      %4449 = vst.msk [vmem:[%s540 + $0x180] sm:$0xff] %vm3056, %v4306
      %4450 = vst.msk [vmem:[%s540 + $0x188] sm:$0xff] %vm3056, %v4308
      %4451 = vst.msk [vmem:[%s540 + $0x190] sm:$0xff] %vm3056, %v4310
      %4452 = vst.msk [vmem:[%s540 + $0x198] sm:$0xff] %vm3056, %v4312
      %4453 = vst.msk [vmem:[%s540 + $0x1a0] sm:$0xff] %vm3056, %v4314
      %4454 = vst.msk [vmem:[%s540 + $0x1a8] sm:$0xff] %vm3056, %v4316
      %4455 = vst.msk [vmem:[%s540 + $0x1b0] sm:$0xff] %vm3056, %v4318
      %4456 = vst.msk [vmem:[%s540 + $0x1b8] sm:$0xff] %vm3056, %v4320
      %4457 = vst.msk [vmem:[%s540 + $0x1c0] sm:$0xff] %vm3056, %v4322
      %4458 = vst.msk [vmem:[%s540 + $0x1c8] sm:$0xff] %vm3056, %v4324
      %4459 = vst.msk [vmem:[%s540 + $0x1d0] sm:$0xff] %vm3056, %v4326
      %4460 = vst.msk [vmem:[%s540 + $0x1d8] sm:$0xff] %vm3056, %v4328
      %4461 = vst.msk [vmem:[%s540 + $0x1e0] sm:$0xff] %vm3056, %v4330
      %4462 = vst.msk [vmem:[%s540 + $0x1e8] sm:$0xff] %vm3056, %v4332
      %4463 = vst.msk [vmem:[%s540 + $0x1f0] sm:$0xff] %vm3056, %v4334
      %4464 = vst.msk [vmem:[%s540 + $0x1f8] sm:$0xff] %vm3056, %v4336
      %s4465 = smul.u32 64, %s26
      %p4466 = scmp.lt.s32.totalorder %s4465, 127
      %s4467 = scalar_select %p4466, %s4465, 127
      %s4468 = smul.addr %s4467, 8
      %s4469 = scalar_lea.vmem %s12, %s4468
      %s4470 = smul.u32 64, %s26
      %p4471 = scmp.lt.s32.totalorder %s4470, 127
      %s4472 = scalar_select %p4471, %s4470, 127
      %s4473 = smul.addr %s4472, 8
      %s4474 = scalar_lea.vmem %s13, %s4473
      %s4475 = smul.u32 64, %s26
      %p4476 = scmp.lt.s32.totalorder %s4475, 127
      %s4477 = scalar_select %p4476, %s4475, 127
      %s4478 = smul.addr %s4477, 8
      %s4479 = scalar_lea.vmem %s14, %s4478
      // Predicated region
      $region69: #{cvae_forward.1} parent=67 // pred_check
        %p4480 = pneg %p311
      $region70: #{cvae_forward.1} parent=67 // pred_check_branch
        %4482 = sbr.rel (%p4480) target = $region72
      $region71: #{cvae_forward.1} parent=67 // pred_region
        %s4483 = smul.u32 64, %s26
      $region72: #{cvae_forward.1} parent=67 // pred_fallthru
        _
      // Predicated region
      $region73: #{cvae_forward.1} parent=67 // pred_check
        %p4484 = pneg %p337
      $region74: #{cvae_forward.1} parent=67 // pred_check_branch
        %4486 = sbr.rel (%p4484) target = $region76
      $region75: #{cvae_forward.1} parent=67 // pred_region
        %s4487 = smul.u32 64, %s26
      $region76: #{cvae_forward.1} parent=67 // pred_fallthru
        _
      // Predicated region
      $region77: #{cvae_forward.1} parent=67 // pred_check
        %p4488 = pneg %p363
      $region78: #{cvae_forward.1} parent=67 // pred_check_branch
        %4490 = sbr.rel (%p4488) target = $region80
      $region79: #{cvae_forward.1} parent=67 // pred_region
        %s4491 = smul.u32 64, %s26
      $region80: #{cvae_forward.1} parent=67 // pred_fallthru
        _
    $region68: #{cvae_forward.1} parent=5 // pred_fallthru
      _
    %p4492 = scmp.le.s32.totalorder 2, %s21
    // Predicated region
    $region81: #{cvae_forward.1} parent=5 // pred_check
      %p4493 = pneg %p4492
    $region82: #{cvae_forward.1} parent=5 // pred_check_branch
      %4495 = sbr.rel (%p4493) target = $region84
    $region83: #{cvae_forward.1} parent=5 // pred_region
      %s4496 = ssub.s32 %s21, 2
      // Predicated region
      $region85: #{cvae_forward.1} parent=83 // pred_check
        %p4497 = pneg %p317
      $region86: #{cvae_forward.1} parent=83 // pred_check_branch
        %4499 = sbr.rel (%p4497) target = $region88
      $region87: #{cvae_forward.1} parent=83 // pred_region
        %s4500 = smul.u32 64, %s27
        %p4501 = scmp.lt.s32.totalorder %s4500, 127
        %s4502 = scalar_select %p4501, %s4500, 127
        %s4503 = smul.addr %s4502, 8
        %s4504 = scalar_lea.vmem %s12, %s4503
      $region88: #{cvae_forward.1} parent=83 // pred_fallthru
        _
      // Predicated region
      $region89: #{cvae_forward.1} parent=83 // pred_check
        %p4505 = pneg %p343
      $region90: #{cvae_forward.1} parent=83 // pred_check_branch
        %4507 = sbr.rel (%p4505) target = $region92
      $region91: #{cvae_forward.1} parent=83 // pred_region
        %s4508 = smul.u32 64, %s27
        %p4509 = scmp.lt.s32.totalorder %s4508, 127
        %s4510 = scalar_select %p4509, %s4508, 127
        %s4511 = smul.addr %s4510, 8
        %s4512 = scalar_lea.vmem %s13, %s4511
      $region92: #{cvae_forward.1} parent=83 // pred_fallthru
        _
      // Predicated region
      $region93: #{cvae_forward.1} parent=83 // pred_check
        %p4513 = pneg %p369
      $region94: #{cvae_forward.1} parent=83 // pred_check_branch
        %4515 = sbr.rel (%p4513) target = $region96
      $region95: #{cvae_forward.1} parent=83 // pred_region
        %s4516 = smul.u32 64, %s27
        %p4517 = scmp.lt.s32.totalorder %s4516, 127
        %s4518 = scalar_select %p4517, %s4516, 127
        %s4519 = smul.addr %s4518, 8
        %s4520 = scalar_lea.vmem %s14, %s4519
      $region96: #{cvae_forward.1} parent=83 // pred_fallthru
        _
    $region84: #{cvae_forward.1} parent=5 // pred_fallthru
      _
  $region6: #{cvae_forward.1} parent=0 // loop_footer
    %s25 = sadd.s32 1, %s21
  $region7: #{cvae_forward.1} parent=0 // loop_footer_branch
    %20 = sbr.rel target = $region3
  $region8: #{cvae_forward.1} parent=0 // loop_exit
    _

</llo_original>
